<compile_context>
chip_gen: v7x
topology: tpu7x:2x2x1
jax: 0.10.0
libtpu: 0.0.40
codegen_flags: <defaults>
</compile_context>

<pallas_src>
import math
import functools

import numpy as np
import jax
import jax.numpy as jnp
from jax import lax
from jax.experimental import pallas as pl
from jax.experimental.pallas import tpu as pltpu

CPAD = 128  # channel padding -> full 128-lane vregs, unmasked stores


def _round_up(x, m):
    return -(-x // m) * m


def _pick_vmem_limit():
    """Per-chip scoped-VMEM limit: ~3/4 of capacity, capped at 96 MiB."""
    try:
        cap = int(pltpu.get_tpu_info().vmem_capacity_bytes)
    except Exception:
        cap = 128 * 1024 * 1024
    return max(16 * 1024 * 1024, min((cap * 3) // 4, 96 * 1024 * 1024))


# ---------------------------------------------------------------------------
# Pallas kernel: the whole TCN (all TemporalBlocks fused)
# ---------------------------------------------------------------------------
def tcn_kernel(x_ref, w1_ref, b1_ref, w2_ref, b2_ref, wd_ref, bd_ref, o_ref,
               *, k, dilations, has_ds, seq_len):
    nb, lp, c = x_ref.shape            # (batch-per-step, padded time, 128)
    lo = o_ref.shape[1]                # writeback rows (halo not written)
    rows = nb * lp
    cdt = x_ref.dtype                  # bf16 activations end to end

    # Every per-batch time segment keeps rows [seq_len, lp) exactly zero, so
    # a circular roll wrap (and cross-segment bleed when nb > 1) only ever
    # brings in zeros -> no per-tap masks needed.
    keep = (lax.broadcasted_iota(jnp.int32, (nb, lp, 1), 1)
            < seq_len).astype(cdt)

    def zero_tail(v):                  # re-zero the halo rows of each segment
        return (v.reshape(nb, lp, c) * keep).reshape(rows, c)

    h = x_ref[...].reshape(rows, c)    # bf16, tail rows already zero (host)

    def causal_conv(inp_bf16, w_ref, layer, d):
        # k per-tap MXU matmuls with f32 accumulation.  The causal shift is
        # applied to the f32 partial product with pltpu.roll (XLU slot);
        # wrapped-in rows are zero because inp's halo rows are zero.
        acc = None
        for t in range(k):
            shift = (k - 1 - t) * d                      # static python int
            prod = jnp.dot(inp_bf16, w_ref[layer, t],
                           preferred_element_type=jnp.float32)
            if shift:
                prod = pltpu.roll(prod, shift=shift, axis=0)
            acc = prod if acc is None else acc + prod
        return acc                                        # (rows, 128) f32

    # Unrolled layer loop: nl is small and static shifts keep rolls cheap.
    # TODO(synk): for deep stacks convert to lax.fori_loop with dynamic layer
    # indexing into the stacked weight refs to bound live ranges.
    for i, d in enumerate(dilations):
        # conv1 -> ReLU -> Dropout(identity), bf16 epilogue
        a1 = causal_conv(h, w1_ref, i, d)
        h1 = zero_tail(jnp.maximum(a1.astype(cdt) + b1_ref[i], 0))
        # conv2 -> ReLU -> Dropout(identity)
        a2 = causal_conv(h1, w2_ref, i, d)
        h2 = jnp.maximum(a2.astype(cdt) + b2_ref[i], 0)
        # residual (1x1 conv iff C_in != C_out), then final ReLU
        if has_ds[i]:
            res = jnp.dot(h, wd_ref[i],
                          preferred_element_type=jnp.float32).astype(cdt)
            res = res + bd_ref[i]
        else:
            res = h
        h = zero_tail(jnp.maximum(h2 + res, 0))

    # Lane-dense bf16 writeback, halo rows dropped.
    o_ref[...] = h.reshape(nb, lp, c)[:, :lo, :]


# ---------------------------------------------------------------------------
# Host-side parameter packing: stack layers, pad channels to CPAD, bf16 cast
# ---------------------------------------------------------------------------
def _stack_padded_params(params, kernel_size, cpad=CPAD):
    nl = len(params)
    W1 = np.zeros((nl, kernel_size, cpad, cpad), np.float32)
    B1 = np.zeros((nl, 1, cpad), np.float32)
    W2 = np.zeros((nl, kernel_size, cpad, cpad), np.float32)
    B2 = np.zeros((nl, 1, cpad), np.float32)
    WD = np.zeros((nl, cpad, cpad), np.float32)
    BD = np.zeros((nl, 1, cpad), np.float32)
    for i, p in enumerate(params):
        _, cin, cout = p["w1"].shape
        W1[i, :, :cin, :cout] = np.asarray(p["w1"])
        B1[i, 0, :cout] = np.asarray(p["b1"])[0]
        W2[i, :, :cout, :cout] = np.asarray(p["w2"])
        B2[i, 0, :cout] = np.asarray(p["b2"])[0]
        if p["wd"] is not None:
            WD[i, :cin, :cout] = np.asarray(p["wd"])
            BD[i, 0, :cout] = np.asarray(p["bd"])[0]
    to = lambda a: jnp.asarray(a, jnp.bfloat16)
    return to(W1), to(B1), to(W2), to(B2), to(WD), to(BD)


def _const_spec(arr, buffer_count):
    """Whole-array BlockSpec, constant across the batch grid (no re-DMA)."""
    nd = arr.ndim
    imap = lambda n, _nd=nd: (0,) * _nd
    if buffer_count is None:
        return pl.BlockSpec(arr.shape, imap)
    # Grid-invariant operand: request single buffering to halve weight VMEM.
    return pl.BlockSpec(arr.shape, imap, pipeline_mode=pl.Buffered(buffer_count))


# ---------------------------------------------------------------------------
# Public wrapper: PyTorch (N, C, L) in / out
# ---------------------------------------------------------------------------
def tcn_forward(x_ncl, params, kernel_size, cpad=CPAD):
    N, cin, L = x_ncl.shape
    nl = len(params)
    cout_last = params[-1]["w1"].shape[-1]
    dilations = tuple(2 ** i for i in range(nl))
    has_ds = tuple(p["wd"] is not None for p in params)

    W1, B1, W2, B2, WD, BD = _stack_padded_params(params, kernel_size, cpad)

    # Time padding: L + causal halo ((k-1)*d_max), rounded to the bf16 sublane
    # tile (16).  Rows [L, Lp) stay zero so shifted taps only wrap in zeros.
    halo = (kernel_size - 1) * dilations[-1]
    Lp = _round_up(L + halo, 16)
    Lo = _round_up(L, 16)                     # rows actually written back

    # Batch elements per grid step: fill the MXU when L is small, but keep at
    # least 2 steps when N > 1 so both v7x TensorCores get work.
    nb = max(1, min(N, 256 // Lp)) if Lp < 256 else 1
    n_steps = -(-N // nb)
    if N > 1 and n_steps < 2:
        nb = -(-N // 2)
        n_steps = -(-N // nb)
    Np = nb * n_steps

    # (N, C, L) -> (Np, Lp, CPAD) bf16, zero-padded in batch / time / channels.
    x = jnp.transpose(x_ncl, (0, 2, 1))
    x = jnp.pad(x, ((0, Np - N), (0, Lp - L), (0, cpad - cin)))
    x = x.astype(jnp.bfloat16)

    kernel = functools.partial(tcn_kernel, k=kernel_size, dilations=dilations,
                               has_ds=has_ds, seq_len=L)
    vmem_limit = _pick_vmem_limit()

    def call(weight_buffer_count):
        return pl.pallas_call(
            kernel,
            out_shape=jax.ShapeDtypeStruct((Np, Lo, cpad), jnp.bfloat16),
            grid=(n_steps,),
            in_specs=[pl.BlockSpec((nb, Lp, cpad), lambda n: (n, 0, 0)),
                      _const_spec(W1, weight_buffer_count),
                      _const_spec(B1, weight_buffer_count),
                      _const_spec(W2, weight_buffer_count),
                      _const_spec(B2, weight_buffer_count),
                      _const_spec(WD, weight_buffer_count),
                      _const_spec(BD, weight_buffer_count)],
            out_specs=pl.BlockSpec((nb, Lo, cpad), lambda n: (n, 0, 0)),
            compiler_params=pltpu.CompilerParams(
                dimension_semantics=("parallel",),
                vmem_limit_bytes=vmem_limit),
        )(x, W1, B1, W2, B2, WD, BD)

    try:
        out = jax.block_until_ready(call(1))      # single-buffered weights
    except Exception:
        # pl.Buffered(1) not supported on this jax build -> default buffering
        # (identical numerics, slightly more VMEM for the resident weights).
        out = jax.block_until_ready(call(None))

    out = out[:N, :L, :cout_last].astype(jnp.float32)
    return jnp.transpose(out, (0, 2, 1))          # -> (N, C_out, L)


# ---------------------------------------------------------------------------
# Parameter init matching nn.Conv1d defaults (layout: (k, C_in, C_out))
# ---------------------------------------------------------------------------
def init_tcn_params(key, input_size, num_channels, kernel_size):
    params = []
    in_ch = input_size
    for out_ch in num_channels:
        key, k1, k2, k3, k4, k5, k6 = jax.random.split(key, 7)
        s1 = 1.0 / math.sqrt(in_ch * kernel_size)
        s2 = 1.0 / math.sqrt(out_ch * kernel_size)
        p = {
            "w1": jax.random.uniform(k1, (kernel_size, in_ch, out_ch),
                                     jnp.float32, -s1, s1),
            "b1": jax.random.uniform(k2, (1, out_ch), jnp.float32, -s1, s1),
            "w2": jax.random.uniform(k3, (kernel_size, out_ch, out_ch),
                                     jnp.float32, -s2, s2),
            "b2": jax.random.uniform(k4, (1, out_ch), jnp.float32, -s2, s2),
        }
        if in_ch != out_ch:
            sd = 1.0 / math.sqrt(in_ch)
            p["wd"] = jax.random.uniform(k5, (in_ch, out_ch),
                                         jnp.float32, -sd, sd)
            p["bd"] = jax.random.uniform(k6, (1, out_ch), jnp.float32, -sd, sd)
        else:
            p["wd"] = None
            p["bd"] = None
        params.append(p)
        in_ch = out_ch
    return params


# ---------------------------------------------------------------------------
# NumPy reference with the original padded-conv-then-trim semantics
# ---------------------------------------------------------------------------
def _conv1d_np(x, w, b, dilation, padding):
    # x: (N, Cin, L), w: (Cout, Cin, k) torch layout, b: (Cout,)
    N, Cin, L = x.shape
    Cout, _, k = w.shape
    xp = np.pad(x, ((0, 0), (0, 0), (padding, padding)))
    Lout = L + 2 * padding - dilation * (k - 1)
    y = np.zeros((N, Cout, Lout), np.float32)
    for l in range(Lout):
        seg = xp[:, :, l:l + dilation * (k - 1) + 1:dilation]   # (N, Cin, k)
        y[:, :, l] = np.einsum("nck,ock->no", seg, w) + b
    return y


def _tcn_ref(x_ncl, params, kernel_size):
    h = np.asarray(x_ncl, np.float32)
    for i, p in enumerate(params):
        d = 2 ** i
        pad = (kernel_size - 1) * d
        w1 = np.transpose(np.asarray(p["w1"]), (2, 1, 0))   # -> (Cout, Cin, k)
        w2 = np.transpose(np.asarray(p["w2"]), (2, 1, 0))
        b1 = np.asarray(p["b1"])[0]
        b2 = np.asarray(p["b2"])[0]
        out = np.maximum(_conv1d_np(h, w1, b1, d, pad), 0.0)     # dropout = id
        out = np.maximum(_conv1d_np(out, w2, b2, d, pad), 0.0)
        if p["wd"] is None:
            res = h
        else:
            wd = np.transpose(np.asarray(p["wd"]))[:, :, None]   # (Cout,Cin,1)
            bd = np.asarray(p["bd"])[0]
            res = _conv1d_np(h, wd, bd, 1, 0)
        L = min(out.shape[2], res.shape[2])
        h = np.maximum(out[:, :, :L] + res[:, :, :L], 0.0)
    return h


# ---------------------------------------------------------------------------
if __name__ == "__main__":
    # TCN(input_size=4, num_channels=[8, 16], kernel_size=3)
    N, C_IN, L = 2, 4, 16
    NUM_CHANNELS = [8, 16]
    KSIZE = 3

    key = jax.random.PRNGKey(0)
    x = jax.random.normal(key, (N, C_IN, L), jnp.float32)        # PyTorch NCL

    params = init_tcn_params(jax.random.PRNGKey(42), C_IN, NUM_CHANNELS, KSIZE)

    out = tcn_forward(x, params, KSIZE)
    out = jax.block_until_ready(out)

    ref = _tcn_ref(np.asarray(x), params, KSIZE)
    assert out.shape == (N, NUM_CHANNELS[-1], L), out.shape
    # bf16 activations / weights with f32 accumulation -> relaxed tolerance
    np.testing.assert_allclose(np.asarray(out), ref, rtol=6e-2, atol=6e-2)

    print("KERNEL_OK")
</pallas_src>

<mosaic_0001>
module attributes {stable_mosaic.version = 11 : i64} {
  func.func @tcn_kernel(%arg0: i32, %arg1: memref<1x32x128xbf16, #tpu.memory_space<vmem>>, %arg2: memref<2x3x128x128xbf16, #tpu.memory_space<vmem>>, %arg3: memref<2x1x128xbf16, #tpu.memory_space<vmem>>, %arg4: memref<2x3x128x128xbf16, #tpu.memory_space<vmem>>, %arg5: memref<2x1x128xbf16, #tpu.memory_space<vmem>>, %arg6: memref<2x128x128xbf16, #tpu.memory_space<vmem>>, %arg7: memref<2x1x128xbf16, #tpu.memory_space<vmem>>, %arg8: memref<1x16x128xbf16, #tpu.memory_space<vmem>>) attributes {dimension_semantics = [#tpu.dimension_semantics<parallel>], iteration_bounds = array<i64: 2>, scalar_prefetch = 0 : i64, scratch_operands = 0 : i64, tpu.core_type = #tpu.core_type<tc>, window_params = [{transform_indices = @transform_0, window_bounds = array<i64: 1, 32, 128>}, {pipeline_mode = #tpu.pipeline_mode<synchronous>, transform_indices = @transform_1, window_bounds = array<i64: 2, 3, 128, 128>}, {pipeline_mode = #tpu.pipeline_mode<synchronous>, transform_indices = @transform_2, window_bounds = array<i64: 2, 1, 128>}, {pipeline_mode = #tpu.pipeline_mode<synchronous>, transform_indices = @transform_3, window_bounds = array<i64: 2, 3, 128, 128>}, {pipeline_mode = #tpu.pipeline_mode<synchronous>, transform_indices = @transform_4, window_bounds = array<i64: 2, 1, 128>}, {pipeline_mode = #tpu.pipeline_mode<synchronous>, transform_indices = @transform_5, window_bounds = array<i64: 2, 128, 128>}, {pipeline_mode = #tpu.pipeline_mode<synchronous>, transform_indices = @transform_6, window_bounds = array<i64: 2, 1, 128>}, {transform_indices = @transform_7, window_bounds = array<i64: 1, 16, 128>}]} {
    %0 = tpu.iota {dimensions = array<i32: 1>} : vector<1x32x1xi32>
    %c16_i32 = arith.constant 16 : i32
    %1 = vector.broadcast %c16_i32 : i32 to vector<1x32x1xi32>
    %2 = arith.cmpi slt, %0, %1 : vector<1x32x1xi32>
    %3 = arith.extui %2 : vector<1x32x1xi1> to vector<1x32x1xi32>
    %4 = arith.sitofp %3 : vector<1x32x1xi32> to vector<1x32x1xf32>
    %5 = arith.truncf %4 : vector<1x32x1xf32> to vector<1x32x1xbf16>
    %c0 = arith.constant 0 : index
    %c0_0 = arith.constant 0 : index
    %c0_1 = arith.constant 0 : index
    %6 = vector.load %arg1[%c0, %c0_0, %c0_1] : memref<1x32x128xbf16, #tpu.memory_space<vmem>>, vector<1x32x128xbf16>
    %7 = vector.shape_cast %6 : vector<1x32x128xbf16> to vector<32x128xbf16>
    %c0_2 = arith.constant 0 : index
    %c0_3 = arith.constant 0 : index
    %c0_4 = arith.constant 0 : index
    %c0_5 = arith.constant 0 : index
    %8 = vector.load %arg2[%c0_2, %c0_3, %c0_4, %c0_5] : memref<2x3x128x128xbf16, #tpu.memory_space<vmem>>, vector<1x1x128x128xbf16>
    %9 = vector.shape_cast %8 : vector<1x1x128x128xbf16> to vector<128x128xbf16>
    %cst = arith.constant dense<0.000000e+00> : vector<32x128xf32>
    %10 = tpu.matmul %7, %9, %cst {dimension_numbers = #tpu.dot_dimension_numbers<[1], [0], [0], [1], [0, 0, 1, 1], [], []>} : vector<32x128xbf16>, vector<128x128xbf16>, vector<32x128xf32> -> vector<32x128xf32>
    %c2_i32 = arith.constant 2 : i32
    %11 = tpu.dynamic_rotate %10 by %c2_i32 dim 0 : vector<32x128xf32>, i32 -> vector<32x128xf32>
    %c0_6 = arith.constant 0 : index
    %c1 = arith.constant 1 : index
    %c0_7 = arith.constant 0 : index
    %c0_8 = arith.constant 0 : index
    %12 = vector.load %arg2[%c0_6, %c1, %c0_7, %c0_8] : memref<2x3x128x128xbf16, #tpu.memory_space<vmem>>, vector<1x1x128x128xbf16>
    %13 = vector.shape_cast %12 : vector<1x1x128x128xbf16> to vector<128x128xbf16>
    %cst_9 = arith.constant dense<0.000000e+00> : vector<32x128xf32>
    %14 = tpu.matmul %7, %13, %cst_9 {dimension_numbers = #tpu.dot_dimension_numbers<[1], [0], [0], [1], [0, 0, 1, 1], [], []>} : vector<32x128xbf16>, vector<128x128xbf16>, vector<32x128xf32> -> vector<32x128xf32>
    %c1_i32 = arith.constant 1 : i32
    %15 = tpu.dynamic_rotate %14 by %c1_i32 dim 0 : vector<32x128xf32>, i32 -> vector<32x128xf32>
    %16 = arith.addf %11, %15 : vector<32x128xf32>
    %c0_10 = arith.constant 0 : index
    %c2 = arith.constant 2 : index
    %c0_11 = arith.constant 0 : index
    %c0_12 = arith.constant 0 : index
    %17 = vector.load %arg2[%c0_10, %c2, %c0_11, %c0_12] : memref<2x3x128x128xbf16, #tpu.memory_space<vmem>>, vector<1x1x128x128xbf16>
    %18 = vector.shape_cast %17 : vector<1x1x128x128xbf16> to vector<128x128xbf16>
    %cst_13 = arith.constant dense<0.000000e+00> : vector<32x128xf32>
    %19 = tpu.matmul %7, %18, %cst_13 {dimension_numbers = #tpu.dot_dimension_numbers<[1], [0], [0], [1], [0, 0, 1, 1], [], []>} : vector<32x128xbf16>, vector<128x128xbf16>, vector<32x128xf32> -> vector<32x128xf32>
    %20 = arith.addf %16, %19 : vector<32x128xf32>
    %21 = arith.truncf %20 : vector<32x128xf32> to vector<32x128xbf16>
    %c0_14 = arith.constant 0 : index
    %c0_15 = arith.constant 0 : index
    %c0_16 = arith.constant 0 : index
    %22 = vector.load %arg3[%c0_14, %c0_15, %c0_16] : memref<2x1x128xbf16, #tpu.memory_space<vmem>>, vector<1x1x128xbf16>
    %23 = vector.shape_cast %22 : vector<1x1x128xbf16> to vector<1x128xbf16>
    %24 = vector.broadcast %23 : vector<1x128xbf16> to vector<32x128xbf16>
    %25 = arith.addf %21, %24 : vector<32x128xbf16>
    %cst_17 = arith.constant 0.000000e+00 : bf16
    %26 = vector.broadcast %cst_17 : bf16 to vector<32x128xbf16>
    %27 = arith.maximumf %25, %26 : vector<32x128xbf16>
    %28 = vector.shape_cast %27 : vector<32x128xbf16> to vector<1x32x128xbf16>
    %29 = vector.broadcast %5 : vector<1x32x1xbf16> to vector<1x32x128xbf16>
    %30 = arith.mulf %28, %29 : vector<1x32x128xbf16>
    %31 = vector.shape_cast %30 : vector<1x32x128xbf16> to vector<32x128xbf16>
    %c0_18 = arith.constant 0 : index
    %c0_19 = arith.constant 0 : index
    %c0_20 = arith.constant 0 : index
    %c0_21 = arith.constant 0 : index
    %32 = vector.load %arg4[%c0_18, %c0_19, %c0_20, %c0_21] : memref<2x3x128x128xbf16, #tpu.memory_space<vmem>>, vector<1x1x128x128xbf16>
    %33 = vector.shape_cast %32 : vector<1x1x128x128xbf16> to vector<128x128xbf16>
    %cst_22 = arith.constant dense<0.000000e+00> : vector<32x128xf32>
    %34 = tpu.matmul %31, %33, %cst_22 {dimension_numbers = #tpu.dot_dimension_numbers<[1], [0], [0], [1], [0, 0, 1, 1], [], []>} : vector<32x128xbf16>, vector<128x128xbf16>, vector<32x128xf32> -> vector<32x128xf32>
    %c2_i32_23 = arith.constant 2 : i32
    %35 = tpu.dynamic_rotate %34 by %c2_i32_23 dim 0 : vector<32x128xf32>, i32 -> vector<32x128xf32>
    %c0_24 = arith.constant 0 : index
    %c1_25 = arith.constant 1 : index
    %c0_26 = arith.constant 0 : index
    %c0_27 = arith.constant 0 : index
    %36 = vector.load %arg4[%c0_24, %c1_25, %c0_26, %c0_27] : memref<2x3x128x128xbf16, #tpu.memory_space<vmem>>, vector<1x1x128x128xbf16>
    %37 = vector.shape_cast %36 : vector<1x1x128x128xbf16> to vector<128x128xbf16>
    %cst_28 = arith.constant dense<0.000000e+00> : vector<32x128xf32>
    %38 = tpu.matmul %31, %37, %cst_28 {dimension_numbers = #tpu.dot_dimension_numbers<[1], [0], [0], [1], [0, 0, 1, 1], [], []>} : vector<32x128xbf16>, vector<128x128xbf16>, vector<32x128xf32> -> vector<32x128xf32>
    %c1_i32_29 = arith.constant 1 : i32
    %39 = tpu.dynamic_rotate %38 by %c1_i32_29 dim 0 : vector<32x128xf32>, i32 -> vector<32x128xf32>
    %40 = arith.addf %35, %39 : vector<32x128xf32>
    %c0_30 = arith.constant 0 : index
    %c2_31 = arith.constant 2 : index
    %c0_32 = arith.constant 0 : index
    %c0_33 = arith.constant 0 : index
    %41 = vector.load %arg4[%c0_30, %c2_31, %c0_32, %c0_33] : memref<2x3x128x128xbf16, #tpu.memory_space<vmem>>, vector<1x1x128x128xbf16>
    %42 = vector.shape_cast %41 : vector<1x1x128x128xbf16> to vector<128x128xbf16>
    %cst_34 = arith.constant dense<0.000000e+00> : vector<32x128xf32>
    %43 = tpu.matmul %31, %42, %cst_34 {dimension_numbers = #tpu.dot_dimension_numbers<[1], [0], [0], [1], [0, 0, 1, 1], [], []>} : vector<32x128xbf16>, vector<128x128xbf16>, vector<32x128xf32> -> vector<32x128xf32>
    %44 = arith.addf %40, %43 : vector<32x128xf32>
    %45 = arith.truncf %44 : vector<32x128xf32> to vector<32x128xbf16>
    %c0_35 = arith.constant 0 : index
    %c0_36 = arith.constant 0 : index
    %c0_37 = arith.constant 0 : index
    %46 = vector.load %arg5[%c0_35, %c0_36, %c0_37] : memref<2x1x128xbf16, #tpu.memory_space<vmem>>, vector<1x1x128xbf16>
    %47 = vector.shape_cast %46 : vector<1x1x128xbf16> to vector<1x128xbf16>
    %48 = vector.broadcast %47 : vector<1x128xbf16> to vector<32x128xbf16>
    %49 = arith.addf %45, %48 : vector<32x128xbf16>
    %cst_38 = arith.constant 0.000000e+00 : bf16
    %50 = vector.broadcast %cst_38 : bf16 to vector<32x128xbf16>
    %51 = arith.maximumf %49, %50 : vector<32x128xbf16>
    %c0_39 = arith.constant 0 : index
    %c0_40 = arith.constant 0 : index
    %c0_41 = arith.constant 0 : index
    %52 = vector.load %arg6[%c0_39, %c0_40, %c0_41] : memref<2x128x128xbf16, #tpu.memory_space<vmem>>, vector<1x128x128xbf16>
    %53 = vector.shape_cast %52 : vector<1x128x128xbf16> to vector<128x128xbf16>
    %cst_42 = arith.constant dense<0.000000e+00> : vector<32x128xf32>
    %54 = tpu.matmul %7, %53, %cst_42 {dimension_numbers = #tpu.dot_dimension_numbers<[1], [0], [0], [1], [0, 0, 1, 1], [], []>} : vector<32x128xbf16>, vector<128x128xbf16>, vector<32x128xf32> -> vector<32x128xf32>
    %55 = arith.truncf %54 : vector<32x128xf32> to vector<32x128xbf16>
    %c0_43 = arith.constant 0 : index
    %c0_44 = arith.constant 0 : index
    %c0_45 = arith.constant 0 : index
    %56 = vector.load %arg7[%c0_43, %c0_44, %c0_45] : memref<2x1x128xbf16, #tpu.memory_space<vmem>>, vector<1x1x128xbf16>
    %57 = vector.shape_cast %56 : vector<1x1x128xbf16> to vector<1x128xbf16>
    %58 = vector.broadcast %57 : vector<1x128xbf16> to vector<32x128xbf16>
    %59 = arith.addf %55, %58 : vector<32x128xbf16>
    %60 = arith.addf %51, %59 : vector<32x128xbf16>
    %cst_46 = arith.constant 0.000000e+00 : bf16
    %61 = vector.broadcast %cst_46 : bf16 to vector<32x128xbf16>
    %62 = arith.maximumf %60, %61 : vector<32x128xbf16>
    %63 = vector.shape_cast %62 : vector<32x128xbf16> to vector<1x32x128xbf16>
    %64 = vector.broadcast %5 : vector<1x32x1xbf16> to vector<1x32x128xbf16>
    %65 = arith.mulf %63, %64 : vector<1x32x128xbf16>
    %66 = vector.shape_cast %65 : vector<1x32x128xbf16> to vector<32x128xbf16>
    %c1_47 = arith.constant 1 : index
    %c0_48 = arith.constant 0 : index
    %c0_49 = arith.constant 0 : index
    %c0_50 = arith.constant 0 : index
    %67 = vector.load %arg2[%c1_47, %c0_48, %c0_49, %c0_50] : memref<2x3x128x128xbf16, #tpu.memory_space<vmem>>, vector<1x1x128x128xbf16>
    %68 = vector.shape_cast %67 : vector<1x1x128x128xbf16> to vector<128x128xbf16>
    %cst_51 = arith.constant dense<0.000000e+00> : vector<32x128xf32>
    %69 = tpu.matmul %66, %68, %cst_51 {dimension_numbers = #tpu.dot_dimension_numbers<[1], [0], [0], [1], [0, 0, 1, 1], [], []>} : vector<32x128xbf16>, vector<128x128xbf16>, vector<32x128xf32> -> vector<32x128xf32>
    %c4_i32 = arith.constant 4 : i32
    %70 = tpu.dynamic_rotate %69 by %c4_i32 dim 0 : vector<32x128xf32>, i32 -> vector<32x128xf32>
    %c1_52 = arith.constant 1 : index
    %c1_53 = arith.constant 1 : index
    %c0_54 = arith.constant 0 : index
    %c0_55 = arith.constant 0 : index
    %71 = vector.load %arg2[%c1_52, %c1_53, %c0_54, %c0_55] : memref<2x3x128x128xbf16, #tpu.memory_space<vmem>>, vector<1x1x128x128xbf16>
    %72 = vector.shape_cast %71 : vector<1x1x128x128xbf16> to vector<128x128xbf16>
    %cst_56 = arith.constant dense<0.000000e+00> : vector<32x128xf32>
    %73 = tpu.matmul %66, %72, %cst_56 {dimension_numbers = #tpu.dot_dimension_numbers<[1], [0], [0], [1], [0, 0, 1, 1], [], []>} : vector<32x128xbf16>, vector<128x128xbf16>, vector<32x128xf32> -> vector<32x128xf32>
    %c2_i32_57 = arith.constant 2 : i32
    %74 = tpu.dynamic_rotate %73 by %c2_i32_57 dim 0 : vector<32x128xf32>, i32 -> vector<32x128xf32>
    %75 = arith.addf %70, %74 : vector<32x128xf32>
    %c1_58 = arith.constant 1 : index
    %c2_59 = arith.constant 2 : index
    %c0_60 = arith.constant 0 : index
    %c0_61 = arith.constant 0 : index
    %76 = vector.load %arg2[%c1_58, %c2_59, %c0_60, %c0_61] : memref<2x3x128x128xbf16, #tpu.memory_space<vmem>>, vector<1x1x128x128xbf16>
    %77 = vector.shape_cast %76 : vector<1x1x128x128xbf16> to vector<128x128xbf16>
    %cst_62 = arith.constant dense<0.000000e+00> : vector<32x128xf32>
    %78 = tpu.matmul %66, %77, %cst_62 {dimension_numbers = #tpu.dot_dimension_numbers<[1], [0], [0], [1], [0, 0, 1, 1], [], []>} : vector<32x128xbf16>, vector<128x128xbf16>, vector<32x128xf32> -> vector<32x128xf32>
    %79 = arith.addf %75, %78 : vector<32x128xf32>
    %80 = arith.truncf %79 : vector<32x128xf32> to vector<32x128xbf16>
    %c1_63 = arith.constant 1 : index
    %c0_64 = arith.constant 0 : index
    %c0_65 = arith.constant 0 : index
    %81 = vector.load %arg3[%c1_63, %c0_64, %c0_65] : memref<2x1x128xbf16, #tpu.memory_space<vmem>>, vector<1x1x128xbf16>
    %82 = vector.shape_cast %81 : vector<1x1x128xbf16> to vector<1x128xbf16>
    %83 = vector.broadcast %82 : vector<1x128xbf16> to vector<32x128xbf16>
    %84 = arith.addf %80, %83 : vector<32x128xbf16>
    %cst_66 = arith.constant 0.000000e+00 : bf16
    %85 = vector.broadcast %cst_66 : bf16 to vector<32x128xbf16>
    %86 = arith.maximumf %84, %85 : vector<32x128xbf16>
    %87 = vector.shape_cast %86 : vector<32x128xbf16> to vector<1x32x128xbf16>
    %88 = vector.broadcast %5 : vector<1x32x1xbf16> to vector<1x32x128xbf16>
    %89 = arith.mulf %87, %88 : vector<1x32x128xbf16>
    %90 = vector.shape_cast %89 : vector<1x32x128xbf16> to vector<32x128xbf16>
    %c1_67 = arith.constant 1 : index
    %c0_68 = arith.constant 0 : index
    %c0_69 = arith.constant 0 : index
    %c0_70 = arith.constant 0 : index
    %91 = vector.load %arg4[%c1_67, %c0_68, %c0_69, %c0_70] : memref<2x3x128x128xbf16, #tpu.memory_space<vmem>>, vector<1x1x128x128xbf16>
    %92 = vector.shape_cast %91 : vector<1x1x128x128xbf16> to vector<128x128xbf16>
    %cst_71 = arith.constant dense<0.000000e+00> : vector<32x128xf32>
    %93 = tpu.matmul %90, %92, %cst_71 {dimension_numbers = #tpu.dot_dimension_numbers<[1], [0], [0], [1], [0, 0, 1, 1], [], []>} : vector<32x128xbf16>, vector<128x128xbf16>, vector<32x128xf32> -> vector<32x128xf32>
    %c4_i32_72 = arith.constant 4 : i32
    %94 = tpu.dynamic_rotate %93 by %c4_i32_72 dim 0 : vector<32x128xf32>, i32 -> vector<32x128xf32>
    %c1_73 = arith.constant 1 : index
    %c1_74 = arith.constant 1 : index
    %c0_75 = arith.constant 0 : index
    %c0_76 = arith.constant 0 : index
    %95 = vector.load %arg4[%c1_73, %c1_74, %c0_75, %c0_76] : memref<2x3x128x128xbf16, #tpu.memory_space<vmem>>, vector<1x1x128x128xbf16>
    %96 = vector.shape_cast %95 : vector<1x1x128x128xbf16> to vector<128x128xbf16>
    %cst_77 = arith.constant dense<0.000000e+00> : vector<32x128xf32>
    %97 = tpu.matmul %90, %96, %cst_77 {dimension_numbers = #tpu.dot_dimension_numbers<[1], [0], [0], [1], [0, 0, 1, 1], [], []>} : vector<32x128xbf16>, vector<128x128xbf16>, vector<32x128xf32> -> vector<32x128xf32>
    %c2_i32_78 = arith.constant 2 : i32
    %98 = tpu.dynamic_rotate %97 by %c2_i32_78 dim 0 : vector<32x128xf32>, i32 -> vector<32x128xf32>
    %99 = arith.addf %94, %98 : vector<32x128xf32>
    %c1_79 = arith.constant 1 : index
    %c2_80 = arith.constant 2 : index
    %c0_81 = arith.constant 0 : index
    %c0_82 = arith.constant 0 : index
    %100 = vector.load %arg4[%c1_79, %c2_80, %c0_81, %c0_82] : memref<2x3x128x128xbf16, #tpu.memory_space<vmem>>, vector<1x1x128x128xbf16>
    %101 = vector.shape_cast %100 : vector<1x1x128x128xbf16> to vector<128x128xbf16>
    %cst_83 = arith.constant dense<0.000000e+00> : vector<32x128xf32>
    %102 = tpu.matmul %90, %101, %cst_83 {dimension_numbers = #tpu.dot_dimension_numbers<[1], [0], [0], [1], [0, 0, 1, 1], [], []>} : vector<32x128xbf16>, vector<128x128xbf16>, vector<32x128xf32> -> vector<32x128xf32>
    %103 = arith.addf %99, %102 : vector<32x128xf32>
    %104 = arith.truncf %103 : vector<32x128xf32> to vector<32x128xbf16>
    %c1_84 = arith.constant 1 : index
    %c0_85 = arith.constant 0 : index
    %c0_86 = arith.constant 0 : index
    %105 = vector.load %arg5[%c1_84, %c0_85, %c0_86] : memref<2x1x128xbf16, #tpu.memory_space<vmem>>, vector<1x1x128xbf16>
    %106 = vector.shape_cast %105 : vector<1x1x128xbf16> to vector<1x128xbf16>
    %107 = vector.broadcast %106 : vector<1x128xbf16> to vector<32x128xbf16>
    %108 = arith.addf %104, %107 : vector<32x128xbf16>
    %cst_87 = arith.constant 0.000000e+00 : bf16
    %109 = vector.broadcast %cst_87 : bf16 to vector<32x128xbf16>
    %110 = arith.maximumf %108, %109 : vector<32x128xbf16>
    %c1_88 = arith.constant 1 : index
    %c0_89 = arith.constant 0 : index
    %c0_90 = arith.constant 0 : index
    %111 = vector.load %arg6[%c1_88, %c0_89, %c0_90] : memref<2x128x128xbf16, #tpu.memory_space<vmem>>, vector<1x128x128xbf16>
    %112 = vector.shape_cast %111 : vector<1x128x128xbf16> to vector<128x128xbf16>
    %cst_91 = arith.constant dense<0.000000e+00> : vector<32x128xf32>
    %113 = tpu.matmul %66, %112, %cst_91 {dimension_numbers = #tpu.dot_dimension_numbers<[1], [0], [0], [1], [0, 0, 1, 1], [], []>} : vector<32x128xbf16>, vector<128x128xbf16>, vector<32x128xf32> -> vector<32x128xf32>
    %114 = arith.truncf %113 : vector<32x128xf32> to vector<32x128xbf16>
    %c1_92 = arith.constant 1 : index
    %c0_93 = arith.constant 0 : index
    %c0_94 = arith.constant 0 : index
    %115 = vector.load %arg7[%c1_92, %c0_93, %c0_94] : memref<2x1x128xbf16, #tpu.memory_space<vmem>>, vector<1x1x128xbf16>
    %116 = vector.shape_cast %115 : vector<1x1x128xbf16> to vector<1x128xbf16>
    %117 = vector.broadcast %116 : vector<1x128xbf16> to vector<32x128xbf16>
    %118 = arith.addf %114, %117 : vector<32x128xbf16>
    %119 = arith.addf %110, %118 : vector<32x128xbf16>
    %cst_95 = arith.constant 0.000000e+00 : bf16
    %120 = vector.broadcast %cst_95 : bf16 to vector<32x128xbf16>
    %121 = arith.maximumf %119, %120 : vector<32x128xbf16>
    %122 = vector.shape_cast %121 : vector<32x128xbf16> to vector<1x32x128xbf16>
    %123 = vector.broadcast %5 : vector<1x32x1xbf16> to vector<1x32x128xbf16>
    %124 = arith.mulf %122, %123 : vector<1x32x128xbf16>
    %125 = vector.shape_cast %124 : vector<1x32x128xbf16> to vector<32x128xbf16>
    %126 = vector.shape_cast %125 : vector<32x128xbf16> to vector<1x32x128xbf16>
    %127 = vector.extract_strided_slice %126 {offsets = [0, 0, 0], sizes = [1, 16, 128], strides = [1, 1, 1]} : vector<1x32x128xbf16> to vector<1x16x128xbf16>
    %c0_96 = arith.constant 0 : index
    %c0_97 = arith.constant 0 : index
    %c0_98 = arith.constant 0 : index
    %128 = vector.load %arg8[%c0_96, %c0_97, %c0_98] : memref<1x16x128xbf16, #tpu.memory_space<vmem>>, vector<1x16x128xbf16>
    tpu.vector_store %arg8[%c0_96, %c0_97, %c0_98], %127 {strides = array<i32>} : memref<1x16x128xbf16, #tpu.memory_space<vmem>>, vector<1x16x128xbf16>,
    return
  }
  func.func @transform_0(%arg0: i32) -> (i32, i32, i32) {
    %c0_i32 = arith.constant 0 : i32
    %c0_i32_0 = arith.constant 0 : i32
    %c0_i32_1 = arith.constant 0 : i32
    return %arg0, %c0_i32, %c0_i32_0 : i32, i32, i32
  }
  func.func @transform_1(%arg0: i32) -> (i32, i32, i32, i32) {
    %c0_i32 = arith.constant 0 : i32
    %c0_i32_0 = arith.constant 0 : i32
    %c0_i32_1 = arith.constant 0 : i32
    %c0_i32_2 = arith.constant 0 : i32
    %c0_i32_3 = arith.constant 0 : i32
    return %c0_i32, %c0_i32_0, %c0_i32_1, %c0_i32_2 : i32, i32, i32, i32
  }
  func.func @transform_2(%arg0: i32) -> (i32, i32, i32) {
    %c0_i32 = arith.constant 0 : i32
    %c0_i32_0 = arith.constant 0 : i32
    %c0_i32_1 = arith.constant 0 : i32
    %c0_i32_2 = arith.constant 0 : i32
    return %c0_i32, %c0_i32_0, %c0_i32_1 : i32, i32, i32
  }
  func.func @transform_3(%arg0: i32) -> (i32, i32, i32, i32) {
    %c0_i32 = arith.constant 0 : i32
    %c0_i32_0 = arith.constant 0 : i32
    %c0_i32_1 = arith.constant 0 : i32
    %c0_i32_2 = arith.constant 0 : i32
    %c0_i32_3 = arith.constant 0 : i32
    return %c0_i32, %c0_i32_0, %c0_i32_1, %c0_i32_2 : i32, i32, i32, i32
  }
  func.func @transform_4(%arg0: i32) -> (i32, i32, i32) {
    %c0_i32 = arith.constant 0 : i32
    %c0_i32_0 = arith.constant 0 : i32
    %c0_i32_1 = arith.constant 0 : i32
    %c0_i32_2 = arith.constant 0 : i32
    return %c0_i32, %c0_i32_0, %c0_i32_1 : i32, i32, i32
  }
  func.func @transform_5(%arg0: i32) -> (i32, i32, i32) {
    %c0_i32 = arith.constant 0 : i32
    %c0_i32_0 = arith.constant 0 : i32
    %c0_i32_1 = arith.constant 0 : i32
    %c0_i32_2 = arith.constant 0 : i32
    return %c0_i32, %c0_i32_0, %c0_i32_1 : i32, i32, i32
  }
  func.func @transform_6(%arg0: i32) -> (i32, i32, i32) {
    %c0_i32 = arith.constant 0 : i32
    %c0_i32_0 = arith.constant 0 : i32
    %c0_i32_1 = arith.constant 0 : i32
    %c0_i32_2 = arith.constant 0 : i32
    return %c0_i32, %c0_i32_0, %c0_i32_1 : i32, i32, i32
  }
  func.func @transform_7(%arg0: i32) -> (i32, i32, i32) {
    %c0_i32 = arith.constant 0 : i32
    %c0_i32_0 = arith.constant 0 : i32
    %c0_i32_1 = arith.constant 0 : i32
    return %arg0, %c0_i32, %c0_i32_0 : i32, i32, i32
  }
}

module attributes {stable_mosaic.version = 11 : i64} {
  func.func @tcn_kernel(%arg0: i32, %arg1: memref<1x32x128xbf16, #tpu.memory_space<vmem>>, %arg2: memref<2x3x128x128xbf16, #tpu.memory_space<vmem>>, %arg3: memref<2x1x128xbf16, #tpu.memory_space<vmem>>, %arg4: memref<2x3x128x128xbf16, #tpu.memory_space<vmem>>, %arg5: memref<2x1x128xbf16, #tpu.memory_space<vmem>>, %arg6: memref<2x128x128xbf16, #tpu.memory_space<vmem>>, %arg7: memref<2x1x128xbf16, #tpu.memory_space<vmem>>, %arg8: memref<1x16x128xbf16, #tpu.memory_space<vmem>>) attributes {dimension_semantics = [#tpu.dimension_semantics<parallel>], iteration_bounds = array<i64: 2>, scalar_prefetch = 0 : i64, scratch_operands = 0 : i64, tpu.core_type = #tpu.core_type<tc>, window_params = [{transform_indices = @transform_0, window_bounds = array<i64: 1, 32, 128>}, {pipeline_mode = #tpu.pipeline_mode<synchronous>, transform_indices = @transform_1, window_bounds = array<i64: 2, 3, 128, 128>}, {pipeline_mode = #tpu.pipeline_mode<synchronous>, transform_indices = @transform_2, window_bounds = array<i64: 2, 1, 128>}, {pipeline_mode = #tpu.pipeline_mode<synchronous>, transform_indices = @transform_3, window_bounds = array<i64: 2, 3, 128, 128>}, {pipeline_mode = #tpu.pipeline_mode<synchronous>, transform_indices = @transform_4, window_bounds = array<i64: 2, 1, 128>}, {pipeline_mode = #tpu.pipeline_mode<synchronous>, transform_indices = @transform_5, window_bounds = array<i64: 2, 128, 128>}, {pipeline_mode = #tpu.pipeline_mode<synchronous>, transform_indices = @transform_6, window_bounds = array<i64: 2, 1, 128>}, {transform_indices = @transform_7, window_bounds = array<i64: 1, 16, 128>}]} {
    %0 = tpu.iota {dimensions = array<i32: 1>} : vector<1x32x1xi32>
    %c16_i32 = arith.constant 16 : i32
    %1 = vector.broadcast %c16_i32 : i32 to vector<1x32x1xi32>
    %2 = arith.cmpi slt, %0, %1 : vector<1x32x1xi32>
    %3 = arith.extui %2 : vector<1x32x1xi1> to vector<1x32x1xi32>
    %4 = arith.sitofp %3 : vector<1x32x1xi32> to vector<1x32x1xf32>
    %5 = arith.truncf %4 : vector<1x32x1xf32> to vector<1x32x1xbf16>
    %c0 = arith.constant 0 : index
    %c0_0 = arith.constant 0 : index
    %c0_1 = arith.constant 0 : index
    %6 = vector.load %arg1[%c0, %c0_0, %c0_1] : memref<1x32x128xbf16, #tpu.memory_space<vmem>>, vector<1x32x128xbf16>
    %7 = vector.shape_cast %6 : vector<1x32x128xbf16> to vector<32x128xbf16>
    %c0_2 = arith.constant 0 : index
    %c0_3 = arith.constant 0 : index
    %c0_4 = arith.constant 0 : index
    %c0_5 = arith.constant 0 : index
    %8 = vector.load %arg2[%c0_2, %c0_3, %c0_4, %c0_5] : memref<2x3x128x128xbf16, #tpu.memory_space<vmem>>, vector<1x1x128x128xbf16>
    %9 = vector.shape_cast %8 : vector<1x1x128x128xbf16> to vector<128x128xbf16>
    %cst = arith.constant dense<0.000000e+00> : vector<32x128xf32>
    %10 = tpu.matmul %7, %9, %cst {dimension_numbers = #tpu.dot_dimension_numbers<[1], [0], [0], [1], [0, 0, 1, 1], [], []>} : vector<32x128xbf16>, vector<128x128xbf16>, vector<32x128xf32> -> vector<32x128xf32>
    %c2_i32 = arith.constant 2 : i32
    %11 = tpu.dynamic_rotate %10 by %c2_i32 dim 0 : vector<32x128xf32>, i32 -> vector<32x128xf32>
    %c0_6 = arith.constant 0 : index
    %c1 = arith.constant 1 : index
    %c0_7 = arith.constant 0 : index
    %c0_8 = arith.constant 0 : index
    %12 = vector.load %arg2[%c0_6, %c1, %c0_7, %c0_8] : memref<2x3x128x128xbf16, #tpu.memory_space<vmem>>, vector<1x1x128x128xbf16>
    %13 = vector.shape_cast %12 : vector<1x1x128x128xbf16> to vector<128x128xbf16>
    %cst_9 = arith.constant dense<0.000000e+00> : vector<32x128xf32>
    %14 = tpu.matmul %7, %13, %cst_9 {dimension_numbers = #tpu.dot_dimension_numbers<[1], [0], [0], [1], [0, 0, 1, 1], [], []>} : vector<32x128xbf16>, vector<128x128xbf16>, vector<32x128xf32> -> vector<32x128xf32>
    %c1_i32 = arith.constant 1 : i32
    %15 = tpu.dynamic_rotate %14 by %c1_i32 dim 0 : vector<32x128xf32>, i32 -> vector<32x128xf32>
    %16 = arith.addf %11, %15 : vector<32x128xf32>
    %c0_10 = arith.constant 0 : index
    %c2 = arith.constant 2 : index
    %c0_11 = arith.constant 0 : index
    %c0_12 = arith.constant 0 : index
    %17 = vector.load %arg2[%c0_10, %c2, %c0_11, %c0_12] : memref<2x3x128x128xbf16, #tpu.memory_space<vmem>>, vector<1x1x128x128xbf16>
    %18 = vector.shape_cast %17 : vector<1x1x128x128xbf16> to vector<128x128xbf16>
    %cst_13 = arith.constant dense<0.000000e+00> : vector<32x128xf32>
    %19 = tpu.matmul %7, %18, %cst_13 {dimension_numbers = #tpu.dot_dimension_numbers<[1], [0], [0], [1], [0, 0, 1, 1], [], []>} : vector<32x128xbf16>, vector<128x128xbf16>, vector<32x128xf32> -> vector<32x128xf32>
    %20 = arith.addf %16, %19 : vector<32x128xf32>
    %21 = arith.truncf %20 : vector<32x128xf32> to vector<32x128xbf16>
    %c0_14 = arith.constant 0 : index
    %c0_15 = arith.constant 0 : index
    %c0_16 = arith.constant 0 : index
    %22 = vector.load %arg3[%c0_14, %c0_15, %c0_16] : memref<2x1x128xbf16, #tpu.memory_space<vmem>>, vector<1x1x128xbf16>
    %23 = vector.shape_cast %22 : vector<1x1x128xbf16> to vector<1x128xbf16>
    %24 = vector.broadcast %23 : vector<1x128xbf16> to vector<32x128xbf16>
    %25 = arith.addf %21, %24 : vector<32x128xbf16>
    %cst_17 = arith.constant 0.000000e+00 : bf16
    %26 = vector.broadcast %cst_17 : bf16 to vector<32x128xbf16>
    %27 = arith.maximumf %25, %26 : vector<32x128xbf16>
    %28 = vector.shape_cast %27 : vector<32x128xbf16> to vector<1x32x128xbf16>
    %29 = vector.broadcast %5 : vector<1x32x1xbf16> to vector<1x32x128xbf16>
    %30 = arith.mulf %28, %29 : vector<1x32x128xbf16>
    %31 = vector.shape_cast %30 : vector<1x32x128xbf16> to vector<32x128xbf16>
    %c0_18 = arith.constant 0 : index
    %c0_19 = arith.constant 0 : index
    %c0_20 = arith.constant 0 : index
    %c0_21 = arith.constant 0 : index
    %32 = vector.load %arg4[%c0_18, %c0_19, %c0_20, %c0_21] : memref<2x3x128x128xbf16, #tpu.memory_space<vmem>>, vector<1x1x128x128xbf16>
    %33 = vector.shape_cast %32 : vector<1x1x128x128xbf16> to vector<128x128xbf16>
    %cst_22 = arith.constant dense<0.000000e+00> : vector<32x128xf32>
    %34 = tpu.matmul %31, %33, %cst_22 {dimension_numbers = #tpu.dot_dimension_numbers<[1], [0], [0], [1], [0, 0, 1, 1], [], []>} : vector<32x128xbf16>, vector<128x128xbf16>, vector<32x128xf32> -> vector<32x128xf32>
    %c2_i32_23 = arith.constant 2 : i32
    %35 = tpu.dynamic_rotate %34 by %c2_i32_23 dim 0 : vector<32x128xf32>, i32 -> vector<32x128xf32>
    %c0_24 = arith.constant 0 : index
    %c1_25 = arith.constant 1 : index
    %c0_26 = arith.constant 0 : index
    %c0_27 = arith.constant 0 : index
    %36 = vector.load %arg4[%c0_24, %c1_25, %c0_26, %c0_27] : memref<2x3x128x128xbf16, #tpu.memory_space<vmem>>, vector<1x1x128x128xbf16>
    %37 = vector.shape_cast %36 : vector<1x1x128x128xbf16> to vector<128x128xbf16>
    %cst_28 = arith.constant dense<0.000000e+00> : vector<32x128xf32>
    %38 = tpu.matmul %31, %37, %cst_28 {dimension_numbers = #tpu.dot_dimension_numbers<[1], [0], [0], [1], [0, 0, 1, 1], [], []>} : vector<32x128xbf16>, vector<128x128xbf16>, vector<32x128xf32> -> vector<32x128xf32>
    %c1_i32_29 = arith.constant 1 : i32
    %39 = tpu.dynamic_rotate %38 by %c1_i32_29 dim 0 : vector<32x128xf32>, i32 -> vector<32x128xf32>
    %40 = arith.addf %35, %39 : vector<32x128xf32>
    %c0_30 = arith.constant 0 : index
    %c2_31 = arith.constant 2 : index
    %c0_32 = arith.constant 0 : index
    %c0_33 = arith.constant 0 : index
    %41 = vector.load %arg4[%c0_30, %c2_31, %c0_32, %c0_33] : memref<2x3x128x128xbf16, #tpu.memory_space<vmem>>, vector<1x1x128x128xbf16>
    %42 = vector.shape_cast %41 : vector<1x1x128x128xbf16> to vector<128x128xbf16>
    %cst_34 = arith.constant dense<0.000000e+00> : vector<32x128xf32>
    %43 = tpu.matmul %31, %42, %cst_34 {dimension_numbers = #tpu.dot_dimension_numbers<[1], [0], [0], [1], [0, 0, 1, 1], [], []>} : vector<32x128xbf16>, vector<128x128xbf16>, vector<32x128xf32> -> vector<32x128xf32>
    %44 = arith.addf %40, %43 : vector<32x128xf32>
    %45 = arith.truncf %44 : vector<32x128xf32> to vector<32x128xbf16>
    %c0_35 = arith.constant 0 : index
    %c0_36 = arith.constant 0 : index
    %c0_37 = arith.constant 0 : index
    %46 = vector.load %arg5[%c0_35, %c0_36, %c0_37] : memref<2x1x128xbf16, #tpu.memory_space<vmem>>, vector<1x1x128xbf16>
    %47 = vector.shape_cast %46 : vector<1x1x128xbf16> to vector<1x128xbf16>
    %48 = vector.broadcast %47 : vector<1x128xbf16> to vector<32x128xbf16>
    %49 = arith.addf %45, %48 : vector<32x128xbf16>
    %cst_38 = arith.constant 0.000000e+00 : bf16
    %50 = vector.broadcast %cst_38 : bf16 to vector<32x128xbf16>
    %51 = arith.maximumf %49, %50 : vector<32x128xbf16>
    %c0_39 = arith.constant 0 : index
    %c0_40 = arith.constant 0 : index
    %c0_41 = arith.constant 0 : index
    %52 = vector.load %arg6[%c0_39, %c0_40, %c0_41] : memref<2x128x128xbf16, #tpu.memory_space<vmem>>, vector<1x128x128xbf16>
    %53 = vector.shape_cast %52 : vector<1x128x128xbf16> to vector<128x128xbf16>
    %cst_42 = arith.constant dense<0.000000e+00> : vector<32x128xf32>
    %54 = tpu.matmul %7, %53, %cst_42 {dimension_numbers = #tpu.dot_dimension_numbers<[1], [0], [0], [1], [0, 0, 1, 1], [], []>} : vector<32x128xbf16>, vector<128x128xbf16>, vector<32x128xf32> -> vector<32x128xf32>
    %55 = arith.truncf %54 : vector<32x128xf32> to vector<32x128xbf16>
    %c0_43 = arith.constant 0 : index
    %c0_44 = arith.constant 0 : index
    %c0_45 = arith.constant 0 : index
    %56 = vector.load %arg7[%c0_43, %c0_44, %c0_45] : memref<2x1x128xbf16, #tpu.memory_space<vmem>>, vector<1x1x128xbf16>
    %57 = vector.shape_cast %56 : vector<1x1x128xbf16> to vector<1x128xbf16>
    %58 = vector.broadcast %57 : vector<1x128xbf16> to vector<32x128xbf16>
    %59 = arith.addf %55, %58 : vector<32x128xbf16>
    %60 = arith.addf %51, %59 : vector<32x128xbf16>
    %cst_46 = arith.constant 0.000000e+00 : bf16
    %61 = vector.broadcast %cst_46 : bf16 to vector<32x128xbf16>
    %62 = arith.maximumf %60, %61 : vector<32x128xbf16>
    %63 = vector.shape_cast %62 : vector<32x128xbf16> to vector<1x32x128xbf16>
    %64 = vector.broadcast %5 : vector<1x32x1xbf16> to vector<1x32x128xbf16>
    %65 = arith.mulf %63, %64 : vector<1x32x128xbf16>
    %66 = vector.shape_cast %65 : vector<1x32x128xbf16> to vector<32x128xbf16>
    %c1_47 = arith.constant 1 : index
    %c0_48 = arith.constant 0 : index
    %c0_49 = arith.constant 0 : index
    %c0_50 = arith.constant 0 : index
    %67 = vector.load %arg2[%c1_47, %c0_48, %c0_49, %c0_50] : memref<2x3x128x128xbf16, #tpu.memory_space<vmem>>, vector<1x1x128x128xbf16>
    %68 = vector.shape_cast %67 : vector<1x1x128x128xbf16> to vector<128x128xbf16>
    %cst_51 = arith.constant dense<0.000000e+00> : vector<32x128xf32>
    %69 = tpu.matmul %66, %68, %cst_51 {dimension_numbers = #tpu.dot_dimension_numbers<[1], [0], [0], [1], [0, 0, 1, 1], [], []>} : vector<32x128xbf16>, vector<128x128xbf16>, vector<32x128xf32> -> vector<32x128xf32>
    %c4_i32 = arith.constant 4 : i32
    %70 = tpu.dynamic_rotate %69 by %c4_i32 dim 0 : vector<32x128xf32>, i32 -> vector<32x128xf32>
    %c1_52 = arith.constant 1 : index
    %c1_53 = arith.constant 1 : index
    %c0_54 = arith.constant 0 : index
    %c0_55 = arith.constant 0 : index
    %71 = vector.load %arg2[%c1_52, %c1_53, %c0_54, %c0_55] : memref<2x3x128x128xbf16, #tpu.memory_space<vmem>>, vector<1x1x128x128xbf16>
    %72 = vector.shape_cast %71 : vector<1x1x128x128xbf16> to vector<128x128xbf16>
    %cst_56 = arith.constant dense<0.000000e+00> : vector<32x128xf32>
    %73 = tpu.matmul %66, %72, %cst_56 {dimension_numbers = #tpu.dot_dimension_numbers<[1], [0], [0], [1], [0, 0, 1, 1], [], []>} : vector<32x128xbf16>, vector<128x128xbf16>, vector<32x128xf32> -> vector<32x128xf32>
    %c2_i32_57 = arith.constant 2 : i32
    %74 = tpu.dynamic_rotate %73 by %c2_i32_57 dim 0 : vector<32x128xf32>, i32 -> vector<32x128xf32>
    %75 = arith.addf %70, %74 : vector<32x128xf32>
    %c1_58 = arith.constant 1 : index
    %c2_59 = arith.constant 2 : index
    %c0_60 = arith.constant 0 : index
    %c0_61 = arith.constant 0 : index
    %76 = vector.load %arg2[%c1_58, %c2_59, %c0_60, %c0_61] : memref<2x3x128x128xbf16, #tpu.memory_space<vmem>>, vector<1x1x128x128xbf16>
    %77 = vector.shape_cast %76 : vector<1x1x128x128xbf16> to vector<128x128xbf16>
    %cst_62 = arith.constant dense<0.000000e+00> : vector<32x128xf32>
    %78 = tpu.matmul %66, %77, %cst_62 {dimension_numbers = #tpu.dot_dimension_numbers<[1], [0], [0], [1], [0, 0, 1, 1], [], []>} : vector<32x128xbf16>, vector<128x128xbf16>, vector<32x128xf32> -> vector<32x128xf32>
    %79 = arith.addf %75, %78 : vector<32x128xf32>
    %80 = arith.truncf %79 : vector<32x128xf32> to vector<32x128xbf16>
    %c1_63 = arith.constant 1 : index
    %c0_64 = arith.constant 0 : index
    %c0_65 = arith.constant 0 : index
    %81 = vector.load %arg3[%c1_63, %c0_64, %c0_65] : memref<2x1x128xbf16, #tpu.memory_space<vmem>>, vector<1x1x128xbf16>
    %82 = vector.shape_cast %81 : vector<1x1x128xbf16> to vector<1x128xbf16>
    %83 = vector.broadcast %82 : vector<1x128xbf16> to vector<32x128xbf16>
    %84 = arith.addf %80, %83 : vector<32x128xbf16>
    %cst_66 = arith.constant 0.000000e+00 : bf16
    %85 = vector.broadcast %cst_66 : bf16 to vector<32x128xbf16>
    %86 = arith.maximumf %84, %85 : vector<32x128xbf16>
    %87 = vector.shape_cast %86 : vector<32x128xbf16> to vector<1x32x128xbf16>
    %88 = vector.broadcast %5 : vector<1x32x1xbf16> to vector<1x32x128xbf16>
    %89 = arith.mulf %87, %88 : vector<1x32x128xbf16>
    %90 = vector.shape_cast %89 : vector<1x32x128xbf16> to vector<32x128xbf16>
    %c1_67 = arith.constant 1 : index
    %c0_68 = arith.constant 0 : index
    %c0_69 = arith.constant 0 : index
    %c0_70 = arith.constant 0 : index
    %91 = vector.load %arg4[%c1_67, %c0_68, %c0_69, %c0_70] : memref<2x3x128x128xbf16, #tpu.memory_space<vmem>>, vector<1x1x128x128xbf16>
    %92 = vector.shape_cast %91 : vector<1x1x128x128xbf16> to vector<128x128xbf16>
    %cst_71 = arith.constant dense<0.000000e+00> : vector<32x128xf32>
    %93 = tpu.matmul %90, %92, %cst_71 {dimension_numbers = #tpu.dot_dimension_numbers<[1], [0], [0], [1], [0, 0, 1, 1], [], []>} : vector<32x128xbf16>, vector<128x128xbf16>, vector<32x128xf32> -> vector<32x128xf32>
    %c4_i32_72 = arith.constant 4 : i32
    %94 = tpu.dynamic_rotate %93 by %c4_i32_72 dim 0 : vector<32x128xf32>, i32 -> vector<32x128xf32>
    %c1_73 = arith.constant 1 : index
    %c1_74 = arith.constant 1 : index
    %c0_75 = arith.constant 0 : index
    %c0_76 = arith.constant 0 : index
    %95 = vector.load %arg4[%c1_73, %c1_74, %c0_75, %c0_76] : memref<2x3x128x128xbf16, #tpu.memory_space<vmem>>, vector<1x1x128x128xbf16>
    %96 = vector.shape_cast %95 : vector<1x1x128x128xbf16> to vector<128x128xbf16>
    %cst_77 = arith.constant dense<0.000000e+00> : vector<32x128xf32>
    %97 = tpu.matmul %90, %96, %cst_77 {dimension_numbers = #tpu.dot_dimension_numbers<[1], [0], [0], [1], [0, 0, 1, 1], [], []>} : vector<32x128xbf16>, vector<128x128xbf16>, vector<32x128xf32> -> vector<32x128xf32>
    %c2_i32_78 = arith.constant 2 : i32
    %98 = tpu.dynamic_rotate %97 by %c2_i32_78 dim 0 : vector<32x128xf32>, i32 -> vector<32x128xf32>
    %99 = arith.addf %94, %98 : vector<32x128xf32>
    %c1_79 = arith.constant 1 : index
    %c2_80 = arith.constant 2 : index
    %c0_81 = arith.constant 0 : index
    %c0_82 = arith.constant 0 : index
    %100 = vector.load %arg4[%c1_79, %c2_80, %c0_81, %c0_82] : memref<2x3x128x128xbf16, #tpu.memory_space<vmem>>, vector<1x1x128x128xbf16>
    %101 = vector.shape_cast %100 : vector<1x1x128x128xbf16> to vector<128x128xbf16>
    %cst_83 = arith.constant dense<0.000000e+00> : vector<32x128xf32>
    %102 = tpu.matmul %90, %101, %cst_83 {dimension_numbers = #tpu.dot_dimension_numbers<[1], [0], [0], [1], [0, 0, 1, 1], [], []>} : vector<32x128xbf16>, vector<128x128xbf16>, vector<32x128xf32> -> vector<32x128xf32>
    %103 = arith.addf %99, %102 : vector<32x128xf32>
    %104 = arith.truncf %103 : vector<32x128xf32> to vector<32x128xbf16>
    %c1_84 = arith.constant 1 : index
    %c0_85 = arith.constant 0 : index
    %c0_86 = arith.constant 0 : index
    %105 = vector.load %arg5[%c1_84, %c0_85, %c0_86] : memref<2x1x128xbf16, #tpu.memory_space<vmem>>, vector<1x1x128xbf16>
    %106 = vector.shape_cast %105 : vector<1x1x128xbf16> to vector<1x128xbf16>
    %107 = vector.broadcast %106 : vector<1x128xbf16> to vector<32x128xbf16>
    %108 = arith.addf %104, %107 : vector<32x128xbf16>
    %cst_87 = arith.constant 0.000000e+00 : bf16
    %109 = vector.broadcast %cst_87 : bf16 to vector<32x128xbf16>
    %110 = arith.maximumf %108, %109 : vector<32x128xbf16>
    %c1_88 = arith.constant 1 : index
    %c0_89 = arith.constant 0 : index
    %c0_90 = arith.constant 0 : index
    %111 = vector.load %arg6[%c1_88, %c0_89, %c0_90] : memref<2x128x128xbf16, #tpu.memory_space<vmem>>, vector<1x128x128xbf16>
    %112 = vector.shape_cast %111 : vector<1x128x128xbf16> to vector<128x128xbf16>
    %cst_91 = arith.constant dense<0.000000e+00> : vector<32x128xf32>
    %113 = tpu.matmul %66, %112, %cst_91 {dimension_numbers = #tpu.dot_dimension_numbers<[1], [0], [0], [1], [0, 0, 1, 1], [], []>} : vector<32x128xbf16>, vector<128x128xbf16>, vector<32x128xf32> -> vector<32x128xf32>
    %114 = arith.truncf %113 : vector<32x128xf32> to vector<32x128xbf16>
    %c1_92 = arith.constant 1 : index
    %c0_93 = arith.constant 0 : index
    %c0_94 = arith.constant 0 : index
    %115 = vector.load %arg7[%c1_92, %c0_93, %c0_94] : memref<2x1x128xbf16, #tpu.memory_space<vmem>>, vector<1x1x128xbf16>
    %116 = vector.shape_cast %115 : vector<1x1x128xbf16> to vector<1x128xbf16>
    %117 = vector.broadcast %116 : vector<1x128xbf16> to vector<32x128xbf16>
    %118 = arith.addf %114, %117 : vector<32x128xbf16>
    %119 = arith.addf %110, %118 : vector<32x128xbf16>
    %cst_95 = arith.constant 0.000000e+00 : bf16
    %120 = vector.broadcast %cst_95 : bf16 to vector<32x128xbf16>
    %121 = arith.maximumf %119, %120 : vector<32x128xbf16>
    %122 = vector.shape_cast %121 : vector<32x128xbf16> to vector<1x32x128xbf16>
    %123 = vector.broadcast %5 : vector<1x32x1xbf16> to vector<1x32x128xbf16>
    %124 = arith.mulf %122, %123 : vector<1x32x128xbf16>
    %125 = vector.shape_cast %124 : vector<1x32x128xbf16> to vector<32x128xbf16>
    %126 = vector.shape_cast %125 : vector<32x128xbf16> to vector<1x32x128xbf16>
    %127 = vector.extract_strided_slice %126 {offsets = [0, 0, 0], sizes = [1, 16, 128], strides = [1, 1, 1]} : vector<1x32x128xbf16> to vector<1x16x128xbf16>
    %c0_96 = arith.constant 0 : index
    %c0_97 = arith.constant 0 : index
    %c0_98 = arith.constant 0 : index
    %128 = vector.load %arg8[%c0_96, %c0_97, %c0_98] : memref<1x16x128xbf16, #tpu.memory_space<vmem>>, vector<1x16x128xbf16>
    tpu.vector_store %arg8[%c0_96, %c0_97, %c0_98], %127 {strides = array<i32>} : memref<1x16x128xbf16, #tpu.memory_space<vmem>>, vector<1x16x128xbf16>,
    return
  }
  func.func @transform_0(%arg0: i32) -> (i32, i32, i32) {
    %c0_i32 = arith.constant 0 : i32
    %c0_i32_0 = arith.constant 0 : i32
    %c0_i32_1 = arith.constant 0 : i32
    return %arg0, %c0_i32, %c0_i32_0 : i32, i32, i32
  }
  func.func @transform_1(%arg0: i32) -> (i32, i32, i32, i32) {
    %c0_i32 = arith.constant 0 : i32
    %c0_i32_0 = arith.constant 0 : i32
    %c0_i32_1 = arith.constant 0 : i32
    %c0_i32_2 = arith.constant 0 : i32
    %c0_i32_3 = arith.constant 0 : i32
    return %c0_i32, %c0_i32_0, %c0_i32_1, %c0_i32_2 : i32, i32, i32, i32
  }
  func.func @transform_2(%arg0: i32) -> (i32, i32, i32) {
    %c0_i32 = arith.constant 0 : i32
    %c0_i32_0 = arith.constant 0 : i32
    %c0_i32_1 = arith.constant 0 : i32
    %c0_i32_2 = arith.constant 0 : i32
    return %c0_i32, %c0_i32_0, %c0_i32_1 : i32, i32, i32
  }
  func.func @transform_3(%arg0: i32) -> (i32, i32, i32, i32) {
    %c0_i32 = arith.constant 0 : i32
    %c0_i32_0 = arith.constant 0 : i32
    %c0_i32_1 = arith.constant 0 : i32
    %c0_i32_2 = arith.constant 0 : i32
    %c0_i32_3 = arith.constant 0 : i32
    return %c0_i32, %c0_i32_0, %c0_i32_1, %c0_i32_2 : i32, i32, i32, i32
  }
  func.func @transform_4(%arg0: i32) -> (i32, i32, i32) {
    %c0_i32 = arith.constant 0 : i32
    %c0_i32_0 = arith.constant 0 : i32
    %c0_i32_1 = arith.constant 0 : i32
    %c0_i32_2 = arith.constant 0 : i32
    return %c0_i32, %c0_i32_0, %c0_i32_1 : i32, i32, i32
  }
  func.func @transform_5(%arg0: i32) -> (i32, i32, i32) {
    %c0_i32 = arith.constant 0 : i32
    %c0_i32_0 = arith.constant 0 : i32
    %c0_i32_1 = arith.constant 0 : i32
    %c0_i32_2 = arith.constant 0 : i32
    return %c0_i32, %c0_i32_0, %c0_i32_1 : i32, i32, i32
  }
  func.func @transform_6(%arg0: i32) -> (i32, i32, i32) {
    %c0_i32 = arith.constant 0 : i32
    %c0_i32_0 = arith.constant 0 : i32
    %c0_i32_1 = arith.constant 0 : i32
    %c0_i32_2 = arith.constant 0 : i32
    return %c0_i32, %c0_i32_0, %c0_i32_1 : i32, i32, i32
  }
  func.func @transform_7(%arg0: i32) -> (i32, i32, i32) {
    %c0_i32 = arith.constant 0 : i32
    %c0_i32_0 = arith.constant 0 : i32
    %c0_i32_1 = arith.constant 0 : i32
    return %arg0, %c0_i32, %c0_i32_0 : i32, i32, i32
  }
}

</mosaic_0001>

<llo_original>
// kernel: tpu_custom_call.1
$region0: #{tpu_custom_call.1}
  #allocation0 [shape = 'u32[]', space=smem, size = 0x4, offset = 0x4, fixed_abs, tag = 'smem constant byte address 0x4 - core index']
  #allocation1 [shape = 'u32[144,128]{1,0:T(1,128)}', space=vmem, size = 0x12000, scoped, tag = 'internal scratch']
  %s0 = inlined_call_operand.hbm [shape: bf16[2,32,128], index: 0, kind: input, shape index: {}]
  %s1 = inlined_call_operand.hbm [shape: bf16[2,3,128,128], index: 1, kind: input, shape index: {}]
  %s2 = inlined_call_operand.hbm [shape: bf16[2,1,128], index: 2, kind: input, shape index: {}]
  %s3 = inlined_call_operand.hbm [shape: bf16[2,3,128,128], index: 3, kind: input, shape index: {}]
  %s4 = inlined_call_operand.hbm [shape: bf16[2,1,128], index: 4, kind: input, shape index: {}]
  %s5 = inlined_call_operand.hbm [shape: bf16[2,128,128], index: 5, kind: input, shape index: {}]
  %s6 = inlined_call_operand.hbm [shape: bf16[2,1,128], index: 6, kind: input, shape index: {}]
  %s7 = inlined_call_operand.hbm [shape: bf16[2,16,128], index: 7, kind: output, shape index: {}]
  %s8 = sld [smem:[#allocation0]]
  $region89: #{tpu_custom_call.1} parent=0
    _
  %s10 = ssub.s32 1, %s8
  %s11 = scalar_select 0, %s10, %s8
  $region1: #{tpu_custom_call.1} parent=0
    #allocation2 [shape = 'u8[16384]{0}', space=vmem, size = 0x4000, scoped, tag = 'input window, operand 0']
    #allocation3 [shape = 's32[2]{0}', space=sflag, size = 0x8, scoped, tag = 'scoped memory for tpu_custom_call.1']
    #allocation4 [shape = 's32[2]{0}', space=sflag, size = 0x8, scoped, tag = 'scoped memory for tpu_custom_call.1']
    #allocation5 [shape = 'u8[196608]{0}', space=vmem, size = 0x30000, scoped, tag = 'input window, operand 1, single buffered']
    #allocation6 [shape = 's32[1]{0}', space=sflag, size = 0x4, scoped, tag = 'scoped memory for tpu_custom_call.1']
    #allocation7 [shape = 'u8[1024]{0}', space=vmem, size = 0x400, scoped, tag = 'input window, operand 2, single buffered']
    #allocation8 [shape = 'u8[196608]{0}', space=vmem, size = 0x30000, scoped, tag = 'input window, operand 3, single buffered']
    #allocation9 [shape = 's32[1]{0}', space=sflag, size = 0x4, scoped, tag = 'scoped memory for tpu_custom_call.1']
    #allocation10 [shape = 'u8[1024]{0}', space=vmem, size = 0x400, scoped, tag = 'input window, operand 4, single buffered']
    #allocation11 [shape = 'u8[65536]{0}', space=vmem, size = 0x10000, scoped, tag = 'input window, operand 5, single buffered']
    #allocation12 [shape = 's32[1]{0}', space=sflag, size = 0x4, scoped, tag = 'scoped memory for tpu_custom_call.1']
    #allocation13 [shape = 'u8[1024]{0}', space=vmem, size = 0x400, scoped, tag = 'input window, operand 6, single buffered']
    #allocation14 [shape = 'u8[8192]{0}', space=vmem, size = 0x2000, scoped, tag = 'output window, operand 0']
    %12 = vsyncpa [#allocation3], 0
    %s13 = scalar_lea.sflag [#allocation3], 1
    %14 = vsyncpa %s13, 0
    %15 = vsyncpa [#allocation6], 0
    %16 = vsyncpa [#allocation9], 0
    %17 = vsyncpa [#allocation12], 0
    %18 = vsyncpa [#allocation4], 0
    %s19 = scalar_lea.sflag [#allocation4], 1
    %20 = vsyncpa %s19, 0
    loop: start=0, step=1, limit=4
    $region2: #{tpu_custom_call.1} parent=1 // loop_pre_header
      _
    $region3: #{tpu_custom_call.1} parent=1 // loop_header
      %s22 = sphi 0, %s26
      %p23 = scmp.ge.s32.totalorder %s22, 4
      %s32 = sphi 0, %s34
      %s35 = sphi 0, %s32
      %s36 = sphi 0, %s35
      %s52 = sphi 0, %s36
      %s56 = sphi 0, %s56
      %s58 = sphi 0, %s56
      %s59 = sphi 0, %s58
      %s73 = sphi 0, %s59
      %s77 = sphi 0, %s77
      %s79 = sphi 0, %s77
      %s80 = sphi 0, %s79
      %s94 = sphi 0, %s80
      %s98 = sphi 0, %s98
      %s100 = sphi 0, %s98
      %s101 = sphi 0, %s100
      %s115 = sphi 0, %s101
      %s119 = sphi 0, %s119
      %s121 = sphi 0, %s119
      %s122 = sphi 0, %s121
      %s136 = sphi 0, %s122
      %s140 = sphi 0, %s140
      %s142 = sphi 0, %s140
      %s143 = sphi 0, %s142
      %s157 = sphi 0, %s143
      %s161 = sphi 0, %s161
      %s163 = sphi 0, %s161
      %s164 = sphi 0, %s163
      %s178 = sphi 0, %s164
      %s184 = sphi 0, %s186
      %s187 = sphi 0, %s184
      %s188 = sphi 0, %s187
      %s204 = sphi 0, %s188
    $region4: #{tpu_custom_call.1} parent=1 // loop_header_branch
      %25 = sbr.rel (%p23) target = $region8
    $region5: #{tpu_custom_call.1} parent=1 // loop_body
      %s27 = ssub.s32 %s22, 1
      %s28 = ssub.s32 %s22, 2
      %s29 = sadd.s32 %s22, 1
      %s30 = ssub.s32 %s22, %s29
      %p31 = scmp.eq.s32.totalorder %s30, 0
      %s33 = sadd.s32 %s32, 1
      %s34 = scalar_select %p31, %s32, %s33
      %p37 = pneg %p31
      %p38 = scmp.eq.s32.totalorder %s22, 1
      %p39 = por %p37, %p38
      %p40 = scmp.ne.s32.totalorder %s32, %s35
      %p41 = scmp.eq.s32.totalorder %s22, 0
      %p42 = por %p40, %p41
      %p43 = scmp.ne.s32.totalorder %s32, %s35
      %p44 = scmp.eq.s32.totalorder %s27, 1
      %p45 = por %p43, %p44
      %p46 = scmp.ne.s32.totalorder %s35, %s36
      %p47 = scmp.eq.s32.totalorder %s27, 0
      %p48 = por %p46, %p47
      %p49 = scmp.ne.s32.totalorder %s35, %s36
      %p50 = scmp.eq.s32.totalorder %s28, 1
      %p51 = por %p49, %p50
      %p53 = scmp.ne.s32.totalorder %s36, %s52
      %p54 = scmp.eq.s32.totalorder %s28, 0
      %p55 = por %p53, %p54
      %s57 = sadd.s32 %s56, 1
      %p60 = scmp.eq.s32.totalorder %s22, 1
      %p61 = scmp.ne.s32.totalorder %s56, %s58
      %p62 = scmp.eq.s32.totalorder %s22, 0
      %p63 = por %p61, %p62
      %p64 = scmp.ne.s32.totalorder %s56, %s58
      %p65 = scmp.eq.s32.totalorder %s27, 1
      %p66 = por %p64, %p65
      %p67 = scmp.ne.s32.totalorder %s58, %s59
      %p68 = scmp.eq.s32.totalorder %s27, 0
      %p69 = por %p67, %p68
      %p70 = scmp.ne.s32.totalorder %s58, %s59
      %p71 = scmp.eq.s32.totalorder %s28, 1
      %p72 = por %p70, %p71
      %p74 = scmp.ne.s32.totalorder %s59, %s73
      %p75 = scmp.eq.s32.totalorder %s28, 0
      %p76 = por %p74, %p75
      %s78 = sadd.s32 %s77, 1
      %p81 = scmp.eq.s32.totalorder %s22, 1
      %p82 = scmp.ne.s32.totalorder %s77, %s79
      %p83 = scmp.eq.s32.totalorder %s22, 0
      %p84 = por %p82, %p83
      %p85 = scmp.ne.s32.totalorder %s77, %s79
      %p86 = scmp.eq.s32.totalorder %s27, 1
      %p87 = por %p85, %p86
      %p88 = scmp.ne.s32.totalorder %s79, %s80
      %p89 = scmp.eq.s32.totalorder %s27, 0
      %p90 = por %p88, %p89
      %p91 = scmp.ne.s32.totalorder %s79, %s80
      %p92 = scmp.eq.s32.totalorder %s28, 1
      %p93 = por %p91, %p92
      %p95 = scmp.ne.s32.totalorder %s80, %s94
      %p96 = scmp.eq.s32.totalorder %s28, 0
      %p97 = por %p95, %p96
      %s99 = sadd.s32 %s98, 1
      %p102 = scmp.eq.s32.totalorder %s22, 1
      %p103 = scmp.ne.s32.totalorder %s98, %s100
      %p104 = scmp.eq.s32.totalorder %s22, 0
      %p105 = por %p103, %p104
      %p106 = scmp.ne.s32.totalorder %s98, %s100
      %p107 = scmp.eq.s32.totalorder %s27, 1
      %p108 = por %p106, %p107
      %p109 = scmp.ne.s32.totalorder %s100, %s101
      %p110 = scmp.eq.s32.totalorder %s27, 0
      %p111 = por %p109, %p110
      %p112 = scmp.ne.s32.totalorder %s100, %s101
      %p113 = scmp.eq.s32.totalorder %s28, 1
      %p114 = por %p112, %p113
      %p116 = scmp.ne.s32.totalorder %s101, %s115
      %p117 = scmp.eq.s32.totalorder %s28, 0
      %p118 = por %p116, %p117
      %s120 = sadd.s32 %s119, 1
      %p123 = scmp.eq.s32.totalorder %s22, 1
      %p124 = scmp.ne.s32.totalorder %s119, %s121
      %p125 = scmp.eq.s32.totalorder %s22, 0
      %p126 = por %p124, %p125
      %p127 = scmp.ne.s32.totalorder %s119, %s121
      %p128 = scmp.eq.s32.totalorder %s27, 1
      %p129 = por %p127, %p128
      %p130 = scmp.ne.s32.totalorder %s121, %s122
      %p131 = scmp.eq.s32.totalorder %s27, 0
      %p132 = por %p130, %p131
      %p133 = scmp.ne.s32.totalorder %s121, %s122
      %p134 = scmp.eq.s32.totalorder %s28, 1
      %p135 = por %p133, %p134
      %p137 = scmp.ne.s32.totalorder %s122, %s136
      %p138 = scmp.eq.s32.totalorder %s28, 0
      %p139 = por %p137, %p138
      %s141 = sadd.s32 %s140, 1
      %p144 = scmp.eq.s32.totalorder %s22, 1
      %p145 = scmp.ne.s32.totalorder %s140, %s142
      %p146 = scmp.eq.s32.totalorder %s22, 0
      %p147 = por %p145, %p146
      %p148 = scmp.ne.s32.totalorder %s140, %s142
      %p149 = scmp.eq.s32.totalorder %s27, 1
      %p150 = por %p148, %p149
      %p151 = scmp.ne.s32.totalorder %s142, %s143
      %p152 = scmp.eq.s32.totalorder %s27, 0
      %p153 = por %p151, %p152
      %p154 = scmp.ne.s32.totalorder %s142, %s143
      %p155 = scmp.eq.s32.totalorder %s28, 1
      %p156 = por %p154, %p155
      %p158 = scmp.ne.s32.totalorder %s143, %s157
      %p159 = scmp.eq.s32.totalorder %s28, 0
      %p160 = por %p158, %p159
      %s162 = sadd.s32 %s161, 1
      %p165 = scmp.eq.s32.totalorder %s22, 1
      %p166 = scmp.ne.s32.totalorder %s161, %s163
      %p167 = scmp.eq.s32.totalorder %s22, 0
      %p168 = por %p166, %p167
      %p169 = scmp.ne.s32.totalorder %s161, %s163
      %p170 = scmp.eq.s32.totalorder %s27, 1
      %p171 = por %p169, %p170
      %p172 = scmp.ne.s32.totalorder %s163, %s164
      %p173 = scmp.eq.s32.totalorder %s27, 0
      %p174 = por %p172, %p173
      %p175 = scmp.ne.s32.totalorder %s163, %s164
      %p176 = scmp.eq.s32.totalorder %s28, 1
      %p177 = por %p175, %p176
      %p179 = scmp.ne.s32.totalorder %s164, %s178
      %p180 = scmp.eq.s32.totalorder %s28, 0
      %p181 = por %p179, %p180
      %s182 = ssub.s32 %s22, %s29
      %p183 = scmp.eq.s32.totalorder %s182, 0
      %s185 = sadd.s32 %s184, 1
      %s186 = scalar_select %p183, %s184, %s185
      %p189 = pneg %p183
      %p190 = scmp.eq.s32.totalorder %s22, 1
      %p191 = por %p189, %p190
      %p192 = scmp.ne.s32.totalorder %s184, %s187
      %p193 = scmp.eq.s32.totalorder %s22, 0
      %p194 = por %p192, %p193
      %p195 = scmp.ne.s32.totalorder %s184, %s187
      %p196 = scmp.eq.s32.totalorder %s27, 1
      %p197 = por %p195, %p196
      %p198 = scmp.ne.s32.totalorder %s187, %s188
      %p199 = scmp.eq.s32.totalorder %s27, 0
      %p200 = por %p198, %p199
      %p201 = scmp.ne.s32.totalorder %s187, %s188
      %p202 = scmp.eq.s32.totalorder %s28, 1
      %p203 = por %p201, %p202
      %p205 = scmp.ne.s32.totalorder %s188, %s204
      %p206 = scmp.eq.s32.totalorder %s28, 0
      %p207 = por %p205, %p206
      %p208 = scmp.le.s32.totalorder 1, %s22
      %p209 = scmp.lt.s32.totalorder %s22, 3
      %p210 = pnand %p208, %p209
      %p211 = pneg %p210
      // Predicated region
      $region9: #{tpu_custom_call.1} parent=5 // pred_check
        _
      $region10: #{tpu_custom_call.1} parent=5 // pred_check_branch
        %213 = sbr.rel (%p210) target = $region12
      $region11: #{tpu_custom_call.1} parent=5 // pred_region
        %s214 = ssub.s32 %s22, 1
        // Predicated region
        $region13: #{tpu_custom_call.1} parent=11 // pred_check
          %p215 = pneg %p69
        $region14: #{tpu_custom_call.1} parent=11 // pred_check_branch
          %217 = sbr.rel (%p215) target = $region16
        $region15: #{tpu_custom_call.1} parent=11 // pred_region
          %s219 = ssub.s32 6144, 6144
          %220 = vsyncadd [#allocation6], %s219
          %s221 = sshll.u32 [#allocation5], 4
          %s222 = int_to_ptr.vmem [resolvable:$true] %s221
          %227 = dma.hbm_to_vmem [thread:$0]  %s1, 6144, %s222, [#allocation6], 64, 64, 4
        $region16: #{tpu_custom_call.1} parent=11 // pred_fallthru
          _
        // Predicated region
        $region17: #{tpu_custom_call.1} parent=11 // pred_check
          %p228 = pneg %p90
        $region18: #{tpu_custom_call.1} parent=11 // pred_check_branch
          %230 = sbr.rel (%p228) target = $region20
        $region19: #{tpu_custom_call.1} parent=11 // pred_region
          %s232 = ssub.s32 32, 32
          %233 = vsyncadd [#allocation6], %s232
          %s234 = sshll.u32 [#allocation7], 4
          %s235 = int_to_ptr.vmem [resolvable:$true] %s234
          %240 = dma.hbm_to_vmem [thread:$0]  %s2, 32, %s235, [#allocation6], 16, 16, 1
        $region20: #{tpu_custom_call.1} parent=11 // pred_fallthru
          _
        // Predicated region
        $region21: #{tpu_custom_call.1} parent=11 // pred_check
          %p241 = pneg %p111
        $region22: #{tpu_custom_call.1} parent=11 // pred_check_branch
          %243 = sbr.rel (%p241) target = $region24
        $region23: #{tpu_custom_call.1} parent=11 // pred_region
          %s245 = ssub.s32 6144, 6144
          %246 = vsyncadd [#allocation9], %s245
          %s247 = sshll.u32 [#allocation8], 4
          %s248 = int_to_ptr.vmem [resolvable:$true] %s247
          %253 = dma.hbm_to_vmem [thread:$0]  %s3, 6144, %s248, [#allocation9], 64, 64, 4
        $region24: #{tpu_custom_call.1} parent=11 // pred_fallthru
          _
        // Predicated region
        $region25: #{tpu_custom_call.1} parent=11 // pred_check
          %p254 = pneg %p132
        $region26: #{tpu_custom_call.1} parent=11 // pred_check_branch
          %256 = sbr.rel (%p254) target = $region28
        $region27: #{tpu_custom_call.1} parent=11 // pred_region
          %s258 = ssub.s32 32, 32
          %259 = vsyncadd [#allocation9], %s258
          %s260 = sshll.u32 [#allocation10], 4
          %s261 = int_to_ptr.vmem [resolvable:$true] %s260
          %266 = dma.hbm_to_vmem [thread:$0]  %s4, 32, %s261, [#allocation9], 16, 16, 1
        $region28: #{tpu_custom_call.1} parent=11 // pred_fallthru
          _
        // Predicated region
        $region29: #{tpu_custom_call.1} parent=11 // pred_check
          %p267 = pneg %p153
        $region30: #{tpu_custom_call.1} parent=11 // pred_check_branch
          %269 = sbr.rel (%p267) target = $region32
        $region31: #{tpu_custom_call.1} parent=11 // pred_region
          %s271 = ssub.s32 2048, 2048
          %272 = vsyncadd [#allocation12], %s271
          %s273 = sshll.u32 [#allocation11], 4
          %s274 = int_to_ptr.vmem [resolvable:$true] %s273
          %279 = dma.hbm_to_vmem [thread:$0]  %s5, 2048, %s274, [#allocation12], 64, 64, 4
        $region32: #{tpu_custom_call.1} parent=11 // pred_fallthru
          _
        // Predicated region
        $region33: #{tpu_custom_call.1} parent=11 // pred_check
          %p280 = pneg %p174
        $region34: #{tpu_custom_call.1} parent=11 // pred_check_branch
          %282 = sbr.rel (%p280) target = $region36
        $region35: #{tpu_custom_call.1} parent=11 // pred_region
          %s284 = ssub.s32 32, 32
          %285 = vsyncadd [#allocation12], %s284
          %s286 = sshll.u32 [#allocation13], 4
          %s287 = int_to_ptr.vmem [resolvable:$true] %s286
          %292 = dma.hbm_to_vmem [thread:$0]  %s6, 32, %s287, [#allocation12], 16, 16, 1
        $region36: #{tpu_custom_call.1} parent=11 // pred_fallthru
          _
      $region12: #{tpu_custom_call.1} parent=5 // pred_fallthru
        _
      %p293 = scmp.lt.s32.totalorder %s22, 2
      // Predicated region
      $region37: #{tpu_custom_call.1} parent=5 // pred_check
        %p294 = pneg %p293
      $region38: #{tpu_custom_call.1} parent=5 // pred_check_branch
        %296 = sbr.rel (%p294) target = $region40
      $region39: #{tpu_custom_call.1} parent=5 // pred_region
        // Predicated region
        $region41: #{tpu_custom_call.1} parent=39 // pred_check
          %p297 = pneg %p42
        $region42: #{tpu_custom_call.1} parent=39 // pred_check_branch
          %299 = sbr.rel (%p297) target = $region44
        $region43: #{tpu_custom_call.1} parent=39 // pred_region
          %s300 = sand.u32 %s32, 1
          %s301 = scalar_lea.sflag [#allocation3], %s300
          %s302 = sand.u32 %s32, 1
          %s303 = smul.addr %s302, 16
          %s304 = scalar_lea.vmem [#allocation2], %s303
          %s306 = ssub.s32 256, 256
          %307 = vsyncadd %s301, %s306
          %s308 = smul.addr %s22, 4
          %s309 = smul.addr %s308, 64
          %s310 = scalar_lea.hbm %s0, %s309
          %s311 = sshll.u32 %s304, 4
          %s312 = int_to_ptr.vmem [resolvable:$true] %s311
          %317 = dma.hbm_to_vmem [thread:$0]  %s310, 256, %s312, %s301, 64, 64, 4
        $region44: #{tpu_custom_call.1} parent=39 // pred_fallthru
          _
      $region40: #{tpu_custom_call.1} parent=5 // pred_fallthru
        _
      %p318 = scmp.le.s32.totalorder 1, %s22
      %p319 = scmp.lt.s32.totalorder %s22, 3
      %p320 = pnand %p318, %p319
      %p321 = pneg %p320
      // Predicated region
      $region45: #{tpu_custom_call.1} parent=5 // pred_check
        _
      $region46: #{tpu_custom_call.1} parent=5 // pred_check_branch
        %323 = sbr.rel (%p320) target = $region48
      $region47: #{tpu_custom_call.1} parent=5 // pred_region
        %s324 = ssub.s32 %s22, 1
        %s325 = sand.u32 %s35, 1
        %s326 = scalar_lea.sflag [#allocation3], %s325
        %s327 = sand.u32 %s35, 1
        %s328 = smul.addr %s327, 16
        %s329 = scalar_lea.vmem [#allocation2], %s328
        // Predicated region
        $region49: #{tpu_custom_call.1} parent=47 // pred_check
          %p330 = pneg %p48
        $region50: #{tpu_custom_call.1} parent=47 // pred_check_branch
          %332 = sbr.rel (%p330) target = $region52
        $region51: #{tpu_custom_call.1} parent=47 // pred_region
          %333 = dma.done %s326, 256
        $region52: #{tpu_custom_call.1} parent=47 // pred_fallthru
          _
        // Predicated region
        $region53: #{tpu_custom_call.1} parent=47 // pred_check
          %p334 = pneg %p69
        $region54: #{tpu_custom_call.1} parent=47 // pred_check_branch
          %336 = sbr.rel (%p334) target = $region56
        $region55: #{tpu_custom_call.1} parent=47 // pred_region
          %337 = dma.done [#allocation6], 6144
        $region56: #{tpu_custom_call.1} parent=47 // pred_fallthru
          _
        // Predicated region
        $region57: #{tpu_custom_call.1} parent=47 // pred_check
          %p338 = pneg %p90
        $region58: #{tpu_custom_call.1} parent=47 // pred_check_branch
          %340 = sbr.rel (%p338) target = $region60
        $region59: #{tpu_custom_call.1} parent=47 // pred_region
          %341 = dma.done [#allocation6], 32
        $region60: #{tpu_custom_call.1} parent=47 // pred_fallthru
          _
        // Predicated region
        $region61: #{tpu_custom_call.1} parent=47 // pred_check
          %p342 = pneg %p111
        $region62: #{tpu_custom_call.1} parent=47 // pred_check_branch
          %344 = sbr.rel (%p342) target = $region64
        $region63: #{tpu_custom_call.1} parent=47 // pred_region
          %345 = dma.done [#allocation9], 6144
        $region64: #{tpu_custom_call.1} parent=47 // pred_fallthru
          _
        // Predicated region
        $region65: #{tpu_custom_call.1} parent=47 // pred_check
          %p346 = pneg %p132
        $region66: #{tpu_custom_call.1} parent=47 // pred_check_branch
          %348 = sbr.rel (%p346) target = $region68
        $region67: #{tpu_custom_call.1} parent=47 // pred_region
          %349 = dma.done [#allocation9], 32
        $region68: #{tpu_custom_call.1} parent=47 // pred_fallthru
          _
        // Predicated region
        $region69: #{tpu_custom_call.1} parent=47 // pred_check
          %p350 = pneg %p153
        $region70: #{tpu_custom_call.1} parent=47 // pred_check_branch
          %352 = sbr.rel (%p350) target = $region72
        $region71: #{tpu_custom_call.1} parent=47 // pred_region
          %353 = dma.done [#allocation12], 2048
        $region72: #{tpu_custom_call.1} parent=47 // pred_fallthru
          _
        // Predicated region
        $region73: #{tpu_custom_call.1} parent=47 // pred_check
          %p354 = pneg %p174
        $region74: #{tpu_custom_call.1} parent=47 // pred_check_branch
          %356 = sbr.rel (%p354) target = $region76
        $region75: #{tpu_custom_call.1} parent=47 // pred_region
          %357 = dma.done [#allocation12], 32
        $region76: #{tpu_custom_call.1} parent=47 // pred_fallthru
          _
        %s358 = sand.u32 %s35, 1
        %s359 = scalar_lea.sflag [#allocation3], %s358
        %s360 = sand.u32 %s35, 1
        %s361 = smul.addr %s360, 16
        %s362 = scalar_lea.vmem [#allocation2], %s361
        %p363 = pneg %p48
        %p364 = pneg %p45
        %p365 = pneg %p69
        %p366 = pneg %p66
        %p367 = pneg %p90
        %p368 = pneg %p87
        %p369 = pneg %p111
        %p370 = pneg %p108
        %p371 = pneg %p132
        %p372 = pneg %p129
        %p373 = pneg %p153
        %p374 = pneg %p150
        %p375 = pneg %p174
        %p376 = pneg %p171
        %p377 = pneg %p200
        %p378 = pneg %p197
        %s379 = sand.u32 %s187, 1
        %s380 = scalar_lea.sflag [#allocation4], %s379
        %s381 = sand.u32 %s187, 1
        %s382 = smul.addr %s381, 8
        %s383 = scalar_lea.vmem [#allocation14], %s382
        %v385 = vlaneseq
        %v386 = vshrl.u32 %v385, 7
        %v387 = vadd.s32 %v386, 8
        %v388 = vadd.s32 %v386, 16
        %v389 = vadd.s32 %v386, 24
        %vm390 = vcmp.lt.s32.totalorder %v386, 16
        %vm391 = vcmp.lt.s32.totalorder %v387, 16
        %vm392 = vcmp.lt.s32.totalorder %v388, 16
        %vm393 = vcmp.lt.s32.totalorder %v389, 16
        %v394 = vsel %vm390, 1, 0
        %v395 = vsel %vm391, 1, 0
        %v396 = vsel %vm392, 1, 0
        %v397 = vsel %vm393, 1, 0
        %v398 = vcvt.s32.f32 %v394
        %v399 = vcvt.s32.f32 %v395
        %v400 = vcvt.s32.f32 %v396
        %v401 = vcvt.s32.f32 %v397
        %v402 = vpack.c.bf16 %v399, %v398
        %v403 = vpack.c.bf16 %v401, %v400
        %v404 = vld [vmem:[%s329] sm:$0xf]
        %v405 = vld [vmem:[%s329 + $0x4] sm:$0xf]
        %v406 = vld [vmem:[%s329 + $0x8] sm:$0xf]
        %v407 = vld [vmem:[%s329 + $0xc] sm:$0xf]
        %v408 = vld [vmem:[#allocation5] sm:$0xf]
        %v409 = vld [vmem:[#allocation5 + $0x4] sm:$0xf]
        %v410 = vld [vmem:[#allocation5 + $0x8] sm:$0xf]
        %v411 = vld [vmem:[#allocation5 + $0xc] sm:$0xf]
        %v412 = vld [vmem:[#allocation5 + $0x10] sm:$0xf]
        %v413 = vld [vmem:[#allocation5 + $0x14] sm:$0xf]
        %v414 = vld [vmem:[#allocation5 + $0x18] sm:$0xf]
        %v415 = vld [vmem:[#allocation5 + $0x1c] sm:$0xf]
        %v416 = vld [vmem:[#allocation5 + $0x20] sm:$0xf]
        %v417 = vld [vmem:[#allocation5 + $0x24] sm:$0xf]
        %v418 = vld [vmem:[#allocation5 + $0x28] sm:$0xf]
        %v419 = vld [vmem:[#allocation5 + $0x2c] sm:$0xf]
        %v420 = vld [vmem:[#allocation5 + $0x30] sm:$0xf]
        %v421 = vld [vmem:[#allocation5 + $0x34] sm:$0xf]
        %v422 = vld [vmem:[#allocation5 + $0x38] sm:$0xf]
        %v423 = vld [vmem:[#allocation5 + $0x3c] sm:$0xf]
        %v428 = vunpack.c.l.b16 %v404
        %v429 = vunpack.c.l.b16 %v405
        %v430 = vunpack.c.l.b16 %v406
        %v431 = vunpack.c.l.b16 %v407
        %v432 = vpack.c.b16 %v429, %v428
        %v433 = vpack.c.b16 %v431, %v430
        %v452 = vunpack.c.l.b16 %v408
        %v453 = vunpack.c.l.b16 %v409
        %v454 = vunpack.c.l.b16 %v410
        %v455 = vunpack.c.l.b16 %v411
        %v456 = vunpack.c.l.b16 %v412
        %v457 = vunpack.c.l.b16 %v413
        %v458 = vunpack.c.l.b16 %v414
        %v459 = vunpack.c.l.b16 %v415
        %v460 = vunpack.c.l.b16 %v416
        %v461 = vunpack.c.l.b16 %v417
        %v462 = vunpack.c.l.b16 %v418
        %v463 = vunpack.c.l.b16 %v419
        %v464 = vunpack.c.l.b16 %v420
        %v465 = vunpack.c.l.b16 %v421
        %v466 = vunpack.c.l.b16 %v422
        %v467 = vunpack.c.l.b16 %v423
        %v468 = vpack.c.b16 %v453, %v452
        %v469 = vpack.c.b16 %v455, %v454
        %v470 = vpack.c.b16 %v457, %v456
        %v471 = vpack.c.b16 %v459, %v458
        %v472 = vpack.c.b16 %v461, %v460
        %v473 = vpack.c.b16 %v463, %v462
        %v474 = vpack.c.b16 %v465, %v464
        %v475 = vpack.c.b16 %v467, %v466
        %484 = vmatprep.subr.bf16.mxu0 0
        %485 = vmatpush1.bf16.msra.mxu0 %v468
        %486 = vmatprep.subr.bf16.mxu0 0
        %487 = vmatpush1.bf16.msra.mxu0 %v469
        %488 = vmatprep.subr.bf16.mxu0 0
        %489 = vmatpush1.bf16.msra.mxu0 %v470
        %490 = vmatprep.subr.bf16.mxu0 0
        %491 = vmatpush1.bf16.msra.mxu0 %v471
        %492 = vmatprep.subr.bf16.mxu0 0
        %493 = vmatpush1.bf16.msra.mxu0 %v472
        %494 = vmatprep.subr.bf16.mxu0 0
        %495 = vmatpush1.bf16.msra.mxu0 %v473
        %496 = vmatprep.subr.bf16.mxu0 0
        %497 = vmatpush1.bf16.msra.mxu0 %v474
        %498 = vmatprep.subr.bf16.mxu0 0
        %499 = vmatpush1.bf16.msra.mxu0 %v475
        %500 = vmatprep.subr.bf16.mxu0 0
        %501 = vmatpush1.bf16.msra.mxu0 0
        %502 = vmatprep.subr.bf16.mxu0 0
        %503 = vmatpush1.bf16.msra.mxu0 0
        %504 = vmatprep.subr.bf16.mxu0 0
        %505 = vmatpush1.bf16.msra.mxu0 0
        %506 = vmatprep.subr.bf16.mxu0 0
        %507 = vmatpush1.bf16.msra.mxu0 0
        %508 = vmatprep.subr.bf16.mxu0 0
        %509 = vmatpush1.bf16.msra.mxu0 0
        %510 = vmatprep.subr.bf16.mxu0 0
        %511 = vmatpush1.bf16.msra.mxu0 0
        %512 = vmatprep.subr.bf16.mxu0 0
        %513 = vmatpush1.bf16.msra.mxu0 0
        %514 = vmatprep.subr.bf16.mxu0 0
        %515 = vmatpush1.bf16.msra.mxu0 0
        %516 = vmatprep.mubr.bf16.mxu0 0
        %517 = vmatmul.mubr.bf16.gmra.mrb[0].mxu0 %v432
        %v518 = vpop.f32.mrb[0].mxu0
        %v519 = vadd.f32 0.0, %v518
        %v520 = vpop.f32.mrb[0].mxu0
        %v521 = vpop.f32.mrb[0].mxu0
        %v522 = vadd.f32 0.0, %v521
        %v523 = vpop.f32.mrb[0].mxu0
        %524 = vmatprep.mubr.bf16.mxu0 0
        %525 = vmatmul.mubr.bf16.gmra.mrb[0].mxu0 %v433
        %v526 = vpop.f32.mrb[0].mxu0
        %v527 = vadd.f32 0.0, %v526
        %v528 = vpop.f32.mrb[0].mxu0
        %v529 = vpop.f32.mrb[0].mxu0
        %v530 = vadd.f32 0.0, %v529
        %v531 = vpop.f32.mrb[0].mxu0
        %532 = vdwg.mxu0
        %v533 = vrot.slane %v519, 6
        %v534 = vrot.slane %v522, 6
        %v535 = vrot.slane %v527, 6
        %v536 = vrot.slane %v530, 6
        %vm537 = vcmp.lt.s32.totalorder %v386, 2
        %v538 = vsel %vm537, %v535, %v536
        %v539 = vsel %vm537, %v534, %v535
        %v540 = vsel %vm537, %v533, %v534
        %v541 = vsel %vm537, %v536, %v533
        %s542 = scalar_lea.vmem [#allocation5], 64
        %v543 = vld [vmem:[%s542] sm:$0xf]
        %v544 = vld [vmem:[%s542 + $0x4] sm:$0xf]
        %v545 = vld [vmem:[%s542 + $0x8] sm:$0xf]
        %v546 = vld [vmem:[%s542 + $0xc] sm:$0xf]
        %v547 = vld [vmem:[%s542 + $0x10] sm:$0xf]
        %v548 = vld [vmem:[%s542 + $0x14] sm:$0xf]
        %v549 = vld [vmem:[%s542 + $0x18] sm:$0xf]
        %v550 = vld [vmem:[%s542 + $0x1c] sm:$0xf]
        %v551 = vld [vmem:[%s542 + $0x20] sm:$0xf]
        %v552 = vld [vmem:[%s542 + $0x24] sm:$0xf]
        %v553 = vld [vmem:[%s542 + $0x28] sm:$0xf]
        %v554 = vld [vmem:[%s542 + $0x2c] sm:$0xf]
        %v555 = vld [vmem:[%s542 + $0x30] sm:$0xf]
        %v556 = vld [vmem:[%s542 + $0x34] sm:$0xf]
        %v557 = vld [vmem:[%s542 + $0x38] sm:$0xf]
        %v558 = vld [vmem:[%s542 + $0x3c] sm:$0xf]
        %v575 = vunpack.c.l.b16 %v543
        %v576 = vunpack.c.l.b16 %v544
        %v577 = vunpack.c.l.b16 %v545
        %v578 = vunpack.c.l.b16 %v546
        %v579 = vunpack.c.l.b16 %v547
        %v580 = vunpack.c.l.b16 %v548
        %v581 = vunpack.c.l.b16 %v549
        %v582 = vunpack.c.l.b16 %v550
        %v583 = vunpack.c.l.b16 %v551
        %v584 = vunpack.c.l.b16 %v552
        %v585 = vunpack.c.l.b16 %v553
        %v586 = vunpack.c.l.b16 %v554
        %v587 = vunpack.c.l.b16 %v555
        %v588 = vunpack.c.l.b16 %v556
        %v589 = vunpack.c.l.b16 %v557
        %v590 = vunpack.c.l.b16 %v558
        %v591 = vpack.c.b16 %v576, %v575
        %v592 = vpack.c.b16 %v578, %v577
        %v593 = vpack.c.b16 %v580, %v579
        %v594 = vpack.c.b16 %v582, %v581
        %v595 = vpack.c.b16 %v584, %v583
        %v596 = vpack.c.b16 %v586, %v585
        %v597 = vpack.c.b16 %v588, %v587
        %v598 = vpack.c.b16 %v590, %v589
        %607 = vmatprep.subr.bf16.mxu0 0
        %608 = vmatpush1.bf16.msra.mxu0 %v591
        %609 = vmatprep.subr.bf16.mxu0 0
        %610 = vmatpush1.bf16.msra.mxu0 %v592
        %611 = vmatprep.subr.bf16.mxu0 0
        %612 = vmatpush1.bf16.msra.mxu0 %v593
        %613 = vmatprep.subr.bf16.mxu0 0
        %614 = vmatpush1.bf16.msra.mxu0 %v594
        %615 = vmatprep.subr.bf16.mxu0 0
        %616 = vmatpush1.bf16.msra.mxu0 %v595
        %617 = vmatprep.subr.bf16.mxu0 0
        %618 = vmatpush1.bf16.msra.mxu0 %v596
        %619 = vmatprep.subr.bf16.mxu0 0
        %620 = vmatpush1.bf16.msra.mxu0 %v597
        %621 = vmatprep.subr.bf16.mxu0 0
        %622 = vmatpush1.bf16.msra.mxu0 %v598
        %623 = vmatprep.subr.bf16.mxu0 0
        %624 = vmatpush1.bf16.msra.mxu0 0
        %625 = vmatprep.subr.bf16.mxu0 0
        %626 = vmatpush1.bf16.msra.mxu0 0
        %627 = vmatprep.subr.bf16.mxu0 0
        %628 = vmatpush1.bf16.msra.mxu0 0
        %629 = vmatprep.subr.bf16.mxu0 0
        %630 = vmatpush1.bf16.msra.mxu0 0
        %631 = vmatprep.subr.bf16.mxu0 0
        %632 = vmatpush1.bf16.msra.mxu0 0
        %633 = vmatprep.subr.bf16.mxu0 0
        %634 = vmatpush1.bf16.msra.mxu0 0
        %635 = vmatprep.subr.bf16.mxu0 0
        %636 = vmatpush1.bf16.msra.mxu0 0
        %637 = vmatprep.subr.bf16.mxu0 0
        %638 = vmatpush1.bf16.msra.mxu0 0
        %639 = vmatprep.mubr.bf16.mxu0 0
        %640 = vmatmul.mubr.bf16.gmra.mrb[0].mxu0 %v432
        %v641 = vpop.f32.mrb[0].mxu0
        %v642 = vadd.f32 0.0, %v641
        %v643 = vpop.f32.mrb[0].mxu0
        %v644 = vpop.f32.mrb[0].mxu0
        %v645 = vadd.f32 0.0, %v644
        %v646 = vpop.f32.mrb[0].mxu0
        %647 = vmatprep.mubr.bf16.mxu0 0
        %648 = vmatmul.mubr.bf16.gmra.mrb[0].mxu0 %v433
        %v649 = vpop.f32.mrb[0].mxu0
        %v650 = vadd.f32 0.0, %v649
        %v651 = vpop.f32.mrb[0].mxu0
        %v652 = vpop.f32.mrb[0].mxu0
        %v653 = vadd.f32 0.0, %v652
        %v654 = vpop.f32.mrb[0].mxu0
        %655 = vdwg.mxu0
        %v656 = vrot.slane %v642, 7
        %v657 = vrot.slane %v645, 7
        %v658 = vrot.slane %v650, 7
        %v659 = vrot.slane %v653, 7
        %vm660 = vcmp.lt.s32.totalorder %v386, 1
        %v661 = vsel %vm660, %v658, %v659
        %v662 = vsel %vm660, %v657, %v658
        %v663 = vsel %vm660, %v656, %v657
        %v664 = vsel %vm660, %v659, %v656
        %v665 = vadd.f32 %v541, %v664
        %v666 = vadd.f32 %v540, %v663
        %v667 = vadd.f32 %v539, %v662
        %v668 = vadd.f32 %v538, %v661
        %s669 = scalar_lea.vmem [#allocation5], 128
        %v670 = vld [vmem:[%s669] sm:$0xf]
        %v671 = vld [vmem:[%s669 + $0x4] sm:$0xf]
        %v672 = vld [vmem:[%s669 + $0x8] sm:$0xf]
        %v673 = vld [vmem:[%s669 + $0xc] sm:$0xf]
        %v674 = vld [vmem:[%s669 + $0x10] sm:$0xf]
        %v675 = vld [vmem:[%s669 + $0x14] sm:$0xf]
        %v676 = vld [vmem:[%s669 + $0x18] sm:$0xf]
        %v677 = vld [vmem:[%s669 + $0x1c] sm:$0xf]
        %v678 = vld [vmem:[%s669 + $0x20] sm:$0xf]
        %v679 = vld [vmem:[%s669 + $0x24] sm:$0xf]
        %v680 = vld [vmem:[%s669 + $0x28] sm:$0xf]
        %v681 = vld [vmem:[%s669 + $0x2c] sm:$0xf]
        %v682 = vld [vmem:[%s669 + $0x30] sm:$0xf]
        %v683 = vld [vmem:[%s669 + $0x34] sm:$0xf]
        %v684 = vld [vmem:[%s669 + $0x38] sm:$0xf]
        %v685 = vld [vmem:[%s669 + $0x3c] sm:$0xf]
        %v702 = vunpack.c.l.b16 %v670
        %v703 = vunpack.c.l.b16 %v671
        %v704 = vunpack.c.l.b16 %v672
        %v705 = vunpack.c.l.b16 %v673
        %v706 = vunpack.c.l.b16 %v674
        %v707 = vunpack.c.l.b16 %v675
        %v708 = vunpack.c.l.b16 %v676
        %v709 = vunpack.c.l.b16 %v677
        %v710 = vunpack.c.l.b16 %v678
        %v711 = vunpack.c.l.b16 %v679
        %v712 = vunpack.c.l.b16 %v680
        %v713 = vunpack.c.l.b16 %v681
        %v714 = vunpack.c.l.b16 %v682
        %v715 = vunpack.c.l.b16 %v683
        %v716 = vunpack.c.l.b16 %v684
        %v717 = vunpack.c.l.b16 %v685
        %v718 = vpack.c.b16 %v703, %v702
        %v719 = vpack.c.b16 %v705, %v704
        %v720 = vpack.c.b16 %v707, %v706
        %v721 = vpack.c.b16 %v709, %v708
        %v722 = vpack.c.b16 %v711, %v710
        %v723 = vpack.c.b16 %v713, %v712
        %v724 = vpack.c.b16 %v715, %v714
        %v725 = vpack.c.b16 %v717, %v716
        %734 = vmatprep.subr.bf16.mxu0 0
        %735 = vmatpush1.bf16.msra.mxu0 %v718
        %736 = vmatprep.subr.bf16.mxu0 0
        %737 = vmatpush1.bf16.msra.mxu0 %v719
        %738 = vmatprep.subr.bf16.mxu0 0
        %739 = vmatpush1.bf16.msra.mxu0 %v720
        %740 = vmatprep.subr.bf16.mxu0 0
        %741 = vmatpush1.bf16.msra.mxu0 %v721
        %742 = vmatprep.subr.bf16.mxu0 0
        %743 = vmatpush1.bf16.msra.mxu0 %v722
        %744 = vmatprep.subr.bf16.mxu0 0
        %745 = vmatpush1.bf16.msra.mxu0 %v723
        %746 = vmatprep.subr.bf16.mxu0 0
        %747 = vmatpush1.bf16.msra.mxu0 %v724
        %748 = vmatprep.subr.bf16.mxu0 0
        %749 = vmatpush1.bf16.msra.mxu0 %v725
        %750 = vmatprep.subr.bf16.mxu0 0
        %751 = vmatpush1.bf16.msra.mxu0 0
        %752 = vmatprep.subr.bf16.mxu0 0
        %753 = vmatpush1.bf16.msra.mxu0 0
        %754 = vmatprep.subr.bf16.mxu0 0
        %755 = vmatpush1.bf16.msra.mxu0 0
        %756 = vmatprep.subr.bf16.mxu0 0
        %757 = vmatpush1.bf16.msra.mxu0 0
        %758 = vmatprep.subr.bf16.mxu0 0
        %759 = vmatpush1.bf16.msra.mxu0 0
        %760 = vmatprep.subr.bf16.mxu0 0
        %761 = vmatpush1.bf16.msra.mxu0 0
        %762 = vmatprep.subr.bf16.mxu0 0
        %763 = vmatpush1.bf16.msra.mxu0 0
        %764 = vmatprep.subr.bf16.mxu0 0
        %765 = vmatpush1.bf16.msra.mxu0 0
        %766 = vmatprep.mubr.bf16.mxu0 0
        %767 = vmatmul.mubr.bf16.gmra.mrb[0].mxu0 %v432
        %v768 = vpop.f32.mrb[0].mxu0
        %v769 = vadd.f32 0.0, %v768
        %v770 = vpop.f32.mrb[0].mxu0
        %v771 = vpop.f32.mrb[0].mxu0
        %v772 = vadd.f32 0.0, %v771
        %v773 = vpop.f32.mrb[0].mxu0
        %774 = vmatprep.mubr.bf16.mxu0 0
        %775 = vmatmul.mubr.bf16.gmra.mrb[0].mxu0 %v433
        %v776 = vpop.f32.mrb[0].mxu0
        %v777 = vadd.f32 0.0, %v776
        %v778 = vpop.f32.mrb[0].mxu0
        %v779 = vpop.f32.mrb[0].mxu0
        %v780 = vadd.f32 0.0, %v779
        %v781 = vpop.f32.mrb[0].mxu0
        %782 = vdwg.mxu0
        %v783 = vadd.f32 %v665, %v769
        %v784 = vadd.f32 %v666, %v772
        %v785 = vadd.f32 %v667, %v777
        %v786 = vadd.f32 %v668, %v780
        %v787 = vpack.c.bf16 %v784, %v783
        %v788 = vpack.c.bf16 %v786, %v785
        %v789 = vld [vmem:[#allocation7] sm:$0x1]
        %v791 = vpack.i.b16 %v789, %v789
        %v793 = vlaneseq
        %v794 = vshrl.u32 %v793, 7
        %v795 = vsub.s32 0, %v794
        %v796 = vrot.slane %v791, %v795
        %v797 = vadd.bf16 %v787, %v796
        %v798 = vadd.bf16 %v788, %v796
        %v799 = vmax.bf16 %v797, 0
        %v800 = vmax.bf16 %v798, 0
        %v801 = vmul.bf16 %v799, %v402
        %v802 = vmul.bf16 %v800, %v403
        %v803 = vld [vmem:[#allocation8] sm:$0xf]
        %v804 = vld [vmem:[#allocation8 + $0x4] sm:$0xf]
        %v805 = vld [vmem:[#allocation8 + $0x8] sm:$0xf]
        %v806 = vld [vmem:[#allocation8 + $0xc] sm:$0xf]
        %v807 = vld [vmem:[#allocation8 + $0x10] sm:$0xf]
        %v808 = vld [vmem:[#allocation8 + $0x14] sm:$0xf]
        %v809 = vld [vmem:[#allocation8 + $0x18] sm:$0xf]
        %v810 = vld [vmem:[#allocation8 + $0x1c] sm:$0xf]
        %v811 = vld [vmem:[#allocation8 + $0x20] sm:$0xf]
        %v812 = vld [vmem:[#allocation8 + $0x24] sm:$0xf]
        %v813 = vld [vmem:[#allocation8 + $0x28] sm:$0xf]
        %v814 = vld [vmem:[#allocation8 + $0x2c] sm:$0xf]
        %v815 = vld [vmem:[#allocation8 + $0x30] sm:$0xf]
        %v816 = vld [vmem:[#allocation8 + $0x34] sm:$0xf]
        %v817 = vld [vmem:[#allocation8 + $0x38] sm:$0xf]
        %v818 = vld [vmem:[#allocation8 + $0x3c] sm:$0xf]
        %v835 = vunpack.c.l.b16 %v803
        %v836 = vunpack.c.l.b16 %v804
        %v837 = vunpack.c.l.b16 %v805
        %v838 = vunpack.c.l.b16 %v806
        %v839 = vunpack.c.l.b16 %v807
        %v840 = vunpack.c.l.b16 %v808
        %v841 = vunpack.c.l.b16 %v809
        %v842 = vunpack.c.l.b16 %v810
        %v843 = vunpack.c.l.b16 %v811
        %v844 = vunpack.c.l.b16 %v812
        %v845 = vunpack.c.l.b16 %v813
        %v846 = vunpack.c.l.b16 %v814
        %v847 = vunpack.c.l.b16 %v815
        %v848 = vunpack.c.l.b16 %v816
        %v849 = vunpack.c.l.b16 %v817
        %v850 = vunpack.c.l.b16 %v818
        %v851 = vpack.c.b16 %v836, %v835
        %v852 = vpack.c.b16 %v838, %v837
        %v853 = vpack.c.b16 %v840, %v839
        %v854 = vpack.c.b16 %v842, %v841
        %v855 = vpack.c.b16 %v844, %v843
        %v856 = vpack.c.b16 %v846, %v845
        %v857 = vpack.c.b16 %v848, %v847
        %v858 = vpack.c.b16 %v850, %v849
        %867 = vmatprep.subr.bf16.mxu0 0
        %868 = vmatpush1.bf16.msra.mxu0 %v851
        %869 = vmatprep.subr.bf16.mxu0 0
        %870 = vmatpush1.bf16.msra.mxu0 %v852
        %871 = vmatprep.subr.bf16.mxu0 0
        %872 = vmatpush1.bf16.msra.mxu0 %v853
        %873 = vmatprep.subr.bf16.mxu0 0
        %874 = vmatpush1.bf16.msra.mxu0 %v854
        %875 = vmatprep.subr.bf16.mxu0 0
        %876 = vmatpush1.bf16.msra.mxu0 %v855
        %877 = vmatprep.subr.bf16.mxu0 0
        %878 = vmatpush1.bf16.msra.mxu0 %v856
        %879 = vmatprep.subr.bf16.mxu0 0
        %880 = vmatpush1.bf16.msra.mxu0 %v857
        %881 = vmatprep.subr.bf16.mxu0 0
        %882 = vmatpush1.bf16.msra.mxu0 %v858
        %883 = vmatprep.subr.bf16.mxu0 0
        %884 = vmatpush1.bf16.msra.mxu0 0
        %885 = vmatprep.subr.bf16.mxu0 0
        %886 = vmatpush1.bf16.msra.mxu0 0
        %887 = vmatprep.subr.bf16.mxu0 0
        %888 = vmatpush1.bf16.msra.mxu0 0
        %889 = vmatprep.subr.bf16.mxu0 0
        %890 = vmatpush1.bf16.msra.mxu0 0
        %891 = vmatprep.subr.bf16.mxu0 0
        %892 = vmatpush1.bf16.msra.mxu0 0
        %893 = vmatprep.subr.bf16.mxu0 0
        %894 = vmatpush1.bf16.msra.mxu0 0
        %895 = vmatprep.subr.bf16.mxu0 0
        %896 = vmatpush1.bf16.msra.mxu0 0
        %897 = vmatprep.subr.bf16.mxu0 0
        %898 = vmatpush1.bf16.msra.mxu0 0
        %899 = vmatprep.mubr.bf16.mxu0 0
        %900 = vmatmul.mubr.bf16.gmra.mrb[0].mxu0 %v801
        %v901 = vpop.f32.mrb[0].mxu0
        %v902 = vadd.f32 0.0, %v901
        %v903 = vpop.f32.mrb[0].mxu0
        %v904 = vpop.f32.mrb[0].mxu0
        %v905 = vadd.f32 0.0, %v904
        %v906 = vpop.f32.mrb[0].mxu0
        %907 = vmatprep.mubr.bf16.mxu0 0
        %908 = vmatmul.mubr.bf16.gmra.mrb[0].mxu0 %v802
        %v909 = vpop.f32.mrb[0].mxu0
        %v910 = vadd.f32 0.0, %v909
        %v911 = vpop.f32.mrb[0].mxu0
        %v912 = vpop.f32.mrb[0].mxu0
        %v913 = vadd.f32 0.0, %v912
        %v914 = vpop.f32.mrb[0].mxu0
        %915 = vdwg.mxu0
        %v916 = vrot.slane %v902, 6
        %v917 = vrot.slane %v905, 6
        %v918 = vrot.slane %v910, 6
        %v919 = vrot.slane %v913, 6
        %v920 = vsel %vm537, %v918, %v919
        %v921 = vsel %vm537, %v917, %v918
        %v922 = vsel %vm537, %v916, %v917
        %v923 = vsel %vm537, %v919, %v916
        %s924 = scalar_lea.vmem [#allocation8], 64
        %v925 = vld [vmem:[%s924] sm:$0xf]
        %v926 = vld [vmem:[%s924 + $0x4] sm:$0xf]
        %v927 = vld [vmem:[%s924 + $0x8] sm:$0xf]
        %v928 = vld [vmem:[%s924 + $0xc] sm:$0xf]
        %v929 = vld [vmem:[%s924 + $0x10] sm:$0xf]
        %v930 = vld [vmem:[%s924 + $0x14] sm:$0xf]
        %v931 = vld [vmem:[%s924 + $0x18] sm:$0xf]
        %v932 = vld [vmem:[%s924 + $0x1c] sm:$0xf]
        %v933 = vld [vmem:[%s924 + $0x20] sm:$0xf]
        %v934 = vld [vmem:[%s924 + $0x24] sm:$0xf]
        %v935 = vld [vmem:[%s924 + $0x28] sm:$0xf]
        %v936 = vld [vmem:[%s924 + $0x2c] sm:$0xf]
        %v937 = vld [vmem:[%s924 + $0x30] sm:$0xf]
        %v938 = vld [vmem:[%s924 + $0x34] sm:$0xf]
        %v939 = vld [vmem:[%s924 + $0x38] sm:$0xf]
        %v940 = vld [vmem:[%s924 + $0x3c] sm:$0xf]
        %v957 = vunpack.c.l.b16 %v925
        %v958 = vunpack.c.l.b16 %v926
        %v959 = vunpack.c.l.b16 %v927
        %v960 = vunpack.c.l.b16 %v928
        %v961 = vunpack.c.l.b16 %v929
        %v962 = vunpack.c.l.b16 %v930
        %v963 = vunpack.c.l.b16 %v931
        %v964 = vunpack.c.l.b16 %v932
        %v965 = vunpack.c.l.b16 %v933
        %v966 = vunpack.c.l.b16 %v934
        %v967 = vunpack.c.l.b16 %v935
        %v968 = vunpack.c.l.b16 %v936
        %v969 = vunpack.c.l.b16 %v937
        %v970 = vunpack.c.l.b16 %v938
        %v971 = vunpack.c.l.b16 %v939
        %v972 = vunpack.c.l.b16 %v940
        %v973 = vpack.c.b16 %v958, %v957
        %v974 = vpack.c.b16 %v960, %v959
        %v975 = vpack.c.b16 %v962, %v961
        %v976 = vpack.c.b16 %v964, %v963
        %v977 = vpack.c.b16 %v966, %v965
        %v978 = vpack.c.b16 %v968, %v967
        %v979 = vpack.c.b16 %v970, %v969
        %v980 = vpack.c.b16 %v972, %v971
        %989 = vmatprep.subr.bf16.mxu0 0
        %990 = vmatpush1.bf16.msra.mxu0 %v973
        %991 = vmatprep.subr.bf16.mxu0 0
        %992 = vmatpush1.bf16.msra.mxu0 %v974
        %993 = vmatprep.subr.bf16.mxu0 0
        %994 = vmatpush1.bf16.msra.mxu0 %v975
        %995 = vmatprep.subr.bf16.mxu0 0
        %996 = vmatpush1.bf16.msra.mxu0 %v976
        %997 = vmatprep.subr.bf16.mxu0 0
        %998 = vmatpush1.bf16.msra.mxu0 %v977
        %999 = vmatprep.subr.bf16.mxu0 0
        %1000 = vmatpush1.bf16.msra.mxu0 %v978
        %1001 = vmatprep.subr.bf16.mxu0 0
        %1002 = vmatpush1.bf16.msra.mxu0 %v979
        %1003 = vmatprep.subr.bf16.mxu0 0
        %1004 = vmatpush1.bf16.msra.mxu0 %v980
        %1005 = vmatprep.subr.bf16.mxu0 0
        %1006 = vmatpush1.bf16.msra.mxu0 0
        %1007 = vmatprep.subr.bf16.mxu0 0
        %1008 = vmatpush1.bf16.msra.mxu0 0
        %1009 = vmatprep.subr.bf16.mxu0 0
        %1010 = vmatpush1.bf16.msra.mxu0 0
        %1011 = vmatprep.subr.bf16.mxu0 0
        %1012 = vmatpush1.bf16.msra.mxu0 0
        %1013 = vmatprep.subr.bf16.mxu0 0
        %1014 = vmatpush1.bf16.msra.mxu0 0
        %1015 = vmatprep.subr.bf16.mxu0 0
        %1016 = vmatpush1.bf16.msra.mxu0 0
        %1017 = vmatprep.subr.bf16.mxu0 0
        %1018 = vmatpush1.bf16.msra.mxu0 0
        %1019 = vmatprep.subr.bf16.mxu0 0
        %1020 = vmatpush1.bf16.msra.mxu0 0
        %1021 = vmatprep.mubr.bf16.mxu0 0
        %1022 = vmatmul.mubr.bf16.gmra.mrb[0].mxu0 %v801
        %v1023 = vpop.f32.mrb[0].mxu0
        %v1024 = vadd.f32 0.0, %v1023
        %v1025 = vpop.f32.mrb[0].mxu0
        %v1026 = vpop.f32.mrb[0].mxu0
        %v1027 = vadd.f32 0.0, %v1026
        %v1028 = vpop.f32.mrb[0].mxu0
        %1029 = vmatprep.mubr.bf16.mxu0 0
        %1030 = vmatmul.mubr.bf16.gmra.mrb[0].mxu0 %v802
        %v1031 = vpop.f32.mrb[0].mxu0
        %v1032 = vadd.f32 0.0, %v1031
        %v1033 = vpop.f32.mrb[0].mxu0
        %v1034 = vpop.f32.mrb[0].mxu0
        %v1035 = vadd.f32 0.0, %v1034
        %v1036 = vpop.f32.mrb[0].mxu0
        %1037 = vdwg.mxu0
        %v1038 = vrot.slane %v1024, 7
        %v1039 = vrot.slane %v1027, 7
        %v1040 = vrot.slane %v1032, 7
        %v1041 = vrot.slane %v1035, 7
        %v1042 = vsel %vm660, %v1040, %v1041
        %v1043 = vsel %vm660, %v1039, %v1040
        %v1044 = vsel %vm660, %v1038, %v1039
        %v1045 = vsel %vm660, %v1041, %v1038
        %v1046 = vadd.f32 %v923, %v1045
        %v1047 = vadd.f32 %v922, %v1044
        %v1048 = vadd.f32 %v921, %v1043
        %v1049 = vadd.f32 %v920, %v1042
        %s1050 = scalar_lea.vmem [#allocation8], 128
        %v1051 = vld [vmem:[%s1050] sm:$0xf]
        %v1052 = vld [vmem:[%s1050 + $0x4] sm:$0xf]
        %v1053 = vld [vmem:[%s1050 + $0x8] sm:$0xf]
        %v1054 = vld [vmem:[%s1050 + $0xc] sm:$0xf]
        %v1055 = vld [vmem:[%s1050 + $0x10] sm:$0xf]
        %v1056 = vld [vmem:[%s1050 + $0x14] sm:$0xf]
        %v1057 = vld [vmem:[%s1050 + $0x18] sm:$0xf]
        %v1058 = vld [vmem:[%s1050 + $0x1c] sm:$0xf]
        %v1059 = vld [vmem:[%s1050 + $0x20] sm:$0xf]
        %v1060 = vld [vmem:[%s1050 + $0x24] sm:$0xf]
        %v1061 = vld [vmem:[%s1050 + $0x28] sm:$0xf]
        %v1062 = vld [vmem:[%s1050 + $0x2c] sm:$0xf]
        %v1063 = vld [vmem:[%s1050 + $0x30] sm:$0xf]
        %v1064 = vld [vmem:[%s1050 + $0x34] sm:$0xf]
        %v1065 = vld [vmem:[%s1050 + $0x38] sm:$0xf]
        %v1066 = vld [vmem:[%s1050 + $0x3c] sm:$0xf]
        %v1083 = vunpack.c.l.b16 %v1051
        %v1084 = vunpack.c.l.b16 %v1052
        %v1085 = vunpack.c.l.b16 %v1053
        %v1086 = vunpack.c.l.b16 %v1054
        %v1087 = vunpack.c.l.b16 %v1055
        %v1088 = vunpack.c.l.b16 %v1056
        %v1089 = vunpack.c.l.b16 %v1057
        %v1090 = vunpack.c.l.b16 %v1058
        %v1091 = vunpack.c.l.b16 %v1059
        %v1092 = vunpack.c.l.b16 %v1060
        %v1093 = vunpack.c.l.b16 %v1061
        %v1094 = vunpack.c.l.b16 %v1062
        %v1095 = vunpack.c.l.b16 %v1063
        %v1096 = vunpack.c.l.b16 %v1064
        %v1097 = vunpack.c.l.b16 %v1065
        %v1098 = vunpack.c.l.b16 %v1066
        %v1099 = vpack.c.b16 %v1084, %v1083
        %v1100 = vpack.c.b16 %v1086, %v1085
        %v1101 = vpack.c.b16 %v1088, %v1087
        %v1102 = vpack.c.b16 %v1090, %v1089
        %v1103 = vpack.c.b16 %v1092, %v1091
        %v1104 = vpack.c.b16 %v1094, %v1093
        %v1105 = vpack.c.b16 %v1096, %v1095
        %v1106 = vpack.c.b16 %v1098, %v1097
        %1115 = vmatprep.subr.bf16.mxu0 0
        %1116 = vmatpush1.bf16.msra.mxu0 %v1099
        %1117 = vmatprep.subr.bf16.mxu0 0
        %1118 = vmatpush1.bf16.msra.mxu0 %v1100
        %1119 = vmatprep.subr.bf16.mxu0 0
        %1120 = vmatpush1.bf16.msra.mxu0 %v1101
        %1121 = vmatprep.subr.bf16.mxu0 0
        %1122 = vmatpush1.bf16.msra.mxu0 %v1102
        %1123 = vmatprep.subr.bf16.mxu0 0
        %1124 = vmatpush1.bf16.msra.mxu0 %v1103
        %1125 = vmatprep.subr.bf16.mxu0 0
        %1126 = vmatpush1.bf16.msra.mxu0 %v1104
        %1127 = vmatprep.subr.bf16.mxu0 0
        %1128 = vmatpush1.bf16.msra.mxu0 %v1105
        %1129 = vmatprep.subr.bf16.mxu0 0
        %1130 = vmatpush1.bf16.msra.mxu0 %v1106
        %1131 = vmatprep.subr.bf16.mxu0 0
        %1132 = vmatpush1.bf16.msra.mxu0 0
        %1133 = vmatprep.subr.bf16.mxu0 0
        %1134 = vmatpush1.bf16.msra.mxu0 0
        %1135 = vmatprep.subr.bf16.mxu0 0
        %1136 = vmatpush1.bf16.msra.mxu0 0
        %1137 = vmatprep.subr.bf16.mxu0 0
        %1138 = vmatpush1.bf16.msra.mxu0 0
        %1139 = vmatprep.subr.bf16.mxu0 0
        %1140 = vmatpush1.bf16.msra.mxu0 0
        %1141 = vmatprep.subr.bf16.mxu0 0
        %1142 = vmatpush1.bf16.msra.mxu0 0
        %1143 = vmatprep.subr.bf16.mxu0 0
        %1144 = vmatpush1.bf16.msra.mxu0 0
        %1145 = vmatprep.subr.bf16.mxu0 0
        %1146 = vmatpush1.bf16.msra.mxu0 0
        %1147 = vmatprep.mubr.bf16.mxu0 0
        %1148 = vmatmul.mubr.bf16.gmra.mrb[0].mxu0 %v801
        %v1149 = vpop.f32.mrb[0].mxu0
        %v1150 = vadd.f32 0.0, %v1149
        %v1151 = vpop.f32.mrb[0].mxu0
        %v1152 = vpop.f32.mrb[0].mxu0
        %v1153 = vadd.f32 0.0, %v1152
        %v1154 = vpop.f32.mrb[0].mxu0
        %1155 = vmatprep.mubr.bf16.mxu0 0
        %1156 = vmatmul.mubr.bf16.gmra.mrb[0].mxu0 %v802
        %v1157 = vpop.f32.mrb[0].mxu0
        %v1158 = vadd.f32 0.0, %v1157
        %v1159 = vpop.f32.mrb[0].mxu0
        %v1160 = vpop.f32.mrb[0].mxu0
        %v1161 = vadd.f32 0.0, %v1160
        %v1162 = vpop.f32.mrb[0].mxu0
        %1163 = vdwg.mxu0
        %v1164 = vadd.f32 %v1046, %v1150
        %v1165 = vadd.f32 %v1047, %v1153
        %v1166 = vadd.f32 %v1048, %v1158
        %v1167 = vadd.f32 %v1049, %v1161
        %v1168 = vpack.c.bf16 %v1165, %v1164
        %v1169 = vpack.c.bf16 %v1167, %v1166
        %v1170 = vld [vmem:[#allocation10] sm:$0x1]
        %v1172 = vpack.i.b16 %v1170, %v1170
        %v1174 = vlaneseq
        %v1175 = vshrl.u32 %v1174, 7
        %v1176 = vsub.s32 0, %v1175
        %v1177 = vrot.slane %v1172, %v1176
        %v1178 = vadd.bf16 %v1168, %v1177
        %v1179 = vadd.bf16 %v1169, %v1177
        %v1180 = vmax.bf16 %v1178, 0
        %v1181 = vmax.bf16 %v1179, 0
        %v1182 = vld [vmem:[#allocation11] sm:$0xf]
        %v1183 = vld [vmem:[#allocation11 + $0x4] sm:$0xf]
        %v1184 = vld [vmem:[#allocation11 + $0x8] sm:$0xf]
        %v1185 = vld [vmem:[#allocation11 + $0xc] sm:$0xf]
        %v1186 = vld [vmem:[#allocation11 + $0x10] sm:$0xf]
        %v1187 = vld [vmem:[#allocation11 + $0x14] sm:$0xf]
        %v1188 = vld [vmem:[#allocation11 + $0x18] sm:$0xf]
        %v1189 = vld [vmem:[#allocation11 + $0x1c] sm:$0xf]
        %v1190 = vld [vmem:[#allocation11 + $0x20] sm:$0xf]
        %v1191 = vld [vmem:[#allocation11 + $0x24] sm:$0xf]
        %v1192 = vld [vmem:[#allocation11 + $0x28] sm:$0xf]
        %v1193 = vld [vmem:[#allocation11 + $0x2c] sm:$0xf]
        %v1194 = vld [vmem:[#allocation11 + $0x30] sm:$0xf]
        %v1195 = vld [vmem:[#allocation11 + $0x34] sm:$0xf]
        %v1196 = vld [vmem:[#allocation11 + $0x38] sm:$0xf]
        %v1197 = vld [vmem:[#allocation11 + $0x3c] sm:$0xf]
        %v1214 = vunpack.c.l.b16 %v1182
        %v1215 = vunpack.c.l.b16 %v1183
        %v1216 = vunpack.c.l.b16 %v1184
        %v1217 = vunpack.c.l.b16 %v1185
        %v1218 = vunpack.c.l.b16 %v1186
        %v1219 = vunpack.c.l.b16 %v1187
        %v1220 = vunpack.c.l.b16 %v1188
        %v1221 = vunpack.c.l.b16 %v1189
        %v1222 = vunpack.c.l.b16 %v1190
        %v1223 = vunpack.c.l.b16 %v1191
        %v1224 = vunpack.c.l.b16 %v1192
        %v1225 = vunpack.c.l.b16 %v1193
        %v1226 = vunpack.c.l.b16 %v1194
        %v1227 = vunpack.c.l.b16 %v1195
        %v1228 = vunpack.c.l.b16 %v1196
        %v1229 = vunpack.c.l.b16 %v1197
        %v1230 = vpack.c.b16 %v1215, %v1214
        %v1231 = vpack.c.b16 %v1217, %v1216
        %v1232 = vpack.c.b16 %v1219, %v1218
        %v1233 = vpack.c.b16 %v1221, %v1220
        %v1234 = vpack.c.b16 %v1223, %v1222
        %v1235 = vpack.c.b16 %v1225, %v1224
        %v1236 = vpack.c.b16 %v1227, %v1226
        %v1237 = vpack.c.b16 %v1229, %v1228
        %1246 = vmatprep.subr.bf16.mxu0 0
        %1247 = vmatpush1.bf16.msra.mxu0 %v1230
        %1248 = vmatprep.subr.bf16.mxu0 0
        %1249 = vmatpush1.bf16.msra.mxu0 %v1231
        %1250 = vmatprep.subr.bf16.mxu0 0
        %1251 = vmatpush1.bf16.msra.mxu0 %v1232
        %1252 = vmatprep.subr.bf16.mxu0 0
        %1253 = vmatpush1.bf16.msra.mxu0 %v1233
        %1254 = vmatprep.subr.bf16.mxu0 0
        %1255 = vmatpush1.bf16.msra.mxu0 %v1234
        %1256 = vmatprep.subr.bf16.mxu0 0
        %1257 = vmatpush1.bf16.msra.mxu0 %v1235
        %1258 = vmatprep.subr.bf16.mxu0 0
        %1259 = vmatpush1.bf16.msra.mxu0 %v1236
        %1260 = vmatprep.subr.bf16.mxu0 0
        %1261 = vmatpush1.bf16.msra.mxu0 %v1237
        %1262 = vmatprep.subr.bf16.mxu0 0
        %1263 = vmatpush1.bf16.msra.mxu0 0
        %1264 = vmatprep.subr.bf16.mxu0 0
        %1265 = vmatpush1.bf16.msra.mxu0 0
        %1266 = vmatprep.subr.bf16.mxu0 0
        %1267 = vmatpush1.bf16.msra.mxu0 0
        %1268 = vmatprep.subr.bf16.mxu0 0
        %1269 = vmatpush1.bf16.msra.mxu0 0
        %1270 = vmatprep.subr.bf16.mxu0 0
        %1271 = vmatpush1.bf16.msra.mxu0 0
        %1272 = vmatprep.subr.bf16.mxu0 0
        %1273 = vmatpush1.bf16.msra.mxu0 0
        %1274 = vmatprep.subr.bf16.mxu0 0
        %1275 = vmatpush1.bf16.msra.mxu0 0
        %1276 = vmatprep.subr.bf16.mxu0 0
        %1277 = vmatpush1.bf16.msra.mxu0 0
        %1278 = vmatprep.mubr.bf16.mxu0 0
        %1279 = vmatmul.mubr.bf16.gmra.mrb[0].mxu0 %v432
        %v1280 = vpop.f32.mrb[0].mxu0
        %v1281 = vadd.f32 0.0, %v1280
        %v1282 = vpop.f32.mrb[0].mxu0
        %v1283 = vpop.f32.mrb[0].mxu0
        %v1284 = vadd.f32 0.0, %v1283
        %v1285 = vpop.f32.mrb[0].mxu0
        %1286 = vmatprep.mubr.bf16.mxu0 0
        %1287 = vmatmul.mubr.bf16.gmra.mrb[0].mxu0 %v433
        %v1288 = vpop.f32.mrb[0].mxu0
        %v1289 = vadd.f32 0.0, %v1288
        %v1290 = vpop.f32.mrb[0].mxu0
        %v1291 = vpop.f32.mrb[0].mxu0
        %v1292 = vadd.f32 0.0, %v1291
        %v1293 = vpop.f32.mrb[0].mxu0
        %1294 = vdwg.mxu0
        %v1295 = vpack.c.bf16 %v1284, %v1281
        %v1296 = vpack.c.bf16 %v1292, %v1289
        %v1297 = vld [vmem:[#allocation13] sm:$0x1]
        %v1299 = vpack.i.b16 %v1297, %v1297
        %v1301 = vlaneseq
        %v1302 = vshrl.u32 %v1301, 7
        %v1303 = vsub.s32 0, %v1302
        %v1304 = vrot.slane %v1299, %v1303
        %v1305 = vadd.bf16 %v1295, %v1304
        %v1306 = vadd.bf16 %v1296, %v1304
        %v1307 = vadd.bf16 %v1180, %v1305
        %v1308 = vadd.bf16 %v1181, %v1306
        %v1309 = vmax.bf16 %v1307, 0
        %v1310 = vmax.bf16 %v1308, 0
        %v1311 = vmul.bf16 %v1309, %v402
        %v1312 = vmul.bf16 %v1310, %v403
        %s1313 = scalar_lea.vmem [#allocation5], 192
        %v1314 = vld [vmem:[%s1313] sm:$0xf]
        %v1315 = vld [vmem:[%s1313 + $0x4] sm:$0xf]
        %v1316 = vld [vmem:[%s1313 + $0x8] sm:$0xf]
        %v1317 = vld [vmem:[%s1313 + $0xc] sm:$0xf]
        %v1318 = vld [vmem:[%s1313 + $0x10] sm:$0xf]
        %v1319 = vld [vmem:[%s1313 + $0x14] sm:$0xf]
        %v1320 = vld [vmem:[%s1313 + $0x18] sm:$0xf]
        %v1321 = vld [vmem:[%s1313 + $0x1c] sm:$0xf]
        %v1322 = vld [vmem:[%s1313 + $0x20] sm:$0xf]
        %v1323 = vld [vmem:[%s1313 + $0x24] sm:$0xf]
        %v1324 = vld [vmem:[%s1313 + $0x28] sm:$0xf]
        %v1325 = vld [vmem:[%s1313 + $0x2c] sm:$0xf]
        %v1326 = vld [vmem:[%s1313 + $0x30] sm:$0xf]
        %v1327 = vld [vmem:[%s1313 + $0x34] sm:$0xf]
        %v1328 = vld [vmem:[%s1313 + $0x38] sm:$0xf]
        %v1329 = vld [vmem:[%s1313 + $0x3c] sm:$0xf]
        %v1346 = vunpack.c.l.b16 %v1314
        %v1347 = vunpack.c.l.b16 %v1315
        %v1348 = vunpack.c.l.b16 %v1316
        %v1349 = vunpack.c.l.b16 %v1317
        %v1350 = vunpack.c.l.b16 %v1318
        %v1351 = vunpack.c.l.b16 %v1319
        %v1352 = vunpack.c.l.b16 %v1320
        %v1353 = vunpack.c.l.b16 %v1321
        %v1354 = vunpack.c.l.b16 %v1322
        %v1355 = vunpack.c.l.b16 %v1323
        %v1356 = vunpack.c.l.b16 %v1324
        %v1357 = vunpack.c.l.b16 %v1325
        %v1358 = vunpack.c.l.b16 %v1326
        %v1359 = vunpack.c.l.b16 %v1327
        %v1360 = vunpack.c.l.b16 %v1328
        %v1361 = vunpack.c.l.b16 %v1329
        %v1362 = vpack.c.b16 %v1347, %v1346
        %v1363 = vpack.c.b16 %v1349, %v1348
        %v1364 = vpack.c.b16 %v1351, %v1350
        %v1365 = vpack.c.b16 %v1353, %v1352
        %v1366 = vpack.c.b16 %v1355, %v1354
        %v1367 = vpack.c.b16 %v1357, %v1356
        %v1368 = vpack.c.b16 %v1359, %v1358
        %v1369 = vpack.c.b16 %v1361, %v1360
        %1378 = vmatprep.subr.bf16.mxu0 0
        %1379 = vmatpush1.bf16.msra.mxu0 %v1362
        %1380 = vmatprep.subr.bf16.mxu0 0
        %1381 = vmatpush1.bf16.msra.mxu0 %v1363
        %1382 = vmatprep.subr.bf16.mxu0 0
        %1383 = vmatpush1.bf16.msra.mxu0 %v1364
        %1384 = vmatprep.subr.bf16.mxu0 0
        %1385 = vmatpush1.bf16.msra.mxu0 %v1365
        %1386 = vmatprep.subr.bf16.mxu0 0
        %1387 = vmatpush1.bf16.msra.mxu0 %v1366
        %1388 = vmatprep.subr.bf16.mxu0 0
        %1389 = vmatpush1.bf16.msra.mxu0 %v1367
        %1390 = vmatprep.subr.bf16.mxu0 0
        %1391 = vmatpush1.bf16.msra.mxu0 %v1368
        %1392 = vmatprep.subr.bf16.mxu0 0
        %1393 = vmatpush1.bf16.msra.mxu0 %v1369
        %1394 = vmatprep.subr.bf16.mxu0 0
        %1395 = vmatpush1.bf16.msra.mxu0 0
        %1396 = vmatprep.subr.bf16.mxu0 0
        %1397 = vmatpush1.bf16.msra.mxu0 0
        %1398 = vmatprep.subr.bf16.mxu0 0
        %1399 = vmatpush1.bf16.msra.mxu0 0
        %1400 = vmatprep.subr.bf16.mxu0 0
        %1401 = vmatpush1.bf16.msra.mxu0 0
        %1402 = vmatprep.subr.bf16.mxu0 0
        %1403 = vmatpush1.bf16.msra.mxu0 0
        %1404 = vmatprep.subr.bf16.mxu0 0
        %1405 = vmatpush1.bf16.msra.mxu0 0
        %1406 = vmatprep.subr.bf16.mxu0 0
        %1407 = vmatpush1.bf16.msra.mxu0 0
        %1408 = vmatprep.subr.bf16.mxu0 0
        %1409 = vmatpush1.bf16.msra.mxu0 0
        %1410 = vmatprep.mubr.bf16.mxu0 0
        %1411 = vmatmul.mubr.bf16.gmra.mrb[0].mxu0 %v1311
        %v1412 = vpop.f32.mrb[0].mxu0
        %v1413 = vadd.f32 0.0, %v1412
        %v1414 = vpop.f32.mrb[0].mxu0
        %v1415 = vpop.f32.mrb[0].mxu0
        %v1416 = vadd.f32 0.0, %v1415
        %v1417 = vpop.f32.mrb[0].mxu0
        %1418 = vmatprep.mubr.bf16.mxu0 0
        %1419 = vmatmul.mubr.bf16.gmra.mrb[0].mxu0 %v1312
        %v1420 = vpop.f32.mrb[0].mxu0
        %v1421 = vadd.f32 0.0, %v1420
        %v1422 = vpop.f32.mrb[0].mxu0
        %v1423 = vpop.f32.mrb[0].mxu0
        %v1424 = vadd.f32 0.0, %v1423
        %v1425 = vpop.f32.mrb[0].mxu0
        %1426 = vdwg.mxu0
        %v1427 = vrot.slane %v1413, 4
        %v1428 = vrot.slane %v1416, 4
        %v1429 = vrot.slane %v1421, 4
        %v1430 = vrot.slane %v1424, 4
        %vm1431 = vcmp.lt.s32.totalorder %v386, 4
        %v1432 = vsel %vm1431, %v1429, %v1430
        %v1433 = vsel %vm1431, %v1428, %v1429
        %v1434 = vsel %vm1431, %v1427, %v1428
        %v1435 = vsel %vm1431, %v1430, %v1427
        %s1436 = scalar_lea.vmem [#allocation5], 256
        %v1437 = vld [vmem:[%s1436] sm:$0xf]
        %v1438 = vld [vmem:[%s1436 + $0x4] sm:$0xf]
        %v1439 = vld [vmem:[%s1436 + $0x8] sm:$0xf]
        %v1440 = vld [vmem:[%s1436 + $0xc] sm:$0xf]
        %v1441 = vld [vmem:[%s1436 + $0x10] sm:$0xf]
        %v1442 = vld [vmem:[%s1436 + $0x14] sm:$0xf]
        %v1443 = vld [vmem:[%s1436 + $0x18] sm:$0xf]
        %v1444 = vld [vmem:[%s1436 + $0x1c] sm:$0xf]
        %v1445 = vld [vmem:[%s1436 + $0x20] sm:$0xf]
        %v1446 = vld [vmem:[%s1436 + $0x24] sm:$0xf]
        %v1447 = vld [vmem:[%s1436 + $0x28] sm:$0xf]
        %v1448 = vld [vmem:[%s1436 + $0x2c] sm:$0xf]
        %v1449 = vld [vmem:[%s1436 + $0x30] sm:$0xf]
        %v1450 = vld [vmem:[%s1436 + $0x34] sm:$0xf]
        %v1451 = vld [vmem:[%s1436 + $0x38] sm:$0xf]
        %v1452 = vld [vmem:[%s1436 + $0x3c] sm:$0xf]
        %v1469 = vunpack.c.l.b16 %v1437
        %v1470 = vunpack.c.l.b16 %v1438
        %v1471 = vunpack.c.l.b16 %v1439
        %v1472 = vunpack.c.l.b16 %v1440
        %v1473 = vunpack.c.l.b16 %v1441
        %v1474 = vunpack.c.l.b16 %v1442
        %v1475 = vunpack.c.l.b16 %v1443
        %v1476 = vunpack.c.l.b16 %v1444
        %v1477 = vunpack.c.l.b16 %v1445
        %v1478 = vunpack.c.l.b16 %v1446
        %v1479 = vunpack.c.l.b16 %v1447
        %v1480 = vunpack.c.l.b16 %v1448
        %v1481 = vunpack.c.l.b16 %v1449
        %v1482 = vunpack.c.l.b16 %v1450
        %v1483 = vunpack.c.l.b16 %v1451
        %v1484 = vunpack.c.l.b16 %v1452
        %v1485 = vpack.c.b16 %v1470, %v1469
        %v1486 = vpack.c.b16 %v1472, %v1471
        %v1487 = vpack.c.b16 %v1474, %v1473
        %v1488 = vpack.c.b16 %v1476, %v1475
        %v1489 = vpack.c.b16 %v1478, %v1477
        %v1490 = vpack.c.b16 %v1480, %v1479
        %v1491 = vpack.c.b16 %v1482, %v1481
        %v1492 = vpack.c.b16 %v1484, %v1483
        %1501 = vmatprep.subr.bf16.mxu0 0
        %1502 = vmatpush1.bf16.msra.mxu0 %v1485
        %1503 = vmatprep.subr.bf16.mxu0 0
        %1504 = vmatpush1.bf16.msra.mxu0 %v1486
        %1505 = vmatprep.subr.bf16.mxu0 0
        %1506 = vmatpush1.bf16.msra.mxu0 %v1487
        %1507 = vmatprep.subr.bf16.mxu0 0
        %1508 = vmatpush1.bf16.msra.mxu0 %v1488
        %1509 = vmatprep.subr.bf16.mxu0 0
        %1510 = vmatpush1.bf16.msra.mxu0 %v1489
        %1511 = vmatprep.subr.bf16.mxu0 0
        %1512 = vmatpush1.bf16.msra.mxu0 %v1490
        %1513 = vmatprep.subr.bf16.mxu0 0
        %1514 = vmatpush1.bf16.msra.mxu0 %v1491
        %1515 = vmatprep.subr.bf16.mxu0 0
        %1516 = vmatpush1.bf16.msra.mxu0 %v1492
        %1517 = vmatprep.subr.bf16.mxu0 0
        %1518 = vmatpush1.bf16.msra.mxu0 0
        %1519 = vmatprep.subr.bf16.mxu0 0
        %1520 = vmatpush1.bf16.msra.mxu0 0
        %1521 = vmatprep.subr.bf16.mxu0 0
        %1522 = vmatpush1.bf16.msra.mxu0 0
        %1523 = vmatprep.subr.bf16.mxu0 0
        %1524 = vmatpush1.bf16.msra.mxu0 0
        %1525 = vmatprep.subr.bf16.mxu0 0
        %1526 = vmatpush1.bf16.msra.mxu0 0
        %1527 = vmatprep.subr.bf16.mxu0 0
        %1528 = vmatpush1.bf16.msra.mxu0 0
        %1529 = vmatprep.subr.bf16.mxu0 0
        %1530 = vmatpush1.bf16.msra.mxu0 0
        %1531 = vmatprep.subr.bf16.mxu0 0
        %1532 = vmatpush1.bf16.msra.mxu0 0
        %1533 = vmatprep.mubr.bf16.mxu0 0
        %1534 = vmatmul.mubr.bf16.gmra.mrb[0].mxu0 %v1311
        %v1535 = vpop.f32.mrb[0].mxu0
        %v1536 = vadd.f32 0.0, %v1535
        %v1537 = vpop.f32.mrb[0].mxu0
        %v1538 = vpop.f32.mrb[0].mxu0
        %v1539 = vadd.f32 0.0, %v1538
        %v1540 = vpop.f32.mrb[0].mxu0
        %1541 = vmatprep.mubr.bf16.mxu0 0
        %1542 = vmatmul.mubr.bf16.gmra.mrb[0].mxu0 %v1312
        %v1543 = vpop.f32.mrb[0].mxu0
        %v1544 = vadd.f32 0.0, %v1543
        %v1545 = vpop.f32.mrb[0].mxu0
        %v1546 = vpop.f32.mrb[0].mxu0
        %v1547 = vadd.f32 0.0, %v1546
        %v1548 = vpop.f32.mrb[0].mxu0
        %1549 = vdwg.mxu0
        %v1550 = vrot.slane %v1536, 6
        %v1551 = vrot.slane %v1539, 6
        %v1552 = vrot.slane %v1544, 6
        %v1553 = vrot.slane %v1547, 6
        %v1554 = vsel %vm537, %v1552, %v1553
        %v1555 = vsel %vm537, %v1551, %v1552
        %v1556 = vsel %vm537, %v1550, %v1551
        %v1557 = vsel %vm537, %v1553, %v1550
        %v1558 = vadd.f32 %v1435, %v1557
        %v1559 = vadd.f32 %v1434, %v1556
        %v1560 = vadd.f32 %v1433, %v1555
        %v1561 = vadd.f32 %v1432, %v1554
        %s1562 = scalar_lea.vmem [#allocation5], 320
        %v1563 = vld [vmem:[%s1562] sm:$0xf]
        %v1564 = vld [vmem:[%s1562 + $0x4] sm:$0xf]
        %v1565 = vld [vmem:[%s1562 + $0x8] sm:$0xf]
        %v1566 = vld [vmem:[%s1562 + $0xc] sm:$0xf]
        %v1567 = vld [vmem:[%s1562 + $0x10] sm:$0xf]
        %v1568 = vld [vmem:[%s1562 + $0x14] sm:$0xf]
        %v1569 = vld [vmem:[%s1562 + $0x18] sm:$0xf]
        %v1570 = vld [vmem:[%s1562 + $0x1c] sm:$0xf]
        %v1571 = vld [vmem:[%s1562 + $0x20] sm:$0xf]
        %v1572 = vld [vmem:[%s1562 + $0x24] sm:$0xf]
        %v1573 = vld [vmem:[%s1562 + $0x28] sm:$0xf]
        %v1574 = vld [vmem:[%s1562 + $0x2c] sm:$0xf]
        %v1575 = vld [vmem:[%s1562 + $0x30] sm:$0xf]
        %v1576 = vld [vmem:[%s1562 + $0x34] sm:$0xf]
        %v1577 = vld [vmem:[%s1562 + $0x38] sm:$0xf]
        %v1578 = vld [vmem:[%s1562 + $0x3c] sm:$0xf]
        %v1595 = vunpack.c.l.b16 %v1563
        %v1596 = vunpack.c.l.b16 %v1564
        %v1597 = vunpack.c.l.b16 %v1565
        %v1598 = vunpack.c.l.b16 %v1566
        %v1599 = vunpack.c.l.b16 %v1567
        %v1600 = vunpack.c.l.b16 %v1568
        %v1601 = vunpack.c.l.b16 %v1569
        %v1602 = vunpack.c.l.b16 %v1570
        %v1603 = vunpack.c.l.b16 %v1571
        %v1604 = vunpack.c.l.b16 %v1572
        %v1605 = vunpack.c.l.b16 %v1573
        %v1606 = vunpack.c.l.b16 %v1574
        %v1607 = vunpack.c.l.b16 %v1575
        %v1608 = vunpack.c.l.b16 %v1576
        %v1609 = vunpack.c.l.b16 %v1577
        %v1610 = vunpack.c.l.b16 %v1578
        %v1611 = vpack.c.b16 %v1596, %v1595
        %v1612 = vpack.c.b16 %v1598, %v1597
        %v1613 = vpack.c.b16 %v1600, %v1599
        %v1614 = vpack.c.b16 %v1602, %v1601
        %v1615 = vpack.c.b16 %v1604, %v1603
        %v1616 = vpack.c.b16 %v1606, %v1605
        %v1617 = vpack.c.b16 %v1608, %v1607
        %v1618 = vpack.c.b16 %v1610, %v1609
        %1627 = vmatprep.subr.bf16.mxu0 0
        %1628 = vmatpush1.bf16.msra.mxu0 %v1611
        %1629 = vmatprep.subr.bf16.mxu0 0
        %1630 = vmatpush1.bf16.msra.mxu0 %v1612
        %1631 = vmatprep.subr.bf16.mxu0 0
        %1632 = vmatpush1.bf16.msra.mxu0 %v1613
        %1633 = vmatprep.subr.bf16.mxu0 0
        %1634 = vmatpush1.bf16.msra.mxu0 %v1614
        %1635 = vmatprep.subr.bf16.mxu0 0
        %1636 = vmatpush1.bf16.msra.mxu0 %v1615
        %1637 = vmatprep.subr.bf16.mxu0 0
        %1638 = vmatpush1.bf16.msra.mxu0 %v1616
        %1639 = vmatprep.subr.bf16.mxu0 0
        %1640 = vmatpush1.bf16.msra.mxu0 %v1617
        %1641 = vmatprep.subr.bf16.mxu0 0
        %1642 = vmatpush1.bf16.msra.mxu0 %v1618
        %1643 = vmatprep.subr.bf16.mxu0 0
        %1644 = vmatpush1.bf16.msra.mxu0 0
        %1645 = vmatprep.subr.bf16.mxu0 0
        %1646 = vmatpush1.bf16.msra.mxu0 0
        %1647 = vmatprep.subr.bf16.mxu0 0
        %1648 = vmatpush1.bf16.msra.mxu0 0
        %1649 = vmatprep.subr.bf16.mxu0 0
        %1650 = vmatpush1.bf16.msra.mxu0 0
        %1651 = vmatprep.subr.bf16.mxu0 0
        %1652 = vmatpush1.bf16.msra.mxu0 0
        %1653 = vmatprep.subr.bf16.mxu0 0
        %1654 = vmatpush1.bf16.msra.mxu0 0
        %1655 = vmatprep.subr.bf16.mxu0 0
        %1656 = vmatpush1.bf16.msra.mxu0 0
        %1657 = vmatprep.subr.bf16.mxu0 0
        %1658 = vmatpush1.bf16.msra.mxu0 0
        %1659 = vmatprep.mubr.bf16.mxu0 0
        %1660 = vmatmul.mubr.bf16.gmra.mrb[0].mxu0 %v1311
        %v1661 = vpop.f32.mrb[0].mxu0
        %v1662 = vadd.f32 0.0, %v1661
        %v1663 = vpop.f32.mrb[0].mxu0
        %v1664 = vpop.f32.mrb[0].mxu0
        %v1665 = vadd.f32 0.0, %v1664
        %v1666 = vpop.f32.mrb[0].mxu0
        %1667 = vmatprep.mubr.bf16.mxu0 0
        %1668 = vmatmul.mubr.bf16.gmra.mrb[0].mxu0 %v1312
        %v1669 = vpop.f32.mrb[0].mxu0
        %v1670 = vadd.f32 0.0, %v1669
        %v1671 = vpop.f32.mrb[0].mxu0
        %v1672 = vpop.f32.mrb[0].mxu0
        %v1673 = vadd.f32 0.0, %v1672
        %v1674 = vpop.f32.mrb[0].mxu0
        %1675 = vdwg.mxu0
        %v1676 = vadd.f32 %v1558, %v1662
        %v1677 = vadd.f32 %v1559, %v1665
        %v1678 = vadd.f32 %v1560, %v1670
        %v1679 = vadd.f32 %v1561, %v1673
        %v1680 = vpack.c.bf16 %v1677, %v1676
        %v1681 = vpack.c.bf16 %v1679, %v1678
        %s1682 = scalar_lea.vmem [#allocation7], 1
        %v1683 = vld [vmem:[%s1682] sm:$0x1]
        %v1685 = vpack.i.b16 %v1683, %v1683
        %v1687 = vlaneseq
        %v1688 = vshrl.u32 %v1687, 7
        %v1689 = vsub.s32 0, %v1688
        %v1690 = vrot.slane %v1685, %v1689
        %v1691 = vadd.bf16 %v1680, %v1690
        %v1692 = vadd.bf16 %v1681, %v1690
        %v1693 = vmax.bf16 %v1691, 0
        %v1694 = vmax.bf16 %v1692, 0
        %v1695 = vmul.bf16 %v1693, %v402
        %v1696 = vmul.bf16 %v1694, %v403
        %s1697 = scalar_lea.vmem [#allocation8], 192
        %v1698 = vld [vmem:[%s1697] sm:$0xf]
        %v1699 = vld [vmem:[%s1697 + $0x4] sm:$0xf]
        %v1700 = vld [vmem:[%s1697 + $0x8] sm:$0xf]
        %v1701 = vld [vmem:[%s1697 + $0xc] sm:$0xf]
        %v1702 = vld [vmem:[%s1697 + $0x10] sm:$0xf]
        %v1703 = vld [vmem:[%s1697 + $0x14] sm:$0xf]
        %v1704 = vld [vmem:[%s1697 + $0x18] sm:$0xf]
        %v1705 = vld [vmem:[%s1697 + $0x1c] sm:$0xf]
        %v1706 = vld [vmem:[%s1697 + $0x20] sm:$0xf]
        %v1707 = vld [vmem:[%s1697 + $0x24] sm:$0xf]
        %v1708 = vld [vmem:[%s1697 + $0x28] sm:$0xf]
        %v1709 = vld [vmem:[%s1697 + $0x2c] sm:$0xf]
        %v1710 = vld [vmem:[%s1697 + $0x30] sm:$0xf]
        %v1711 = vld [vmem:[%s1697 + $0x34] sm:$0xf]
        %v1712 = vld [vmem:[%s1697 + $0x38] sm:$0xf]
        %v1713 = vld [vmem:[%s1697 + $0x3c] sm:$0xf]
        %v1730 = vunpack.c.l.b16 %v1698
        %v1731 = vunpack.c.l.b16 %v1699
        %v1732 = vunpack.c.l.b16 %v1700
        %v1733 = vunpack.c.l.b16 %v1701
        %v1734 = vunpack.c.l.b16 %v1702
        %v1735 = vunpack.c.l.b16 %v1703
        %v1736 = vunpack.c.l.b16 %v1704
        %v1737 = vunpack.c.l.b16 %v1705
        %v1738 = vunpack.c.l.b16 %v1706
        %v1739 = vunpack.c.l.b16 %v1707
        %v1740 = vunpack.c.l.b16 %v1708
        %v1741 = vunpack.c.l.b16 %v1709
        %v1742 = vunpack.c.l.b16 %v1710
        %v1743 = vunpack.c.l.b16 %v1711
        %v1744 = vunpack.c.l.b16 %v1712
        %v1745 = vunpack.c.l.b16 %v1713
        %v1746 = vpack.c.b16 %v1731, %v1730
        %v1747 = vpack.c.b16 %v1733, %v1732
        %v1748 = vpack.c.b16 %v1735, %v1734
        %v1749 = vpack.c.b16 %v1737, %v1736
        %v1750 = vpack.c.b16 %v1739, %v1738
        %v1751 = vpack.c.b16 %v1741, %v1740
        %v1752 = vpack.c.b16 %v1743, %v1742
        %v1753 = vpack.c.b16 %v1745, %v1744
        %1762 = vmatprep.subr.bf16.mxu0 0
        %1763 = vmatpush1.bf16.msra.mxu0 %v1746
        %1764 = vmatprep.subr.bf16.mxu0 0
        %1765 = vmatpush1.bf16.msra.mxu0 %v1747
        %1766 = vmatprep.subr.bf16.mxu0 0
        %1767 = vmatpush1.bf16.msra.mxu0 %v1748
        %1768 = vmatprep.subr.bf16.mxu0 0
        %1769 = vmatpush1.bf16.msra.mxu0 %v1749
        %1770 = vmatprep.subr.bf16.mxu0 0
        %1771 = vmatpush1.bf16.msra.mxu0 %v1750
        %1772 = vmatprep.subr.bf16.mxu0 0
        %1773 = vmatpush1.bf16.msra.mxu0 %v1751
        %1774 = vmatprep.subr.bf16.mxu0 0
        %1775 = vmatpush1.bf16.msra.mxu0 %v1752
        %1776 = vmatprep.subr.bf16.mxu0 0
        %1777 = vmatpush1.bf16.msra.mxu0 %v1753
        %1778 = vmatprep.subr.bf16.mxu0 0
        %1779 = vmatpush1.bf16.msra.mxu0 0
        %1780 = vmatprep.subr.bf16.mxu0 0
        %1781 = vmatpush1.bf16.msra.mxu0 0
        %1782 = vmatprep.subr.bf16.mxu0 0
        %1783 = vmatpush1.bf16.msra.mxu0 0
        %1784 = vmatprep.subr.bf16.mxu0 0
        %1785 = vmatpush1.bf16.msra.mxu0 0
        %1786 = vmatprep.subr.bf16.mxu0 0
        %1787 = vmatpush1.bf16.msra.mxu0 0
        %1788 = vmatprep.subr.bf16.mxu0 0
        %1789 = vmatpush1.bf16.msra.mxu0 0
        %1790 = vmatprep.subr.bf16.mxu0 0
        %1791 = vmatpush1.bf16.msra.mxu0 0
        %1792 = vmatprep.subr.bf16.mxu0 0
        %1793 = vmatpush1.bf16.msra.mxu0 0
        %1794 = vmatprep.mubr.bf16.mxu0 0
        %1795 = vmatmul.mubr.bf16.gmra.mrb[0].mxu0 %v1695
        %v1796 = vpop.f32.mrb[0].mxu0
        %v1797 = vadd.f32 0.0, %v1796
        %v1798 = vpop.f32.mrb[0].mxu0
        %v1799 = vpop.f32.mrb[0].mxu0
        %v1800 = vadd.f32 0.0, %v1799
        %v1801 = vpop.f32.mrb[0].mxu0
        %1802 = vmatprep.mubr.bf16.mxu0 0
        %1803 = vmatmul.mubr.bf16.gmra.mrb[0].mxu0 %v1696
        %v1804 = vpop.f32.mrb[0].mxu0
        %v1805 = vpop.f32.mrb[0].mxu0
        %v1806 = vpop.f32.mrb[0].mxu0
        %v1807 = vadd.f32 0.0, %v1806
        %v1808 = vpop.f32.mrb[0].mxu0
        %1809 = vdwg.mxu0
        %v1810 = vrot.slane %v1797, 4
        %v1811 = vrot.slane %v1800, 4
        %v1812 = vrot.slane %v1807, 4
        %v1813 = vsel %vm1431, %v1810, %v1811
        %v1814 = vsel %vm1431, %v1812, %v1810
        %s1815 = scalar_lea.vmem [#allocation8], 256
        %v1816 = vld [vmem:[%s1815] sm:$0xf]
        %v1817 = vld [vmem:[%s1815 + $0x4] sm:$0xf]
        %v1818 = vld [vmem:[%s1815 + $0x8] sm:$0xf]
        %v1819 = vld [vmem:[%s1815 + $0xc] sm:$0xf]
        %v1820 = vld [vmem:[%s1815 + $0x10] sm:$0xf]
        %v1821 = vld [vmem:[%s1815 + $0x14] sm:$0xf]
        %v1822 = vld [vmem:[%s1815 + $0x18] sm:$0xf]
        %v1823 = vld [vmem:[%s1815 + $0x1c] sm:$0xf]
        %v1824 = vld [vmem:[%s1815 + $0x20] sm:$0xf]
        %v1825 = vld [vmem:[%s1815 + $0x24] sm:$0xf]
        %v1826 = vld [vmem:[%s1815 + $0x28] sm:$0xf]
        %v1827 = vld [vmem:[%s1815 + $0x2c] sm:$0xf]
        %v1828 = vld [vmem:[%s1815 + $0x30] sm:$0xf]
        %v1829 = vld [vmem:[%s1815 + $0x34] sm:$0xf]
        %v1830 = vld [vmem:[%s1815 + $0x38] sm:$0xf]
        %v1831 = vld [vmem:[%s1815 + $0x3c] sm:$0xf]
        %v1848 = vunpack.c.l.b16 %v1816
        %v1849 = vunpack.c.l.b16 %v1817
        %v1850 = vunpack.c.l.b16 %v1818
        %v1851 = vunpack.c.l.b16 %v1819
        %v1852 = vunpack.c.l.b16 %v1820
        %v1853 = vunpack.c.l.b16 %v1821
        %v1854 = vunpack.c.l.b16 %v1822
        %v1855 = vunpack.c.l.b16 %v1823
        %v1856 = vunpack.c.l.b16 %v1824
        %v1857 = vunpack.c.l.b16 %v1825
        %v1858 = vunpack.c.l.b16 %v1826
        %v1859 = vunpack.c.l.b16 %v1827
        %v1860 = vunpack.c.l.b16 %v1828
        %v1861 = vunpack.c.l.b16 %v1829
        %v1862 = vunpack.c.l.b16 %v1830
        %v1863 = vunpack.c.l.b16 %v1831
        %v1864 = vpack.c.b16 %v1849, %v1848
        %v1865 = vpack.c.b16 %v1851, %v1850
        %v1866 = vpack.c.b16 %v1853, %v1852
        %v1867 = vpack.c.b16 %v1855, %v1854
        %v1868 = vpack.c.b16 %v1857, %v1856
        %v1869 = vpack.c.b16 %v1859, %v1858
        %v1870 = vpack.c.b16 %v1861, %v1860
        %v1871 = vpack.c.b16 %v1863, %v1862
        %1880 = vmatprep.subr.bf16.mxu0 0
        %1881 = vmatpush1.bf16.msra.mxu0 %v1864
        %1882 = vmatprep.subr.bf16.mxu0 0
        %1883 = vmatpush1.bf16.msra.mxu0 %v1865
        %1884 = vmatprep.subr.bf16.mxu0 0
        %1885 = vmatpush1.bf16.msra.mxu0 %v1866
        %1886 = vmatprep.subr.bf16.mxu0 0
        %1887 = vmatpush1.bf16.msra.mxu0 %v1867
        %1888 = vmatprep.subr.bf16.mxu0 0
        %1889 = vmatpush1.bf16.msra.mxu0 %v1868
        %1890 = vmatprep.subr.bf16.mxu0 0
        %1891 = vmatpush1.bf16.msra.mxu0 %v1869
        %1892 = vmatprep.subr.bf16.mxu0 0
        %1893 = vmatpush1.bf16.msra.mxu0 %v1870
        %1894 = vmatprep.subr.bf16.mxu0 0
        %1895 = vmatpush1.bf16.msra.mxu0 %v1871
        %1896 = vmatprep.subr.bf16.mxu0 0
        %1897 = vmatpush1.bf16.msra.mxu0 0
        %1898 = vmatprep.subr.bf16.mxu0 0
        %1899 = vmatpush1.bf16.msra.mxu0 0
        %1900 = vmatprep.subr.bf16.mxu0 0
        %1901 = vmatpush1.bf16.msra.mxu0 0
        %1902 = vmatprep.subr.bf16.mxu0 0
        %1903 = vmatpush1.bf16.msra.mxu0 0
        %1904 = vmatprep.subr.bf16.mxu0 0
        %1905 = vmatpush1.bf16.msra.mxu0 0
        %1906 = vmatprep.subr.bf16.mxu0 0
        %1907 = vmatpush1.bf16.msra.mxu0 0
        %1908 = vmatprep.subr.bf16.mxu0 0
        %1909 = vmatpush1.bf16.msra.mxu0 0
        %1910 = vmatprep.subr.bf16.mxu0 0
        %1911 = vmatpush1.bf16.msra.mxu0 0
        %1912 = vmatprep.mubr.bf16.mxu0 0
        %1913 = vmatmul.mubr.bf16.gmra.mrb[0].mxu0 %v1695
        %v1914 = vpop.f32.mrb[0].mxu0
        %v1915 = vadd.f32 0.0, %v1914
        %v1916 = vpop.f32.mrb[0].mxu0
        %v1917 = vpop.f32.mrb[0].mxu0
        %v1918 = vadd.f32 0.0, %v1917
        %v1919 = vpop.f32.mrb[0].mxu0
        %1920 = vmatprep.mubr.bf16.mxu0 0
        %1921 = vmatmul.mubr.bf16.gmra.mrb[0].mxu0 %v1696
        %v1922 = vpop.f32.mrb[0].mxu0
        %v1923 = vpop.f32.mrb[0].mxu0
        %v1924 = vpop.f32.mrb[0].mxu0
        %v1925 = vadd.f32 0.0, %v1924
        %v1926 = vpop.f32.mrb[0].mxu0
        %1927 = vdwg.mxu0
        %v1928 = vrot.slane %v1915, 6
        %v1929 = vrot.slane %v1918, 6
        %v1930 = vrot.slane %v1925, 6
        %v1931 = vsel %vm537, %v1928, %v1929
        %v1932 = vsel %vm537, %v1930, %v1928
        %v1933 = vadd.f32 %v1814, %v1932
        %v1934 = vadd.f32 %v1813, %v1931
        %s1935 = scalar_lea.vmem [#allocation8], 320
        %v1936 = vld [vmem:[%s1935] sm:$0xf]
        %v1937 = vld [vmem:[%s1935 + $0x4] sm:$0xf]
        %v1938 = vld [vmem:[%s1935 + $0x8] sm:$0xf]
        %v1939 = vld [vmem:[%s1935 + $0xc] sm:$0xf]
        %v1940 = vld [vmem:[%s1935 + $0x10] sm:$0xf]
        %v1941 = vld [vmem:[%s1935 + $0x14] sm:$0xf]
        %v1942 = vld [vmem:[%s1935 + $0x18] sm:$0xf]
        %v1943 = vld [vmem:[%s1935 + $0x1c] sm:$0xf]
        %v1944 = vld [vmem:[%s1935 + $0x20] sm:$0xf]
        %v1945 = vld [vmem:[%s1935 + $0x24] sm:$0xf]
        %v1946 = vld [vmem:[%s1935 + $0x28] sm:$0xf]
        %v1947 = vld [vmem:[%s1935 + $0x2c] sm:$0xf]
        %v1948 = vld [vmem:[%s1935 + $0x30] sm:$0xf]
        %v1949 = vld [vmem:[%s1935 + $0x34] sm:$0xf]
        %v1950 = vld [vmem:[%s1935 + $0x38] sm:$0xf]
        %v1951 = vld [vmem:[%s1935 + $0x3c] sm:$0xf]
        %v1968 = vunpack.c.l.b16 %v1936
        %v1969 = vunpack.c.l.b16 %v1937
        %v1970 = vunpack.c.l.b16 %v1938
        %v1971 = vunpack.c.l.b16 %v1939
        %v1972 = vunpack.c.l.b16 %v1940
        %v1973 = vunpack.c.l.b16 %v1941
        %v1974 = vunpack.c.l.b16 %v1942
        %v1975 = vunpack.c.l.b16 %v1943
        %v1976 = vunpack.c.l.b16 %v1944
        %v1977 = vunpack.c.l.b16 %v1945
        %v1978 = vunpack.c.l.b16 %v1946
        %v1979 = vunpack.c.l.b16 %v1947
        %v1980 = vunpack.c.l.b16 %v1948
        %v1981 = vunpack.c.l.b16 %v1949
        %v1982 = vunpack.c.l.b16 %v1950
        %v1983 = vunpack.c.l.b16 %v1951
        %v1984 = vpack.c.b16 %v1969, %v1968
        %v1985 = vpack.c.b16 %v1971, %v1970
        %v1986 = vpack.c.b16 %v1973, %v1972
        %v1987 = vpack.c.b16 %v1975, %v1974
        %v1988 = vpack.c.b16 %v1977, %v1976
        %v1989 = vpack.c.b16 %v1979, %v1978
        %v1990 = vpack.c.b16 %v1981, %v1980
        %v1991 = vpack.c.b16 %v1983, %v1982
        %2000 = vmatprep.subr.bf16.mxu0 0
        %2001 = vmatpush1.bf16.msra.mxu0 %v1984
        %2002 = vmatprep.subr.bf16.mxu0 0
        %2003 = vmatpush1.bf16.msra.mxu0 %v1985
        %2004 = vmatprep.subr.bf16.mxu0 0
        %2005 = vmatpush1.bf16.msra.mxu0 %v1986
        %2006 = vmatprep.subr.bf16.mxu0 0
        %2007 = vmatpush1.bf16.msra.mxu0 %v1987
        %2008 = vmatprep.subr.bf16.mxu0 0
        %2009 = vmatpush1.bf16.msra.mxu0 %v1988
        %2010 = vmatprep.subr.bf16.mxu0 0
        %2011 = vmatpush1.bf16.msra.mxu0 %v1989
        %2012 = vmatprep.subr.bf16.mxu0 0
        %2013 = vmatpush1.bf16.msra.mxu0 %v1990
        %2014 = vmatprep.subr.bf16.mxu0 0
        %2015 = vmatpush1.bf16.msra.mxu0 %v1991
        %2016 = vmatprep.subr.bf16.mxu0 0
        %2017 = vmatpush1.bf16.msra.mxu0 0
        %2018 = vmatprep.subr.bf16.mxu0 0
        %2019 = vmatpush1.bf16.msra.mxu0 0
        %2020 = vmatprep.subr.bf16.mxu0 0
        %2021 = vmatpush1.bf16.msra.mxu0 0
        %2022 = vmatprep.subr.bf16.mxu0 0
        %2023 = vmatpush1.bf16.msra.mxu0 0
        %2024 = vmatprep.subr.bf16.mxu0 0
        %2025 = vmatpush1.bf16.msra.mxu0 0
        %2026 = vmatprep.subr.bf16.mxu0 0
        %2027 = vmatpush1.bf16.msra.mxu0 0
        %2028 = vmatprep.subr.bf16.mxu0 0
        %2029 = vmatpush1.bf16.msra.mxu0 0
        %2030 = vmatprep.subr.bf16.mxu0 0
        %2031 = vmatpush1.bf16.msra.mxu0 0
        %2032 = vmatprep.mubr.bf16.mxu0 0
        %2033 = vmatmul.mubr.bf16.gmra.mrb[0].mxu0 %v1695
        %v2034 = vpop.f32.mrb[0].mxu0
        %v2035 = vadd.f32 0.0, %v2034
        %v2036 = vpop.f32.mrb[0].mxu0
        %v2037 = vpop.f32.mrb[0].mxu0
        %v2038 = vadd.f32 0.0, %v2037
        %v2039 = vpop.f32.mrb[0].mxu0
        %2040 = vmatprep.mubr.bf16.mxu0 0
        %2041 = vmatmul.mubr.bf16.gmra.mrb[0].mxu0 %v1696
        %v2042 = vpop.f32.mrb[0].mxu0
        %v2043 = vpop.f32.mrb[0].mxu0
        %v2044 = vpop.f32.mrb[0].mxu0
        %v2045 = vpop.f32.mrb[0].mxu0
        %2046 = vdwg.mxu0
        %v2047 = vadd.f32 %v1933, %v2035
        %v2048 = vadd.f32 %v1934, %v2038
        %v2049 = vpack.c.bf16 %v2048, %v2047
        %s2050 = scalar_lea.vmem [#allocation10], 1
        %v2051 = vld [vmem:[%s2050] sm:$0x1]
        %v2053 = vpack.i.b16 %v2051, %v2051
        %v2055 = vlaneseq
        %v2056 = vshrl.u32 %v2055, 7
        %v2057 = vsub.s32 0, %v2056
        %v2058 = vrot.slane %v2053, %v2057
        %v2059 = vadd.bf16 %v2049, %v2058
        %v2060 = vmax.bf16 %v2059, 0
        %s2061 = scalar_lea.vmem [#allocation11], 64
        %v2062 = vld [vmem:[%s2061] sm:$0xf]
        %v2063 = vld [vmem:[%s2061 + $0x4] sm:$0xf]
        %v2064 = vld [vmem:[%s2061 + $0x8] sm:$0xf]
        %v2065 = vld [vmem:[%s2061 + $0xc] sm:$0xf]
        %v2066 = vld [vmem:[%s2061 + $0x10] sm:$0xf]
        %v2067 = vld [vmem:[%s2061 + $0x14] sm:$0xf]
        %v2068 = vld [vmem:[%s2061 + $0x18] sm:$0xf]
        %v2069 = vld [vmem:[%s2061 + $0x1c] sm:$0xf]
        %v2070 = vld [vmem:[%s2061 + $0x20] sm:$0xf]
        %v2071 = vld [vmem:[%s2061 + $0x24] sm:$0xf]
        %v2072 = vld [vmem:[%s2061 + $0x28] sm:$0xf]
        %v2073 = vld [vmem:[%s2061 + $0x2c] sm:$0xf]
        %v2074 = vld [vmem:[%s2061 + $0x30] sm:$0xf]
        %v2075 = vld [vmem:[%s2061 + $0x34] sm:$0xf]
        %v2076 = vld [vmem:[%s2061 + $0x38] sm:$0xf]
        %v2077 = vld [vmem:[%s2061 + $0x3c] sm:$0xf]
        %v2094 = vunpack.c.l.b16 %v2062
        %v2095 = vunpack.c.l.b16 %v2063
        %v2096 = vunpack.c.l.b16 %v2064
        %v2097 = vunpack.c.l.b16 %v2065
        %v2098 = vunpack.c.l.b16 %v2066
        %v2099 = vunpack.c.l.b16 %v2067
        %v2100 = vunpack.c.l.b16 %v2068
        %v2101 = vunpack.c.l.b16 %v2069
        %v2102 = vunpack.c.l.b16 %v2070
        %v2103 = vunpack.c.l.b16 %v2071
        %v2104 = vunpack.c.l.b16 %v2072
        %v2105 = vunpack.c.l.b16 %v2073
        %v2106 = vunpack.c.l.b16 %v2074
        %v2107 = vunpack.c.l.b16 %v2075
        %v2108 = vunpack.c.l.b16 %v2076
        %v2109 = vunpack.c.l.b16 %v2077
        %v2110 = vpack.c.b16 %v2095, %v2094
        %v2111 = vpack.c.b16 %v2097, %v2096
        %v2112 = vpack.c.b16 %v2099, %v2098
        %v2113 = vpack.c.b16 %v2101, %v2100
        %v2114 = vpack.c.b16 %v2103, %v2102
        %v2115 = vpack.c.b16 %v2105, %v2104
        %v2116 = vpack.c.b16 %v2107, %v2106
        %v2117 = vpack.c.b16 %v2109, %v2108
        %2126 = vmatprep.subr.bf16.mxu0 0
        %2127 = vmatpush1.bf16.msra.mxu0 %v2110
        %2128 = vmatprep.subr.bf16.mxu0 0
        %2129 = vmatpush1.bf16.msra.mxu0 %v2111
        %2130 = vmatprep.subr.bf16.mxu0 0
        %2131 = vmatpush1.bf16.msra.mxu0 %v2112
        %2132 = vmatprep.subr.bf16.mxu0 0
        %2133 = vmatpush1.bf16.msra.mxu0 %v2113
        %2134 = vmatprep.subr.bf16.mxu0 0
        %2135 = vmatpush1.bf16.msra.mxu0 %v2114
        %2136 = vmatprep.subr.bf16.mxu0 0
        %2137 = vmatpush1.bf16.msra.mxu0 %v2115
        %2138 = vmatprep.subr.bf16.mxu0 0
        %2139 = vmatpush1.bf16.msra.mxu0 %v2116
        %2140 = vmatprep.subr.bf16.mxu0 0
        %2141 = vmatpush1.bf16.msra.mxu0 %v2117
        %2142 = vmatprep.subr.bf16.mxu0 0
        %2143 = vmatpush1.bf16.msra.mxu0 0
        %2144 = vmatprep.subr.bf16.mxu0 0
        %2145 = vmatpush1.bf16.msra.mxu0 0
        %2146 = vmatprep.subr.bf16.mxu0 0
        %2147 = vmatpush1.bf16.msra.mxu0 0
        %2148 = vmatprep.subr.bf16.mxu0 0
        %2149 = vmatpush1.bf16.msra.mxu0 0
        %2150 = vmatprep.subr.bf16.mxu0 0
        %2151 = vmatpush1.bf16.msra.mxu0 0
        %2152 = vmatprep.subr.bf16.mxu0 0
        %2153 = vmatpush1.bf16.msra.mxu0 0
        %2154 = vmatprep.subr.bf16.mxu0 0
        %2155 = vmatpush1.bf16.msra.mxu0 0
        %2156 = vmatprep.subr.bf16.mxu0 0
        %2157 = vmatpush1.bf16.msra.mxu0 0
        %2158 = vmatprep.mubr.bf16.mxu0 0
        %2159 = vmatmul.mubr.bf16.gmra.mrb[0].mxu0 %v1311
        %v2160 = vpop.f32.mrb[0].mxu0
        %v2161 = vadd.f32 0.0, %v2160
        %v2162 = vpop.f32.mrb[0].mxu0
        %v2163 = vpop.f32.mrb[0].mxu0
        %v2164 = vadd.f32 0.0, %v2163
        %v2165 = vpop.f32.mrb[0].mxu0
        %2166 = vmatprep.mubr.bf16.mxu0 0
        %2167 = vmatmul.mubr.bf16.gmra.mrb[0].mxu0 %v1312
        %v2168 = vpop.f32.mrb[0].mxu0
        %v2169 = vpop.f32.mrb[0].mxu0
        %v2170 = vpop.f32.mrb[0].mxu0
        %v2171 = vpop.f32.mrb[0].mxu0
        %2172 = vdwg.mxu0
        %v2173 = vpack.c.bf16 %v2164, %v2161
        %s2174 = scalar_lea.vmem [#allocation13], 1
        %v2175 = vld [vmem:[%s2174] sm:$0x1]
        %v2177 = vpack.i.b16 %v2175, %v2175
        %v2179 = vlaneseq
        %v2180 = vshrl.u32 %v2179, 7
        %v2181 = vsub.s32 0, %v2180
        %v2182 = vrot.slane %v2177, %v2181
        %v2183 = vadd.bf16 %v2173, %v2182
        %v2184 = vadd.bf16 %v2060, %v2183
        %v2185 = vmax.bf16 %v2184, 0
        %v2186 = vmul.bf16 %v2185, %v402
        %v2188 = vunpack.c.l.b16 %v2186
        %v2189 = vunpack.c.h.b16 %v2186
        %v2190 = vpack.c.b16 %v2188, %v2188
        %v2191 = vpack.c.b16 %v2189, %v2189
        %2194 = vst [vmem:[%s383] sm:$0xf] %v2190
        %2195 = vst [vmem:[%s383 + $0x4] sm:$0xf] %v2191
        %s2196 = sand.u32 %s187, 1
        %s2197 = scalar_lea.sflag [#allocation4], %s2196
        %s2198 = sand.u32 %s187, 1
        %s2199 = smul.addr %s2198, 8
        %s2200 = scalar_lea.vmem [#allocation14], %s2199
        // Predicated region
        $region77: #{tpu_custom_call.1} parent=47 // pred_check
          %p2201 = pneg %p197
        $region78: #{tpu_custom_call.1} parent=47 // pred_check_branch
          %2203 = sbr.rel (%p2201) target = $region80
        $region79: #{tpu_custom_call.1} parent=47 // pred_region
          %s2205 = ssub.s32 128, 128
          %2206 = vsyncadd %s2197, %s2205
          %s2207 = smul.addr %s27, 2
          %s2208 = smul.addr %s2207, 64
          %s2209 = scalar_lea.hbm %s7, %s2208
          %s2210 = sshll.u32 %s2200, 4
          %s2211 = int_to_ptr.vmem [resolvable:$true] %s2210
          %2216 = dma.vmem_to_hbm [thread:$0]  %s2211, 128, %s2209, %s2197, 64, 64, 4
        $region80: #{tpu_custom_call.1} parent=47 // pred_fallthru
          _
      $region48: #{tpu_custom_call.1} parent=5 // pred_fallthru
        _
      %p2217 = scmp.le.s32.totalorder 2, %s22
      // Predicated region
      $region81: #{tpu_custom_call.1} parent=5 // pred_check
        %p2218 = pneg %p2217
      $region82: #{tpu_custom_call.1} parent=5 // pred_check_branch
        %2220 = sbr.rel (%p2218) target = $region84
      $region83: #{tpu_custom_call.1} parent=5 // pred_region
        %s2221 = ssub.s32 %s22, 2
        // Predicated region
        $region85: #{tpu_custom_call.1} parent=83 // pred_check
          %p2222 = pneg %p203
        $region86: #{tpu_custom_call.1} parent=83 // pred_check_branch
          %2224 = sbr.rel (%p2222) target = $region88
        $region87: #{tpu_custom_call.1} parent=83 // pred_region
          %s2225 = sand.u32 %s188, 1
          %s2226 = scalar_lea.sflag [#allocation4], %s2225
          %s2227 = sand.u32 %s188, 1
          %s2228 = smul.addr %s2227, 8
          %s2229 = scalar_lea.vmem [#allocation14], %s2228
          %2230 = dma.done %s2226, 128
        $region88: #{tpu_custom_call.1} parent=83 // pred_fallthru
          _
      $region84: #{tpu_custom_call.1} parent=5 // pred_fallthru
        _
    $region6: #{tpu_custom_call.1} parent=1 // loop_footer
      %s26 = sadd.s32 1, %s22
    $region7: #{tpu_custom_call.1} parent=1 // loop_footer_branch
      %21 = sbr.rel target = $region3
    $region8: #{tpu_custom_call.1} parent=1 // loop_exit
      _
    %2231 = vsyncpa [#allocation3], 1
    %s2232 = scalar_lea.sflag [#allocation3], 1
    %2233 = vsyncpa %s2232, 1
    %2234 = vsyncpa [#allocation6], 1
    %2235 = vsyncpa [#allocation9], 1
    %2236 = vsyncpa [#allocation12], 1
    %2237 = vsyncpa [#allocation4], 1
    %s2238 = scalar_lea.sflag [#allocation4], 1
    %2239 = vsyncpa %s2238, 1

// kernel: tpu_custom_call.1
$region0: #{tpu_custom_call.1}
  #allocation0 [shape = 'u32[]', space=smem, size = 0x4, offset = 0x4, fixed_abs, tag = 'smem constant byte address 0x4 - core index']
  #allocation1 [shape = 'u32[144,128]{1,0:T(1,128)}', space=vmem, size = 0x12000, scoped, tag = 'internal scratch']
  %s0 = inlined_call_operand.hbm [shape: bf16[2,32,128], index: 0, kind: input, shape index: {}]
  %s1 = inlined_call_operand.hbm [shape: bf16[2,3,128,128], index: 1, kind: input, shape index: {}]
  %s2 = inlined_call_operand.hbm [shape: bf16[2,1,128], index: 2, kind: input, shape index: {}]
  %s3 = inlined_call_operand.hbm [shape: bf16[2,3,128,128], index: 3, kind: input, shape index: {}]
  %s4 = inlined_call_operand.hbm [shape: bf16[2,1,128], index: 4, kind: input, shape index: {}]
  %s5 = inlined_call_operand.hbm [shape: bf16[2,128,128], index: 5, kind: input, shape index: {}]
  %s6 = inlined_call_operand.hbm [shape: bf16[2,1,128], index: 6, kind: input, shape index: {}]
  %s7 = inlined_call_operand.hbm [shape: bf16[2,16,128], index: 7, kind: output, shape index: {}]
  %s8 = sld [smem:[#allocation0]]
  $region89: #{tpu_custom_call.1} parent=0
    _
  %s10 = ssub.s32 1, %s8
  %s11 = scalar_select 0, %s10, %s8
  $region1: #{tpu_custom_call.1} parent=0
    #allocation2 [shape = 'u8[16384]{0}', space=vmem, size = 0x4000, scoped, tag = 'input window, operand 0']
    #allocation3 [shape = 's32[2]{0}', space=sflag, size = 0x8, scoped, tag = 'scoped memory for tpu_custom_call.1']
    #allocation4 [shape = 's32[2]{0}', space=sflag, size = 0x8, scoped, tag = 'scoped memory for tpu_custom_call.1']
    #allocation5 [shape = 'u8[196608]{0}', space=vmem, size = 0x30000, scoped, tag = 'input window, operand 1, single buffered']
    #allocation6 [shape = 's32[1]{0}', space=sflag, size = 0x4, scoped, tag = 'scoped memory for tpu_custom_call.1']
    #allocation7 [shape = 'u8[1024]{0}', space=vmem, size = 0x400, scoped, tag = 'input window, operand 2, single buffered']
    #allocation8 [shape = 'u8[196608]{0}', space=vmem, size = 0x30000, scoped, tag = 'input window, operand 3, single buffered']
    #allocation9 [shape = 's32[1]{0}', space=sflag, size = 0x4, scoped, tag = 'scoped memory for tpu_custom_call.1']
    #allocation10 [shape = 'u8[1024]{0}', space=vmem, size = 0x400, scoped, tag = 'input window, operand 4, single buffered']
    #allocation11 [shape = 'u8[65536]{0}', space=vmem, size = 0x10000, scoped, tag = 'input window, operand 5, single buffered']
    #allocation12 [shape = 's32[1]{0}', space=sflag, size = 0x4, scoped, tag = 'scoped memory for tpu_custom_call.1']
    #allocation13 [shape = 'u8[1024]{0}', space=vmem, size = 0x400, scoped, tag = 'input window, operand 6, single buffered']
    #allocation14 [shape = 'u8[8192]{0}', space=vmem, size = 0x2000, scoped, tag = 'output window, operand 0']
    %12 = vsyncpa [#allocation3], 0
    %s13 = scalar_lea.sflag [#allocation3], 1
    %14 = vsyncpa %s13, 0
    %15 = vsyncpa [#allocation6], 0
    %16 = vsyncpa [#allocation9], 0
    %17 = vsyncpa [#allocation12], 0
    %18 = vsyncpa [#allocation4], 0
    %s19 = scalar_lea.sflag [#allocation4], 1
    %20 = vsyncpa %s19, 0
    loop: start=0, step=1, limit=4
    $region2: #{tpu_custom_call.1} parent=1 // loop_pre_header
      _
    $region3: #{tpu_custom_call.1} parent=1 // loop_header
      %s22 = sphi 0, %s26
      %p23 = scmp.ge.s32.totalorder %s22, 4
      %s32 = sphi 0, %s34
      %s35 = sphi 0, %s32
      %s36 = sphi 0, %s35
      %s52 = sphi 0, %s36
      %s56 = sphi 0, %s56
      %s58 = sphi 0, %s56
      %s59 = sphi 0, %s58
      %s73 = sphi 0, %s59
      %s77 = sphi 0, %s77
      %s79 = sphi 0, %s77
      %s80 = sphi 0, %s79
      %s94 = sphi 0, %s80
      %s98 = sphi 0, %s98
      %s100 = sphi 0, %s98
      %s101 = sphi 0, %s100
      %s115 = sphi 0, %s101
      %s119 = sphi 0, %s119
      %s121 = sphi 0, %s119
      %s122 = sphi 0, %s121
      %s136 = sphi 0, %s122
      %s140 = sphi 0, %s140
      %s142 = sphi 0, %s140
      %s143 = sphi 0, %s142
      %s157 = sphi 0, %s143
      %s161 = sphi 0, %s161
      %s163 = sphi 0, %s161
      %s164 = sphi 0, %s163
      %s178 = sphi 0, %s164
      %s184 = sphi 0, %s186
      %s187 = sphi 0, %s184
      %s188 = sphi 0, %s187
      %s204 = sphi 0, %s188
    $region4: #{tpu_custom_call.1} parent=1 // loop_header_branch
      %25 = sbr.rel (%p23) target = $region8
    $region5: #{tpu_custom_call.1} parent=1 // loop_body
      %s27 = ssub.s32 %s22, 1
      %s28 = ssub.s32 %s22, 2
      %s29 = sadd.s32 %s22, 1
      %s30 = ssub.s32 %s22, %s29
      %p31 = scmp.eq.s32.totalorder %s30, 0
      %s33 = sadd.s32 %s32, 1
      %s34 = scalar_select %p31, %s32, %s33
      %p37 = pneg %p31
      %p38 = scmp.eq.s32.totalorder %s22, 1
      %p39 = por %p37, %p38
      %p40 = scmp.ne.s32.totalorder %s32, %s35
      %p41 = scmp.eq.s32.totalorder %s22, 0
      %p42 = por %p40, %p41
      %p43 = scmp.ne.s32.totalorder %s32, %s35
      %p44 = scmp.eq.s32.totalorder %s27, 1
      %p45 = por %p43, %p44
      %p46 = scmp.ne.s32.totalorder %s35, %s36
      %p47 = scmp.eq.s32.totalorder %s27, 0
      %p48 = por %p46, %p47
      %p49 = scmp.ne.s32.totalorder %s35, %s36
      %p50 = scmp.eq.s32.totalorder %s28, 1
      %p51 = por %p49, %p50
      %p53 = scmp.ne.s32.totalorder %s36, %s52
      %p54 = scmp.eq.s32.totalorder %s28, 0
      %p55 = por %p53, %p54
      %s57 = sadd.s32 %s56, 1
      %p60 = scmp.eq.s32.totalorder %s22, 1
      %p61 = scmp.ne.s32.totalorder %s56, %s58
      %p62 = scmp.eq.s32.totalorder %s22, 0
      %p63 = por %p61, %p62
      %p64 = scmp.ne.s32.totalorder %s56, %s58
      %p65 = scmp.eq.s32.totalorder %s27, 1
      %p66 = por %p64, %p65
      %p67 = scmp.ne.s32.totalorder %s58, %s59
      %p68 = scmp.eq.s32.totalorder %s27, 0
      %p69 = por %p67, %p68
      %p70 = scmp.ne.s32.totalorder %s58, %s59
      %p71 = scmp.eq.s32.totalorder %s28, 1
      %p72 = por %p70, %p71
      %p74 = scmp.ne.s32.totalorder %s59, %s73
      %p75 = scmp.eq.s32.totalorder %s28, 0
      %p76 = por %p74, %p75
      %s78 = sadd.s32 %s77, 1
      %p81 = scmp.eq.s32.totalorder %s22, 1
      %p82 = scmp.ne.s32.totalorder %s77, %s79
      %p83 = scmp.eq.s32.totalorder %s22, 0
      %p84 = por %p82, %p83
      %p85 = scmp.ne.s32.totalorder %s77, %s79
      %p86 = scmp.eq.s32.totalorder %s27, 1
      %p87 = por %p85, %p86
      %p88 = scmp.ne.s32.totalorder %s79, %s80
      %p89 = scmp.eq.s32.totalorder %s27, 0
      %p90 = por %p88, %p89
      %p91 = scmp.ne.s32.totalorder %s79, %s80
      %p92 = scmp.eq.s32.totalorder %s28, 1
      %p93 = por %p91, %p92
      %p95 = scmp.ne.s32.totalorder %s80, %s94
      %p96 = scmp.eq.s32.totalorder %s28, 0
      %p97 = por %p95, %p96
      %s99 = sadd.s32 %s98, 1
      %p102 = scmp.eq.s32.totalorder %s22, 1
      %p103 = scmp.ne.s32.totalorder %s98, %s100
      %p104 = scmp.eq.s32.totalorder %s22, 0
      %p105 = por %p103, %p104
      %p106 = scmp.ne.s32.totalorder %s98, %s100
      %p107 = scmp.eq.s32.totalorder %s27, 1
      %p108 = por %p106, %p107
      %p109 = scmp.ne.s32.totalorder %s100, %s101
      %p110 = scmp.eq.s32.totalorder %s27, 0
      %p111 = por %p109, %p110
      %p112 = scmp.ne.s32.totalorder %s100, %s101
      %p113 = scmp.eq.s32.totalorder %s28, 1
      %p114 = por %p112, %p113
      %p116 = scmp.ne.s32.totalorder %s101, %s115
      %p117 = scmp.eq.s32.totalorder %s28, 0
      %p118 = por %p116, %p117
      %s120 = sadd.s32 %s119, 1
      %p123 = scmp.eq.s32.totalorder %s22, 1
      %p124 = scmp.ne.s32.totalorder %s119, %s121
      %p125 = scmp.eq.s32.totalorder %s22, 0
      %p126 = por %p124, %p125
      %p127 = scmp.ne.s32.totalorder %s119, %s121
      %p128 = scmp.eq.s32.totalorder %s27, 1
      %p129 = por %p127, %p128
      %p130 = scmp.ne.s32.totalorder %s121, %s122
      %p131 = scmp.eq.s32.totalorder %s27, 0
      %p132 = por %p130, %p131
      %p133 = scmp.ne.s32.totalorder %s121, %s122
      %p134 = scmp.eq.s32.totalorder %s28, 1
      %p135 = por %p133, %p134
      %p137 = scmp.ne.s32.totalorder %s122, %s136
      %p138 = scmp.eq.s32.totalorder %s28, 0
      %p139 = por %p137, %p138
      %s141 = sadd.s32 %s140, 1
      %p144 = scmp.eq.s32.totalorder %s22, 1
      %p145 = scmp.ne.s32.totalorder %s140, %s142
      %p146 = scmp.eq.s32.totalorder %s22, 0
      %p147 = por %p145, %p146
      %p148 = scmp.ne.s32.totalorder %s140, %s142
      %p149 = scmp.eq.s32.totalorder %s27, 1
      %p150 = por %p148, %p149
      %p151 = scmp.ne.s32.totalorder %s142, %s143
      %p152 = scmp.eq.s32.totalorder %s27, 0
      %p153 = por %p151, %p152
      %p154 = scmp.ne.s32.totalorder %s142, %s143
      %p155 = scmp.eq.s32.totalorder %s28, 1
      %p156 = por %p154, %p155
      %p158 = scmp.ne.s32.totalorder %s143, %s157
      %p159 = scmp.eq.s32.totalorder %s28, 0
      %p160 = por %p158, %p159
      %s162 = sadd.s32 %s161, 1
      %p165 = scmp.eq.s32.totalorder %s22, 1
      %p166 = scmp.ne.s32.totalorder %s161, %s163
      %p167 = scmp.eq.s32.totalorder %s22, 0
      %p168 = por %p166, %p167
      %p169 = scmp.ne.s32.totalorder %s161, %s163
      %p170 = scmp.eq.s32.totalorder %s27, 1
      %p171 = por %p169, %p170
      %p172 = scmp.ne.s32.totalorder %s163, %s164
      %p173 = scmp.eq.s32.totalorder %s27, 0
      %p174 = por %p172, %p173
      %p175 = scmp.ne.s32.totalorder %s163, %s164
      %p176 = scmp.eq.s32.totalorder %s28, 1
      %p177 = por %p175, %p176
      %p179 = scmp.ne.s32.totalorder %s164, %s178
      %p180 = scmp.eq.s32.totalorder %s28, 0
      %p181 = por %p179, %p180
      %s182 = ssub.s32 %s22, %s29
      %p183 = scmp.eq.s32.totalorder %s182, 0
      %s185 = sadd.s32 %s184, 1
      %s186 = scalar_select %p183, %s184, %s185
      %p189 = pneg %p183
      %p190 = scmp.eq.s32.totalorder %s22, 1
      %p191 = por %p189, %p190
      %p192 = scmp.ne.s32.totalorder %s184, %s187
      %p193 = scmp.eq.s32.totalorder %s22, 0
      %p194 = por %p192, %p193
      %p195 = scmp.ne.s32.totalorder %s184, %s187
      %p196 = scmp.eq.s32.totalorder %s27, 1
      %p197 = por %p195, %p196
      %p198 = scmp.ne.s32.totalorder %s187, %s188
      %p199 = scmp.eq.s32.totalorder %s27, 0
      %p200 = por %p198, %p199
      %p201 = scmp.ne.s32.totalorder %s187, %s188
      %p202 = scmp.eq.s32.totalorder %s28, 1
      %p203 = por %p201, %p202
      %p205 = scmp.ne.s32.totalorder %s188, %s204
      %p206 = scmp.eq.s32.totalorder %s28, 0
      %p207 = por %p205, %p206
      %p208 = scmp.le.s32.totalorder 1, %s22
      %p209 = scmp.lt.s32.totalorder %s22, 3
      %p210 = pnand %p208, %p209
      %p211 = pneg %p210
      // Predicated region
      $region9: #{tpu_custom_call.1} parent=5 // pred_check
        _
      $region10: #{tpu_custom_call.1} parent=5 // pred_check_branch
        %213 = sbr.rel (%p210) target = $region12
      $region11: #{tpu_custom_call.1} parent=5 // pred_region
        %s214 = ssub.s32 %s22, 1
        // Predicated region
        $region13: #{tpu_custom_call.1} parent=11 // pred_check
          %p215 = pneg %p69
        $region14: #{tpu_custom_call.1} parent=11 // pred_check_branch
          %217 = sbr.rel (%p215) target = $region16
        $region15: #{tpu_custom_call.1} parent=11 // pred_region
          %s219 = ssub.s32 6144, 6144
          %220 = vsyncadd [#allocation6], %s219
          %s221 = sshll.u32 [#allocation5], 4
          %s222 = int_to_ptr.vmem [resolvable:$true] %s221
          %227 = dma.hbm_to_vmem [thread:$0]  %s1, 6144, %s222, [#allocation6], 64, 64, 4
        $region16: #{tpu_custom_call.1} parent=11 // pred_fallthru
          _
        // Predicated region
        $region17: #{tpu_custom_call.1} parent=11 // pred_check
          %p228 = pneg %p90
        $region18: #{tpu_custom_call.1} parent=11 // pred_check_branch
          %230 = sbr.rel (%p228) target = $region20
        $region19: #{tpu_custom_call.1} parent=11 // pred_region
          %s232 = ssub.s32 32, 32
          %233 = vsyncadd [#allocation6], %s232
          %s234 = sshll.u32 [#allocation7], 4
          %s235 = int_to_ptr.vmem [resolvable:$true] %s234
          %240 = dma.hbm_to_vmem [thread:$0]  %s2, 32, %s235, [#allocation6], 16, 16, 1
        $region20: #{tpu_custom_call.1} parent=11 // pred_fallthru
          _
        // Predicated region
        $region21: #{tpu_custom_call.1} parent=11 // pred_check
          %p241 = pneg %p111
        $region22: #{tpu_custom_call.1} parent=11 // pred_check_branch
          %243 = sbr.rel (%p241) target = $region24
        $region23: #{tpu_custom_call.1} parent=11 // pred_region
          %s245 = ssub.s32 6144, 6144
          %246 = vsyncadd [#allocation9], %s245
          %s247 = sshll.u32 [#allocation8], 4
          %s248 = int_to_ptr.vmem [resolvable:$true] %s247
          %253 = dma.hbm_to_vmem [thread:$0]  %s3, 6144, %s248, [#allocation9], 64, 64, 4
        $region24: #{tpu_custom_call.1} parent=11 // pred_fallthru
          _
        // Predicated region
        $region25: #{tpu_custom_call.1} parent=11 // pred_check
          %p254 = pneg %p132
        $region26: #{tpu_custom_call.1} parent=11 // pred_check_branch
          %256 = sbr.rel (%p254) target = $region28
        $region27: #{tpu_custom_call.1} parent=11 // pred_region
          %s258 = ssub.s32 32, 32
          %259 = vsyncadd [#allocation9], %s258
          %s260 = sshll.u32 [#allocation10], 4
          %s261 = int_to_ptr.vmem [resolvable:$true] %s260
          %266 = dma.hbm_to_vmem [thread:$0]  %s4, 32, %s261, [#allocation9], 16, 16, 1
        $region28: #{tpu_custom_call.1} parent=11 // pred_fallthru
          _
        // Predicated region
        $region29: #{tpu_custom_call.1} parent=11 // pred_check
          %p267 = pneg %p153
        $region30: #{tpu_custom_call.1} parent=11 // pred_check_branch
          %269 = sbr.rel (%p267) target = $region32
        $region31: #{tpu_custom_call.1} parent=11 // pred_region
          %s271 = ssub.s32 2048, 2048
          %272 = vsyncadd [#allocation12], %s271
          %s273 = sshll.u32 [#allocation11], 4
          %s274 = int_to_ptr.vmem [resolvable:$true] %s273
          %279 = dma.hbm_to_vmem [thread:$0]  %s5, 2048, %s274, [#allocation12], 64, 64, 4
        $region32: #{tpu_custom_call.1} parent=11 // pred_fallthru
          _
        // Predicated region
        $region33: #{tpu_custom_call.1} parent=11 // pred_check
          %p280 = pneg %p174
        $region34: #{tpu_custom_call.1} parent=11 // pred_check_branch
          %282 = sbr.rel (%p280) target = $region36
        $region35: #{tpu_custom_call.1} parent=11 // pred_region
          %s284 = ssub.s32 32, 32
          %285 = vsyncadd [#allocation12], %s284
          %s286 = sshll.u32 [#allocation13], 4
          %s287 = int_to_ptr.vmem [resolvable:$true] %s286
          %292 = dma.hbm_to_vmem [thread:$0]  %s6, 32, %s287, [#allocation12], 16, 16, 1
        $region36: #{tpu_custom_call.1} parent=11 // pred_fallthru
          _
      $region12: #{tpu_custom_call.1} parent=5 // pred_fallthru
        _
      %p293 = scmp.lt.s32.totalorder %s22, 2
      // Predicated region
      $region37: #{tpu_custom_call.1} parent=5 // pred_check
        %p294 = pneg %p293
      $region38: #{tpu_custom_call.1} parent=5 // pred_check_branch
        %296 = sbr.rel (%p294) target = $region40
      $region39: #{tpu_custom_call.1} parent=5 // pred_region
        // Predicated region
        $region41: #{tpu_custom_call.1} parent=39 // pred_check
          %p297 = pneg %p42
        $region42: #{tpu_custom_call.1} parent=39 // pred_check_branch
          %299 = sbr.rel (%p297) target = $region44
        $region43: #{tpu_custom_call.1} parent=39 // pred_region
          %s300 = sand.u32 %s32, 1
          %s301 = scalar_lea.sflag [#allocation3], %s300
          %s302 = sand.u32 %s32, 1
          %s303 = smul.addr %s302, 16
          %s304 = scalar_lea.vmem [#allocation2], %s303
          %s306 = ssub.s32 256, 256
          %307 = vsyncadd %s301, %s306
          %s308 = smul.addr %s22, 4
          %s309 = smul.addr %s308, 64
          %s310 = scalar_lea.hbm %s0, %s309
          %s311 = sshll.u32 %s304, 4
          %s312 = int_to_ptr.vmem [resolvable:$true] %s311
          %317 = dma.hbm_to_vmem [thread:$0]  %s310, 256, %s312, %s301, 64, 64, 4
        $region44: #{tpu_custom_call.1} parent=39 // pred_fallthru
          _
      $region40: #{tpu_custom_call.1} parent=5 // pred_fallthru
        _
      %p318 = scmp.le.s32.totalorder 1, %s22
      %p319 = scmp.lt.s32.totalorder %s22, 3
      %p320 = pnand %p318, %p319
      %p321 = pneg %p320
      // Predicated region
      $region45: #{tpu_custom_call.1} parent=5 // pred_check
        _
      $region46: #{tpu_custom_call.1} parent=5 // pred_check_branch
        %323 = sbr.rel (%p320) target = $region48
      $region47: #{tpu_custom_call.1} parent=5 // pred_region
        %s324 = ssub.s32 %s22, 1
        %s325 = sand.u32 %s35, 1
        %s326 = scalar_lea.sflag [#allocation3], %s325
        %s327 = sand.u32 %s35, 1
        %s328 = smul.addr %s327, 16
        %s329 = scalar_lea.vmem [#allocation2], %s328
        // Predicated region
        $region49: #{tpu_custom_call.1} parent=47 // pred_check
          %p330 = pneg %p48
        $region50: #{tpu_custom_call.1} parent=47 // pred_check_branch
          %332 = sbr.rel (%p330) target = $region52
        $region51: #{tpu_custom_call.1} parent=47 // pred_region
          %333 = dma.done %s326, 256
        $region52: #{tpu_custom_call.1} parent=47 // pred_fallthru
          _
        // Predicated region
        $region53: #{tpu_custom_call.1} parent=47 // pred_check
          %p334 = pneg %p69
        $region54: #{tpu_custom_call.1} parent=47 // pred_check_branch
          %336 = sbr.rel (%p334) target = $region56
        $region55: #{tpu_custom_call.1} parent=47 // pred_region
          %337 = dma.done [#allocation6], 6144
        $region56: #{tpu_custom_call.1} parent=47 // pred_fallthru
          _
        // Predicated region
        $region57: #{tpu_custom_call.1} parent=47 // pred_check
          %p338 = pneg %p90
        $region58: #{tpu_custom_call.1} parent=47 // pred_check_branch
          %340 = sbr.rel (%p338) target = $region60
        $region59: #{tpu_custom_call.1} parent=47 // pred_region
          %341 = dma.done [#allocation6], 32
        $region60: #{tpu_custom_call.1} parent=47 // pred_fallthru
          _
        // Predicated region
        $region61: #{tpu_custom_call.1} parent=47 // pred_check
          %p342 = pneg %p111
        $region62: #{tpu_custom_call.1} parent=47 // pred_check_branch
          %344 = sbr.rel (%p342) target = $region64
        $region63: #{tpu_custom_call.1} parent=47 // pred_region
          %345 = dma.done [#allocation9], 6144
        $region64: #{tpu_custom_call.1} parent=47 // pred_fallthru
          _
        // Predicated region
        $region65: #{tpu_custom_call.1} parent=47 // pred_check
          %p346 = pneg %p132
        $region66: #{tpu_custom_call.1} parent=47 // pred_check_branch
          %348 = sbr.rel (%p346) target = $region68
        $region67: #{tpu_custom_call.1} parent=47 // pred_region
          %349 = dma.done [#allocation9], 32
        $region68: #{tpu_custom_call.1} parent=47 // pred_fallthru
          _
        // Predicated region
        $region69: #{tpu_custom_call.1} parent=47 // pred_check
          %p350 = pneg %p153
        $region70: #{tpu_custom_call.1} parent=47 // pred_check_branch
          %352 = sbr.rel (%p350) target = $region72
        $region71: #{tpu_custom_call.1} parent=47 // pred_region
          %353 = dma.done [#allocation12], 2048
        $region72: #{tpu_custom_call.1} parent=47 // pred_fallthru
          _
        // Predicated region
        $region73: #{tpu_custom_call.1} parent=47 // pred_check
          %p354 = pneg %p174
        $region74: #{tpu_custom_call.1} parent=47 // pred_check_branch
          %356 = sbr.rel (%p354) target = $region76
        $region75: #{tpu_custom_call.1} parent=47 // pred_region
          %357 = dma.done [#allocation12], 32
        $region76: #{tpu_custom_call.1} parent=47 // pred_fallthru
          _
        %s358 = sand.u32 %s35, 1
        %s359 = scalar_lea.sflag [#allocation3], %s358
        %s360 = sand.u32 %s35, 1
        %s361 = smul.addr %s360, 16
        %s362 = scalar_lea.vmem [#allocation2], %s361
        %p363 = pneg %p48
        %p364 = pneg %p45
        %p365 = pneg %p69
        %p366 = pneg %p66
        %p367 = pneg %p90
        %p368 = pneg %p87
        %p369 = pneg %p111
        %p370 = pneg %p108
        %p371 = pneg %p132
        %p372 = pneg %p129
        %p373 = pneg %p153
        %p374 = pneg %p150
        %p375 = pneg %p174
        %p376 = pneg %p171
        %p377 = pneg %p200
        %p378 = pneg %p197
        %s379 = sand.u32 %s187, 1
        %s380 = scalar_lea.sflag [#allocation4], %s379
        %s381 = sand.u32 %s187, 1
        %s382 = smul.addr %s381, 8
        %s383 = scalar_lea.vmem [#allocation14], %s382
        %v385 = vlaneseq
        %v386 = vshrl.u32 %v385, 7
        %v387 = vadd.s32 %v386, 8
        %v388 = vadd.s32 %v386, 16
        %v389 = vadd.s32 %v386, 24
        %vm390 = vcmp.lt.s32.totalorder %v386, 16
        %vm391 = vcmp.lt.s32.totalorder %v387, 16
        %vm392 = vcmp.lt.s32.totalorder %v388, 16
        %vm393 = vcmp.lt.s32.totalorder %v389, 16
        %v394 = vsel %vm390, 1, 0
        %v395 = vsel %vm391, 1, 0
        %v396 = vsel %vm392, 1, 0
        %v397 = vsel %vm393, 1, 0
        %v398 = vcvt.s32.f32 %v394
        %v399 = vcvt.s32.f32 %v395
        %v400 = vcvt.s32.f32 %v396
        %v401 = vcvt.s32.f32 %v397
        %v402 = vpack.c.bf16 %v399, %v398
        %v403 = vpack.c.bf16 %v401, %v400
        %v404 = vld [vmem:[%s329] sm:$0xf]
        %v405 = vld [vmem:[%s329 + $0x4] sm:$0xf]
        %v406 = vld [vmem:[%s329 + $0x8] sm:$0xf]
        %v407 = vld [vmem:[%s329 + $0xc] sm:$0xf]
        %v408 = vld [vmem:[#allocation5] sm:$0xf]
        %v409 = vld [vmem:[#allocation5 + $0x4] sm:$0xf]
        %v410 = vld [vmem:[#allocation5 + $0x8] sm:$0xf]
        %v411 = vld [vmem:[#allocation5 + $0xc] sm:$0xf]
        %v412 = vld [vmem:[#allocation5 + $0x10] sm:$0xf]
        %v413 = vld [vmem:[#allocation5 + $0x14] sm:$0xf]
        %v414 = vld [vmem:[#allocation5 + $0x18] sm:$0xf]
        %v415 = vld [vmem:[#allocation5 + $0x1c] sm:$0xf]
        %v416 = vld [vmem:[#allocation5 + $0x20] sm:$0xf]
        %v417 = vld [vmem:[#allocation5 + $0x24] sm:$0xf]
        %v418 = vld [vmem:[#allocation5 + $0x28] sm:$0xf]
        %v419 = vld [vmem:[#allocation5 + $0x2c] sm:$0xf]
        %v420 = vld [vmem:[#allocation5 + $0x30] sm:$0xf]
        %v421 = vld [vmem:[#allocation5 + $0x34] sm:$0xf]
        %v422 = vld [vmem:[#allocation5 + $0x38] sm:$0xf]
        %v423 = vld [vmem:[#allocation5 + $0x3c] sm:$0xf]
        %v428 = vunpack.c.l.b16 %v404
        %v429 = vunpack.c.l.b16 %v405
        %v430 = vunpack.c.l.b16 %v406
        %v431 = vunpack.c.l.b16 %v407
        %v432 = vpack.c.b16 %v429, %v428
        %v433 = vpack.c.b16 %v431, %v430
        %v452 = vunpack.c.l.b16 %v408
        %v453 = vunpack.c.l.b16 %v409
        %v454 = vunpack.c.l.b16 %v410
        %v455 = vunpack.c.l.b16 %v411
        %v456 = vunpack.c.l.b16 %v412
        %v457 = vunpack.c.l.b16 %v413
        %v458 = vunpack.c.l.b16 %v414
        %v459 = vunpack.c.l.b16 %v415
        %v460 = vunpack.c.l.b16 %v416
        %v461 = vunpack.c.l.b16 %v417
        %v462 = vunpack.c.l.b16 %v418
        %v463 = vunpack.c.l.b16 %v419
        %v464 = vunpack.c.l.b16 %v420
        %v465 = vunpack.c.l.b16 %v421
        %v466 = vunpack.c.l.b16 %v422
        %v467 = vunpack.c.l.b16 %v423
        %v468 = vpack.c.b16 %v453, %v452
        %v469 = vpack.c.b16 %v455, %v454
        %v470 = vpack.c.b16 %v457, %v456
        %v471 = vpack.c.b16 %v459, %v458
        %v472 = vpack.c.b16 %v461, %v460
        %v473 = vpack.c.b16 %v463, %v462
        %v474 = vpack.c.b16 %v465, %v464
        %v475 = vpack.c.b16 %v467, %v466
        %484 = vmatprep.subr.bf16.mxu0 0
        %485 = vmatpush1.bf16.msra.mxu0 %v468
        %486 = vmatprep.subr.bf16.mxu0 0
        %487 = vmatpush1.bf16.msra.mxu0 %v469
        %488 = vmatprep.subr.bf16.mxu0 0
        %489 = vmatpush1.bf16.msra.mxu0 %v470
        %490 = vmatprep.subr.bf16.mxu0 0
        %491 = vmatpush1.bf16.msra.mxu0 %v471
        %492 = vmatprep.subr.bf16.mxu0 0
        %493 = vmatpush1.bf16.msra.mxu0 %v472
        %494 = vmatprep.subr.bf16.mxu0 0
        %495 = vmatpush1.bf16.msra.mxu0 %v473
        %496 = vmatprep.subr.bf16.mxu0 0
        %497 = vmatpush1.bf16.msra.mxu0 %v474
        %498 = vmatprep.subr.bf16.mxu0 0
        %499 = vmatpush1.bf16.msra.mxu0 %v475
        %500 = vmatprep.subr.bf16.mxu0 0
        %501 = vmatpush1.bf16.msra.mxu0 0
        %502 = vmatprep.subr.bf16.mxu0 0
        %503 = vmatpush1.bf16.msra.mxu0 0
        %504 = vmatprep.subr.bf16.mxu0 0
        %505 = vmatpush1.bf16.msra.mxu0 0
        %506 = vmatprep.subr.bf16.mxu0 0
        %507 = vmatpush1.bf16.msra.mxu0 0
        %508 = vmatprep.subr.bf16.mxu0 0
        %509 = vmatpush1.bf16.msra.mxu0 0
        %510 = vmatprep.subr.bf16.mxu0 0
        %511 = vmatpush1.bf16.msra.mxu0 0
        %512 = vmatprep.subr.bf16.mxu0 0
        %513 = vmatpush1.bf16.msra.mxu0 0
        %514 = vmatprep.subr.bf16.mxu0 0
        %515 = vmatpush1.bf16.msra.mxu0 0
        %516 = vmatprep.mubr.bf16.mxu0 0
        %517 = vmatmul.mubr.bf16.gmra.mrb[0].mxu0 %v432
        %v518 = vpop.f32.mrb[0].mxu0
        %v519 = vadd.f32 0.0, %v518
        %v520 = vpop.f32.mrb[0].mxu0
        %v521 = vpop.f32.mrb[0].mxu0
        %v522 = vadd.f32 0.0, %v521
        %v523 = vpop.f32.mrb[0].mxu0
        %524 = vmatprep.mubr.bf16.mxu0 0
        %525 = vmatmul.mubr.bf16.gmra.mrb[0].mxu0 %v433
        %v526 = vpop.f32.mrb[0].mxu0
        %v527 = vadd.f32 0.0, %v526
        %v528 = vpop.f32.mrb[0].mxu0
        %v529 = vpop.f32.mrb[0].mxu0
        %v530 = vadd.f32 0.0, %v529
        %v531 = vpop.f32.mrb[0].mxu0
        %532 = vdwg.mxu0
        %v533 = vrot.slane %v519, 6
        %v534 = vrot.slane %v522, 6
        %v535 = vrot.slane %v527, 6
        %v536 = vrot.slane %v530, 6
        %vm537 = vcmp.lt.s32.totalorder %v386, 2
        %v538 = vsel %vm537, %v535, %v536
        %v539 = vsel %vm537, %v534, %v535
        %v540 = vsel %vm537, %v533, %v534
        %v541 = vsel %vm537, %v536, %v533
        %s542 = scalar_lea.vmem [#allocation5], 64
        %v543 = vld [vmem:[%s542] sm:$0xf]
        %v544 = vld [vmem:[%s542 + $0x4] sm:$0xf]
        %v545 = vld [vmem:[%s542 + $0x8] sm:$0xf]
        %v546 = vld [vmem:[%s542 + $0xc] sm:$0xf]
        %v547 = vld [vmem:[%s542 + $0x10] sm:$0xf]
        %v548 = vld [vmem:[%s542 + $0x14] sm:$0xf]
        %v549 = vld [vmem:[%s542 + $0x18] sm:$0xf]
        %v550 = vld [vmem:[%s542 + $0x1c] sm:$0xf]
        %v551 = vld [vmem:[%s542 + $0x20] sm:$0xf]
        %v552 = vld [vmem:[%s542 + $0x24] sm:$0xf]
        %v553 = vld [vmem:[%s542 + $0x28] sm:$0xf]
        %v554 = vld [vmem:[%s542 + $0x2c] sm:$0xf]
        %v555 = vld [vmem:[%s542 + $0x30] sm:$0xf]
        %v556 = vld [vmem:[%s542 + $0x34] sm:$0xf]
        %v557 = vld [vmem:[%s542 + $0x38] sm:$0xf]
        %v558 = vld [vmem:[%s542 + $0x3c] sm:$0xf]
        %v575 = vunpack.c.l.b16 %v543
        %v576 = vunpack.c.l.b16 %v544
        %v577 = vunpack.c.l.b16 %v545
        %v578 = vunpack.c.l.b16 %v546
        %v579 = vunpack.c.l.b16 %v547
        %v580 = vunpack.c.l.b16 %v548
        %v581 = vunpack.c.l.b16 %v549
        %v582 = vunpack.c.l.b16 %v550
        %v583 = vunpack.c.l.b16 %v551
        %v584 = vunpack.c.l.b16 %v552
        %v585 = vunpack.c.l.b16 %v553
        %v586 = vunpack.c.l.b16 %v554
        %v587 = vunpack.c.l.b16 %v555
        %v588 = vunpack.c.l.b16 %v556
        %v589 = vunpack.c.l.b16 %v557
        %v590 = vunpack.c.l.b16 %v558
        %v591 = vpack.c.b16 %v576, %v575
        %v592 = vpack.c.b16 %v578, %v577
        %v593 = vpack.c.b16 %v580, %v579
        %v594 = vpack.c.b16 %v582, %v581
        %v595 = vpack.c.b16 %v584, %v583
        %v596 = vpack.c.b16 %v586, %v585
        %v597 = vpack.c.b16 %v588, %v587
        %v598 = vpack.c.b16 %v590, %v589
        %607 = vmatprep.subr.bf16.mxu0 0
        %608 = vmatpush1.bf16.msra.mxu0 %v591
        %609 = vmatprep.subr.bf16.mxu0 0
        %610 = vmatpush1.bf16.msra.mxu0 %v592
        %611 = vmatprep.subr.bf16.mxu0 0
        %612 = vmatpush1.bf16.msra.mxu0 %v593
        %613 = vmatprep.subr.bf16.mxu0 0
        %614 = vmatpush1.bf16.msra.mxu0 %v594
        %615 = vmatprep.subr.bf16.mxu0 0
        %616 = vmatpush1.bf16.msra.mxu0 %v595
        %617 = vmatprep.subr.bf16.mxu0 0
        %618 = vmatpush1.bf16.msra.mxu0 %v596
        %619 = vmatprep.subr.bf16.mxu0 0
        %620 = vmatpush1.bf16.msra.mxu0 %v597
        %621 = vmatprep.subr.bf16.mxu0 0
        %622 = vmatpush1.bf16.msra.mxu0 %v598
        %623 = vmatprep.subr.bf16.mxu0 0
        %624 = vmatpush1.bf16.msra.mxu0 0
        %625 = vmatprep.subr.bf16.mxu0 0
        %626 = vmatpush1.bf16.msra.mxu0 0
        %627 = vmatprep.subr.bf16.mxu0 0
        %628 = vmatpush1.bf16.msra.mxu0 0
        %629 = vmatprep.subr.bf16.mxu0 0
        %630 = vmatpush1.bf16.msra.mxu0 0
        %631 = vmatprep.subr.bf16.mxu0 0
        %632 = vmatpush1.bf16.msra.mxu0 0
        %633 = vmatprep.subr.bf16.mxu0 0
        %634 = vmatpush1.bf16.msra.mxu0 0
        %635 = vmatprep.subr.bf16.mxu0 0
        %636 = vmatpush1.bf16.msra.mxu0 0
        %637 = vmatprep.subr.bf16.mxu0 0
        %638 = vmatpush1.bf16.msra.mxu0 0
        %639 = vmatprep.mubr.bf16.mxu0 0
        %640 = vmatmul.mubr.bf16.gmra.mrb[0].mxu0 %v432
        %v641 = vpop.f32.mrb[0].mxu0
        %v642 = vadd.f32 0.0, %v641
        %v643 = vpop.f32.mrb[0].mxu0
        %v644 = vpop.f32.mrb[0].mxu0
        %v645 = vadd.f32 0.0, %v644
        %v646 = vpop.f32.mrb[0].mxu0
        %647 = vmatprep.mubr.bf16.mxu0 0
        %648 = vmatmul.mubr.bf16.gmra.mrb[0].mxu0 %v433
        %v649 = vpop.f32.mrb[0].mxu0
        %v650 = vadd.f32 0.0, %v649
        %v651 = vpop.f32.mrb[0].mxu0
        %v652 = vpop.f32.mrb[0].mxu0
        %v653 = vadd.f32 0.0, %v652
        %v654 = vpop.f32.mrb[0].mxu0
        %655 = vdwg.mxu0
        %v656 = vrot.slane %v642, 7
        %v657 = vrot.slane %v645, 7
        %v658 = vrot.slane %v650, 7
        %v659 = vrot.slane %v653, 7
        %vm660 = vcmp.lt.s32.totalorder %v386, 1
        %v661 = vsel %vm660, %v658, %v659
        %v662 = vsel %vm660, %v657, %v658
        %v663 = vsel %vm660, %v656, %v657
        %v664 = vsel %vm660, %v659, %v656
        %v665 = vadd.f32 %v541, %v664
        %v666 = vadd.f32 %v540, %v663
        %v667 = vadd.f32 %v539, %v662
        %v668 = vadd.f32 %v538, %v661
        %s669 = scalar_lea.vmem [#allocation5], 128
        %v670 = vld [vmem:[%s669] sm:$0xf]
        %v671 = vld [vmem:[%s669 + $0x4] sm:$0xf]
        %v672 = vld [vmem:[%s669 + $0x8] sm:$0xf]
        %v673 = vld [vmem:[%s669 + $0xc] sm:$0xf]
        %v674 = vld [vmem:[%s669 + $0x10] sm:$0xf]
        %v675 = vld [vmem:[%s669 + $0x14] sm:$0xf]
        %v676 = vld [vmem:[%s669 + $0x18] sm:$0xf]
        %v677 = vld [vmem:[%s669 + $0x1c] sm:$0xf]
        %v678 = vld [vmem:[%s669 + $0x20] sm:$0xf]
        %v679 = vld [vmem:[%s669 + $0x24] sm:$0xf]
        %v680 = vld [vmem:[%s669 + $0x28] sm:$0xf]
        %v681 = vld [vmem:[%s669 + $0x2c] sm:$0xf]
        %v682 = vld [vmem:[%s669 + $0x30] sm:$0xf]
        %v683 = vld [vmem:[%s669 + $0x34] sm:$0xf]
        %v684 = vld [vmem:[%s669 + $0x38] sm:$0xf]
        %v685 = vld [vmem:[%s669 + $0x3c] sm:$0xf]
        %v702 = vunpack.c.l.b16 %v670
        %v703 = vunpack.c.l.b16 %v671
        %v704 = vunpack.c.l.b16 %v672
        %v705 = vunpack.c.l.b16 %v673
        %v706 = vunpack.c.l.b16 %v674
        %v707 = vunpack.c.l.b16 %v675
        %v708 = vunpack.c.l.b16 %v676
        %v709 = vunpack.c.l.b16 %v677
        %v710 = vunpack.c.l.b16 %v678
        %v711 = vunpack.c.l.b16 %v679
        %v712 = vunpack.c.l.b16 %v680
        %v713 = vunpack.c.l.b16 %v681
        %v714 = vunpack.c.l.b16 %v682
        %v715 = vunpack.c.l.b16 %v683
        %v716 = vunpack.c.l.b16 %v684
        %v717 = vunpack.c.l.b16 %v685
        %v718 = vpack.c.b16 %v703, %v702
        %v719 = vpack.c.b16 %v705, %v704
        %v720 = vpack.c.b16 %v707, %v706
        %v721 = vpack.c.b16 %v709, %v708
        %v722 = vpack.c.b16 %v711, %v710
        %v723 = vpack.c.b16 %v713, %v712
        %v724 = vpack.c.b16 %v715, %v714
        %v725 = vpack.c.b16 %v717, %v716
        %734 = vmatprep.subr.bf16.mxu0 0
        %735 = vmatpush1.bf16.msra.mxu0 %v718
        %736 = vmatprep.subr.bf16.mxu0 0
        %737 = vmatpush1.bf16.msra.mxu0 %v719
        %738 = vmatprep.subr.bf16.mxu0 0
        %739 = vmatpush1.bf16.msra.mxu0 %v720
        %740 = vmatprep.subr.bf16.mxu0 0
        %741 = vmatpush1.bf16.msra.mxu0 %v721
        %742 = vmatprep.subr.bf16.mxu0 0
        %743 = vmatpush1.bf16.msra.mxu0 %v722
        %744 = vmatprep.subr.bf16.mxu0 0
        %745 = vmatpush1.bf16.msra.mxu0 %v723
        %746 = vmatprep.subr.bf16.mxu0 0
        %747 = vmatpush1.bf16.msra.mxu0 %v724
        %748 = vmatprep.subr.bf16.mxu0 0
        %749 = vmatpush1.bf16.msra.mxu0 %v725
        %750 = vmatprep.subr.bf16.mxu0 0
        %751 = vmatpush1.bf16.msra.mxu0 0
        %752 = vmatprep.subr.bf16.mxu0 0
        %753 = vmatpush1.bf16.msra.mxu0 0
        %754 = vmatprep.subr.bf16.mxu0 0
        %755 = vmatpush1.bf16.msra.mxu0 0
        %756 = vmatprep.subr.bf16.mxu0 0
        %757 = vmatpush1.bf16.msra.mxu0 0
        %758 = vmatprep.subr.bf16.mxu0 0
        %759 = vmatpush1.bf16.msra.mxu0 0
        %760 = vmatprep.subr.bf16.mxu0 0
        %761 = vmatpush1.bf16.msra.mxu0 0
        %762 = vmatprep.subr.bf16.mxu0 0
        %763 = vmatpush1.bf16.msra.mxu0 0
        %764 = vmatprep.subr.bf16.mxu0 0
        %765 = vmatpush1.bf16.msra.mxu0 0
        %766 = vmatprep.mubr.bf16.mxu0 0
        %767 = vmatmul.mubr.bf16.gmra.mrb[0].mxu0 %v432
        %v768 = vpop.f32.mrb[0].mxu0
        %v769 = vadd.f32 0.0, %v768
        %v770 = vpop.f32.mrb[0].mxu0
        %v771 = vpop.f32.mrb[0].mxu0
        %v772 = vadd.f32 0.0, %v771
        %v773 = vpop.f32.mrb[0].mxu0
        %774 = vmatprep.mubr.bf16.mxu0 0
        %775 = vmatmul.mubr.bf16.gmra.mrb[0].mxu0 %v433
        %v776 = vpop.f32.mrb[0].mxu0
        %v777 = vadd.f32 0.0, %v776
        %v778 = vpop.f32.mrb[0].mxu0
        %v779 = vpop.f32.mrb[0].mxu0
        %v780 = vadd.f32 0.0, %v779
        %v781 = vpop.f32.mrb[0].mxu0
        %782 = vdwg.mxu0
        %v783 = vadd.f32 %v665, %v769
        %v784 = vadd.f32 %v666, %v772
        %v785 = vadd.f32 %v667, %v777
        %v786 = vadd.f32 %v668, %v780
        %v787 = vpack.c.bf16 %v784, %v783
        %v788 = vpack.c.bf16 %v786, %v785
        %v789 = vld [vmem:[#allocation7] sm:$0x1]
        %v791 = vpack.i.b16 %v789, %v789
        %v793 = vlaneseq
        %v794 = vshrl.u32 %v793, 7
        %v795 = vsub.s32 0, %v794
        %v796 = vrot.slane %v791, %v795
        %v797 = vadd.bf16 %v787, %v796
        %v798 = vadd.bf16 %v788, %v796
        %v799 = vmax.bf16 %v797, 0
        %v800 = vmax.bf16 %v798, 0
        %v801 = vmul.bf16 %v799, %v402
        %v802 = vmul.bf16 %v800, %v403
        %v803 = vld [vmem:[#allocation8] sm:$0xf]
        %v804 = vld [vmem:[#allocation8 + $0x4] sm:$0xf]
        %v805 = vld [vmem:[#allocation8 + $0x8] sm:$0xf]
        %v806 = vld [vmem:[#allocation8 + $0xc] sm:$0xf]
        %v807 = vld [vmem:[#allocation8 + $0x10] sm:$0xf]
        %v808 = vld [vmem:[#allocation8 + $0x14] sm:$0xf]
        %v809 = vld [vmem:[#allocation8 + $0x18] sm:$0xf]
        %v810 = vld [vmem:[#allocation8 + $0x1c] sm:$0xf]
        %v811 = vld [vmem:[#allocation8 + $0x20] sm:$0xf]
        %v812 = vld [vmem:[#allocation8 + $0x24] sm:$0xf]
        %v813 = vld [vmem:[#allocation8 + $0x28] sm:$0xf]
        %v814 = vld [vmem:[#allocation8 + $0x2c] sm:$0xf]
        %v815 = vld [vmem:[#allocation8 + $0x30] sm:$0xf]
        %v816 = vld [vmem:[#allocation8 + $0x34] sm:$0xf]
        %v817 = vld [vmem:[#allocation8 + $0x38] sm:$0xf]
        %v818 = vld [vmem:[#allocation8 + $0x3c] sm:$0xf]
        %v835 = vunpack.c.l.b16 %v803
        %v836 = vunpack.c.l.b16 %v804
        %v837 = vunpack.c.l.b16 %v805
        %v838 = vunpack.c.l.b16 %v806
        %v839 = vunpack.c.l.b16 %v807
        %v840 = vunpack.c.l.b16 %v808
        %v841 = vunpack.c.l.b16 %v809
        %v842 = vunpack.c.l.b16 %v810
        %v843 = vunpack.c.l.b16 %v811
        %v844 = vunpack.c.l.b16 %v812
        %v845 = vunpack.c.l.b16 %v813
        %v846 = vunpack.c.l.b16 %v814
        %v847 = vunpack.c.l.b16 %v815
        %v848 = vunpack.c.l.b16 %v816
        %v849 = vunpack.c.l.b16 %v817
        %v850 = vunpack.c.l.b16 %v818
        %v851 = vpack.c.b16 %v836, %v835
        %v852 = vpack.c.b16 %v838, %v837
        %v853 = vpack.c.b16 %v840, %v839
        %v854 = vpack.c.b16 %v842, %v841
        %v855 = vpack.c.b16 %v844, %v843
        %v856 = vpack.c.b16 %v846, %v845
        %v857 = vpack.c.b16 %v848, %v847
        %v858 = vpack.c.b16 %v850, %v849
        %867 = vmatprep.subr.bf16.mxu0 0
        %868 = vmatpush1.bf16.msra.mxu0 %v851
        %869 = vmatprep.subr.bf16.mxu0 0
        %870 = vmatpush1.bf16.msra.mxu0 %v852
        %871 = vmatprep.subr.bf16.mxu0 0
        %872 = vmatpush1.bf16.msra.mxu0 %v853
        %873 = vmatprep.subr.bf16.mxu0 0
        %874 = vmatpush1.bf16.msra.mxu0 %v854
        %875 = vmatprep.subr.bf16.mxu0 0
        %876 = vmatpush1.bf16.msra.mxu0 %v855
        %877 = vmatprep.subr.bf16.mxu0 0
        %878 = vmatpush1.bf16.msra.mxu0 %v856
        %879 = vmatprep.subr.bf16.mxu0 0
        %880 = vmatpush1.bf16.msra.mxu0 %v857
        %881 = vmatprep.subr.bf16.mxu0 0
        %882 = vmatpush1.bf16.msra.mxu0 %v858
        %883 = vmatprep.subr.bf16.mxu0 0
        %884 = vmatpush1.bf16.msra.mxu0 0
        %885 = vmatprep.subr.bf16.mxu0 0
        %886 = vmatpush1.bf16.msra.mxu0 0
        %887 = vmatprep.subr.bf16.mxu0 0
        %888 = vmatpush1.bf16.msra.mxu0 0
        %889 = vmatprep.subr.bf16.mxu0 0
        %890 = vmatpush1.bf16.msra.mxu0 0
        %891 = vmatprep.subr.bf16.mxu0 0
        %892 = vmatpush1.bf16.msra.mxu0 0
        %893 = vmatprep.subr.bf16.mxu0 0
        %894 = vmatpush1.bf16.msra.mxu0 0
        %895 = vmatprep.subr.bf16.mxu0 0
        %896 = vmatpush1.bf16.msra.mxu0 0
        %897 = vmatprep.subr.bf16.mxu0 0
        %898 = vmatpush1.bf16.msra.mxu0 0
        %899 = vmatprep.mubr.bf16.mxu0 0
        %900 = vmatmul.mubr.bf16.gmra.mrb[0].mxu0 %v801
        %v901 = vpop.f32.mrb[0].mxu0
        %v902 = vadd.f32 0.0, %v901
        %v903 = vpop.f32.mrb[0].mxu0
        %v904 = vpop.f32.mrb[0].mxu0
        %v905 = vadd.f32 0.0, %v904
        %v906 = vpop.f32.mrb[0].mxu0
        %907 = vmatprep.mubr.bf16.mxu0 0
        %908 = vmatmul.mubr.bf16.gmra.mrb[0].mxu0 %v802
        %v909 = vpop.f32.mrb[0].mxu0
        %v910 = vadd.f32 0.0, %v909
        %v911 = vpop.f32.mrb[0].mxu0
        %v912 = vpop.f32.mrb[0].mxu0
        %v913 = vadd.f32 0.0, %v912
        %v914 = vpop.f32.mrb[0].mxu0
        %915 = vdwg.mxu0
        %v916 = vrot.slane %v902, 6
        %v917 = vrot.slane %v905, 6
        %v918 = vrot.slane %v910, 6
        %v919 = vrot.slane %v913, 6
        %v920 = vsel %vm537, %v918, %v919
        %v921 = vsel %vm537, %v917, %v918
        %v922 = vsel %vm537, %v916, %v917
        %v923 = vsel %vm537, %v919, %v916
        %s924 = scalar_lea.vmem [#allocation8], 64
        %v925 = vld [vmem:[%s924] sm:$0xf]
        %v926 = vld [vmem:[%s924 + $0x4] sm:$0xf]
        %v927 = vld [vmem:[%s924 + $0x8] sm:$0xf]
        %v928 = vld [vmem:[%s924 + $0xc] sm:$0xf]
        %v929 = vld [vmem:[%s924 + $0x10] sm:$0xf]
        %v930 = vld [vmem:[%s924 + $0x14] sm:$0xf]
        %v931 = vld [vmem:[%s924 + $0x18] sm:$0xf]
        %v932 = vld [vmem:[%s924 + $0x1c] sm:$0xf]
        %v933 = vld [vmem:[%s924 + $0x20] sm:$0xf]
        %v934 = vld [vmem:[%s924 + $0x24] sm:$0xf]
        %v935 = vld [vmem:[%s924 + $0x28] sm:$0xf]
        %v936 = vld [vmem:[%s924 + $0x2c] sm:$0xf]
        %v937 = vld [vmem:[%s924 + $0x30] sm:$0xf]
        %v938 = vld [vmem:[%s924 + $0x34] sm:$0xf]
        %v939 = vld [vmem:[%s924 + $0x38] sm:$0xf]
        %v940 = vld [vmem:[%s924 + $0x3c] sm:$0xf]
        %v957 = vunpack.c.l.b16 %v925
        %v958 = vunpack.c.l.b16 %v926
        %v959 = vunpack.c.l.b16 %v927
        %v960 = vunpack.c.l.b16 %v928
        %v961 = vunpack.c.l.b16 %v929
        %v962 = vunpack.c.l.b16 %v930
        %v963 = vunpack.c.l.b16 %v931
        %v964 = vunpack.c.l.b16 %v932
        %v965 = vunpack.c.l.b16 %v933
        %v966 = vunpack.c.l.b16 %v934
        %v967 = vunpack.c.l.b16 %v935
        %v968 = vunpack.c.l.b16 %v936
        %v969 = vunpack.c.l.b16 %v937
        %v970 = vunpack.c.l.b16 %v938
        %v971 = vunpack.c.l.b16 %v939
        %v972 = vunpack.c.l.b16 %v940
        %v973 = vpack.c.b16 %v958, %v957
        %v974 = vpack.c.b16 %v960, %v959
        %v975 = vpack.c.b16 %v962, %v961
        %v976 = vpack.c.b16 %v964, %v963
        %v977 = vpack.c.b16 %v966, %v965
        %v978 = vpack.c.b16 %v968, %v967
        %v979 = vpack.c.b16 %v970, %v969
        %v980 = vpack.c.b16 %v972, %v971
        %989 = vmatprep.subr.bf16.mxu0 0
        %990 = vmatpush1.bf16.msra.mxu0 %v973
        %991 = vmatprep.subr.bf16.mxu0 0
        %992 = vmatpush1.bf16.msra.mxu0 %v974
        %993 = vmatprep.subr.bf16.mxu0 0
        %994 = vmatpush1.bf16.msra.mxu0 %v975
        %995 = vmatprep.subr.bf16.mxu0 0
        %996 = vmatpush1.bf16.msra.mxu0 %v976
        %997 = vmatprep.subr.bf16.mxu0 0
        %998 = vmatpush1.bf16.msra.mxu0 %v977
        %999 = vmatprep.subr.bf16.mxu0 0
        %1000 = vmatpush1.bf16.msra.mxu0 %v978
        %1001 = vmatprep.subr.bf16.mxu0 0
        %1002 = vmatpush1.bf16.msra.mxu0 %v979
        %1003 = vmatprep.subr.bf16.mxu0 0
        %1004 = vmatpush1.bf16.msra.mxu0 %v980
        %1005 = vmatprep.subr.bf16.mxu0 0
        %1006 = vmatpush1.bf16.msra.mxu0 0
        %1007 = vmatprep.subr.bf16.mxu0 0
        %1008 = vmatpush1.bf16.msra.mxu0 0
        %1009 = vmatprep.subr.bf16.mxu0 0
        %1010 = vmatpush1.bf16.msra.mxu0 0
        %1011 = vmatprep.subr.bf16.mxu0 0
        %1012 = vmatpush1.bf16.msra.mxu0 0
        %1013 = vmatprep.subr.bf16.mxu0 0
        %1014 = vmatpush1.bf16.msra.mxu0 0
        %1015 = vmatprep.subr.bf16.mxu0 0
        %1016 = vmatpush1.bf16.msra.mxu0 0
        %1017 = vmatprep.subr.bf16.mxu0 0
        %1018 = vmatpush1.bf16.msra.mxu0 0
        %1019 = vmatprep.subr.bf16.mxu0 0
        %1020 = vmatpush1.bf16.msra.mxu0 0
        %1021 = vmatprep.mubr.bf16.mxu0 0
        %1022 = vmatmul.mubr.bf16.gmra.mrb[0].mxu0 %v801
        %v1023 = vpop.f32.mrb[0].mxu0
        %v1024 = vadd.f32 0.0, %v1023
        %v1025 = vpop.f32.mrb[0].mxu0
        %v1026 = vpop.f32.mrb[0].mxu0
        %v1027 = vadd.f32 0.0, %v1026
        %v1028 = vpop.f32.mrb[0].mxu0
        %1029 = vmatprep.mubr.bf16.mxu0 0
        %1030 = vmatmul.mubr.bf16.gmra.mrb[0].mxu0 %v802
        %v1031 = vpop.f32.mrb[0].mxu0
        %v1032 = vadd.f32 0.0, %v1031
        %v1033 = vpop.f32.mrb[0].mxu0
        %v1034 = vpop.f32.mrb[0].mxu0
        %v1035 = vadd.f32 0.0, %v1034
        %v1036 = vpop.f32.mrb[0].mxu0
        %1037 = vdwg.mxu0
        %v1038 = vrot.slane %v1024, 7
        %v1039 = vrot.slane %v1027, 7
        %v1040 = vrot.slane %v1032, 7
        %v1041 = vrot.slane %v1035, 7
        %v1042 = vsel %vm660, %v1040, %v1041
        %v1043 = vsel %vm660, %v1039, %v1040
        %v1044 = vsel %vm660, %v1038, %v1039
        %v1045 = vsel %vm660, %v1041, %v1038
        %v1046 = vadd.f32 %v923, %v1045
        %v1047 = vadd.f32 %v922, %v1044
        %v1048 = vadd.f32 %v921, %v1043
        %v1049 = vadd.f32 %v920, %v1042
        %s1050 = scalar_lea.vmem [#allocation8], 128
        %v1051 = vld [vmem:[%s1050] sm:$0xf]
        %v1052 = vld [vmem:[%s1050 + $0x4] sm:$0xf]
        %v1053 = vld [vmem:[%s1050 + $0x8] sm:$0xf]
        %v1054 = vld [vmem:[%s1050 + $0xc] sm:$0xf]
        %v1055 = vld [vmem:[%s1050 + $0x10] sm:$0xf]
        %v1056 = vld [vmem:[%s1050 + $0x14] sm:$0xf]
        %v1057 = vld [vmem:[%s1050 + $0x18] sm:$0xf]
        %v1058 = vld [vmem:[%s1050 + $0x1c] sm:$0xf]
        %v1059 = vld [vmem:[%s1050 + $0x20] sm:$0xf]
        %v1060 = vld [vmem:[%s1050 + $0x24] sm:$0xf]
        %v1061 = vld [vmem:[%s1050 + $0x28] sm:$0xf]
        %v1062 = vld [vmem:[%s1050 + $0x2c] sm:$0xf]
        %v1063 = vld [vmem:[%s1050 + $0x30] sm:$0xf]
        %v1064 = vld [vmem:[%s1050 + $0x34] sm:$0xf]
        %v1065 = vld [vmem:[%s1050 + $0x38] sm:$0xf]
        %v1066 = vld [vmem:[%s1050 + $0x3c] sm:$0xf]
        %v1083 = vunpack.c.l.b16 %v1051
        %v1084 = vunpack.c.l.b16 %v1052
        %v1085 = vunpack.c.l.b16 %v1053
        %v1086 = vunpack.c.l.b16 %v1054
        %v1087 = vunpack.c.l.b16 %v1055
        %v1088 = vunpack.c.l.b16 %v1056
        %v1089 = vunpack.c.l.b16 %v1057
        %v1090 = vunpack.c.l.b16 %v1058
        %v1091 = vunpack.c.l.b16 %v1059
        %v1092 = vunpack.c.l.b16 %v1060
        %v1093 = vunpack.c.l.b16 %v1061
        %v1094 = vunpack.c.l.b16 %v1062
        %v1095 = vunpack.c.l.b16 %v1063
        %v1096 = vunpack.c.l.b16 %v1064
        %v1097 = vunpack.c.l.b16 %v1065
        %v1098 = vunpack.c.l.b16 %v1066
        %v1099 = vpack.c.b16 %v1084, %v1083
        %v1100 = vpack.c.b16 %v1086, %v1085
        %v1101 = vpack.c.b16 %v1088, %v1087
        %v1102 = vpack.c.b16 %v1090, %v1089
        %v1103 = vpack.c.b16 %v1092, %v1091
        %v1104 = vpack.c.b16 %v1094, %v1093
        %v1105 = vpack.c.b16 %v1096, %v1095
        %v1106 = vpack.c.b16 %v1098, %v1097
        %1115 = vmatprep.subr.bf16.mxu0 0
        %1116 = vmatpush1.bf16.msra.mxu0 %v1099
        %1117 = vmatprep.subr.bf16.mxu0 0
        %1118 = vmatpush1.bf16.msra.mxu0 %v1100
        %1119 = vmatprep.subr.bf16.mxu0 0
        %1120 = vmatpush1.bf16.msra.mxu0 %v1101
        %1121 = vmatprep.subr.bf16.mxu0 0
        %1122 = vmatpush1.bf16.msra.mxu0 %v1102
        %1123 = vmatprep.subr.bf16.mxu0 0
        %1124 = vmatpush1.bf16.msra.mxu0 %v1103
        %1125 = vmatprep.subr.bf16.mxu0 0
        %1126 = vmatpush1.bf16.msra.mxu0 %v1104
        %1127 = vmatprep.subr.bf16.mxu0 0
        %1128 = vmatpush1.bf16.msra.mxu0 %v1105
        %1129 = vmatprep.subr.bf16.mxu0 0
        %1130 = vmatpush1.bf16.msra.mxu0 %v1106
        %1131 = vmatprep.subr.bf16.mxu0 0
        %1132 = vmatpush1.bf16.msra.mxu0 0
        %1133 = vmatprep.subr.bf16.mxu0 0
        %1134 = vmatpush1.bf16.msra.mxu0 0
        %1135 = vmatprep.subr.bf16.mxu0 0
        %1136 = vmatpush1.bf16.msra.mxu0 0
        %1137 = vmatprep.subr.bf16.mxu0 0
        %1138 = vmatpush1.bf16.msra.mxu0 0
        %1139 = vmatprep.subr.bf16.mxu0 0
        %1140 = vmatpush1.bf16.msra.mxu0 0
        %1141 = vmatprep.subr.bf16.mxu0 0
        %1142 = vmatpush1.bf16.msra.mxu0 0
        %1143 = vmatprep.subr.bf16.mxu0 0
        %1144 = vmatpush1.bf16.msra.mxu0 0
        %1145 = vmatprep.subr.bf16.mxu0 0
        %1146 = vmatpush1.bf16.msra.mxu0 0
        %1147 = vmatprep.mubr.bf16.mxu0 0
        %1148 = vmatmul.mubr.bf16.gmra.mrb[0].mxu0 %v801
        %v1149 = vpop.f32.mrb[0].mxu0
        %v1150 = vadd.f32 0.0, %v1149
        %v1151 = vpop.f32.mrb[0].mxu0
        %v1152 = vpop.f32.mrb[0].mxu0
        %v1153 = vadd.f32 0.0, %v1152
        %v1154 = vpop.f32.mrb[0].mxu0
        %1155 = vmatprep.mubr.bf16.mxu0 0
        %1156 = vmatmul.mubr.bf16.gmra.mrb[0].mxu0 %v802
        %v1157 = vpop.f32.mrb[0].mxu0
        %v1158 = vadd.f32 0.0, %v1157
        %v1159 = vpop.f32.mrb[0].mxu0
        %v1160 = vpop.f32.mrb[0].mxu0
        %v1161 = vadd.f32 0.0, %v1160
        %v1162 = vpop.f32.mrb[0].mxu0
        %1163 = vdwg.mxu0
        %v1164 = vadd.f32 %v1046, %v1150
        %v1165 = vadd.f32 %v1047, %v1153
        %v1166 = vadd.f32 %v1048, %v1158
        %v1167 = vadd.f32 %v1049, %v1161
        %v1168 = vpack.c.bf16 %v1165, %v1164
        %v1169 = vpack.c.bf16 %v1167, %v1166
        %v1170 = vld [vmem:[#allocation10] sm:$0x1]
        %v1172 = vpack.i.b16 %v1170, %v1170
        %v1174 = vlaneseq
        %v1175 = vshrl.u32 %v1174, 7
        %v1176 = vsub.s32 0, %v1175
        %v1177 = vrot.slane %v1172, %v1176
        %v1178 = vadd.bf16 %v1168, %v1177
        %v1179 = vadd.bf16 %v1169, %v1177
        %v1180 = vmax.bf16 %v1178, 0
        %v1181 = vmax.bf16 %v1179, 0
        %v1182 = vld [vmem:[#allocation11] sm:$0xf]
        %v1183 = vld [vmem:[#allocation11 + $0x4] sm:$0xf]
        %v1184 = vld [vmem:[#allocation11 + $0x8] sm:$0xf]
        %v1185 = vld [vmem:[#allocation11 + $0xc] sm:$0xf]
        %v1186 = vld [vmem:[#allocation11 + $0x10] sm:$0xf]
        %v1187 = vld [vmem:[#allocation11 + $0x14] sm:$0xf]
        %v1188 = vld [vmem:[#allocation11 + $0x18] sm:$0xf]
        %v1189 = vld [vmem:[#allocation11 + $0x1c] sm:$0xf]
        %v1190 = vld [vmem:[#allocation11 + $0x20] sm:$0xf]
        %v1191 = vld [vmem:[#allocation11 + $0x24] sm:$0xf]
        %v1192 = vld [vmem:[#allocation11 + $0x28] sm:$0xf]
        %v1193 = vld [vmem:[#allocation11 + $0x2c] sm:$0xf]
        %v1194 = vld [vmem:[#allocation11 + $0x30] sm:$0xf]
        %v1195 = vld [vmem:[#allocation11 + $0x34] sm:$0xf]
        %v1196 = vld [vmem:[#allocation11 + $0x38] sm:$0xf]
        %v1197 = vld [vmem:[#allocation11 + $0x3c] sm:$0xf]
        %v1214 = vunpack.c.l.b16 %v1182
        %v1215 = vunpack.c.l.b16 %v1183
        %v1216 = vunpack.c.l.b16 %v1184
        %v1217 = vunpack.c.l.b16 %v1185
        %v1218 = vunpack.c.l.b16 %v1186
        %v1219 = vunpack.c.l.b16 %v1187
        %v1220 = vunpack.c.l.b16 %v1188
        %v1221 = vunpack.c.l.b16 %v1189
        %v1222 = vunpack.c.l.b16 %v1190
        %v1223 = vunpack.c.l.b16 %v1191
        %v1224 = vunpack.c.l.b16 %v1192
        %v1225 = vunpack.c.l.b16 %v1193
        %v1226 = vunpack.c.l.b16 %v1194
        %v1227 = vunpack.c.l.b16 %v1195
        %v1228 = vunpack.c.l.b16 %v1196
        %v1229 = vunpack.c.l.b16 %v1197
        %v1230 = vpack.c.b16 %v1215, %v1214
        %v1231 = vpack.c.b16 %v1217, %v1216
        %v1232 = vpack.c.b16 %v1219, %v1218
        %v1233 = vpack.c.b16 %v1221, %v1220
        %v1234 = vpack.c.b16 %v1223, %v1222
        %v1235 = vpack.c.b16 %v1225, %v1224
        %v1236 = vpack.c.b16 %v1227, %v1226
        %v1237 = vpack.c.b16 %v1229, %v1228
        %1246 = vmatprep.subr.bf16.mxu0 0
        %1247 = vmatpush1.bf16.msra.mxu0 %v1230
        %1248 = vmatprep.subr.bf16.mxu0 0
        %1249 = vmatpush1.bf16.msra.mxu0 %v1231
        %1250 = vmatprep.subr.bf16.mxu0 0
        %1251 = vmatpush1.bf16.msra.mxu0 %v1232
        %1252 = vmatprep.subr.bf16.mxu0 0
        %1253 = vmatpush1.bf16.msra.mxu0 %v1233
        %1254 = vmatprep.subr.bf16.mxu0 0
        %1255 = vmatpush1.bf16.msra.mxu0 %v1234
        %1256 = vmatprep.subr.bf16.mxu0 0
        %1257 = vmatpush1.bf16.msra.mxu0 %v1235
        %1258 = vmatprep.subr.bf16.mxu0 0
        %1259 = vmatpush1.bf16.msra.mxu0 %v1236
        %1260 = vmatprep.subr.bf16.mxu0 0
        %1261 = vmatpush1.bf16.msra.mxu0 %v1237
        %1262 = vmatprep.subr.bf16.mxu0 0
        %1263 = vmatpush1.bf16.msra.mxu0 0
        %1264 = vmatprep.subr.bf16.mxu0 0
        %1265 = vmatpush1.bf16.msra.mxu0 0
        %1266 = vmatprep.subr.bf16.mxu0 0
        %1267 = vmatpush1.bf16.msra.mxu0 0
        %1268 = vmatprep.subr.bf16.mxu0 0
        %1269 = vmatpush1.bf16.msra.mxu0 0
        %1270 = vmatprep.subr.bf16.mxu0 0
        %1271 = vmatpush1.bf16.msra.mxu0 0
        %1272 = vmatprep.subr.bf16.mxu0 0
        %1273 = vmatpush1.bf16.msra.mxu0 0
        %1274 = vmatprep.subr.bf16.mxu0 0
        %1275 = vmatpush1.bf16.msra.mxu0 0
        %1276 = vmatprep.subr.bf16.mxu0 0
        %1277 = vmatpush1.bf16.msra.mxu0 0
        %1278 = vmatprep.mubr.bf16.mxu0 0
        %1279 = vmatmul.mubr.bf16.gmra.mrb[0].mxu0 %v432
        %v1280 = vpop.f32.mrb[0].mxu0
        %v1281 = vadd.f32 0.0, %v1280
        %v1282 = vpop.f32.mrb[0].mxu0
        %v1283 = vpop.f32.mrb[0].mxu0
        %v1284 = vadd.f32 0.0, %v1283
        %v1285 = vpop.f32.mrb[0].mxu0
        %1286 = vmatprep.mubr.bf16.mxu0 0
        %1287 = vmatmul.mubr.bf16.gmra.mrb[0].mxu0 %v433
        %v1288 = vpop.f32.mrb[0].mxu0
        %v1289 = vadd.f32 0.0, %v1288
        %v1290 = vpop.f32.mrb[0].mxu0
        %v1291 = vpop.f32.mrb[0].mxu0
        %v1292 = vadd.f32 0.0, %v1291
        %v1293 = vpop.f32.mrb[0].mxu0
        %1294 = vdwg.mxu0
        %v1295 = vpack.c.bf16 %v1284, %v1281
        %v1296 = vpack.c.bf16 %v1292, %v1289
        %v1297 = vld [vmem:[#allocation13] sm:$0x1]
        %v1299 = vpack.i.b16 %v1297, %v1297
        %v1301 = vlaneseq
        %v1302 = vshrl.u32 %v1301, 7
        %v1303 = vsub.s32 0, %v1302
        %v1304 = vrot.slane %v1299, %v1303
        %v1305 = vadd.bf16 %v1295, %v1304
        %v1306 = vadd.bf16 %v1296, %v1304
        %v1307 = vadd.bf16 %v1180, %v1305
        %v1308 = vadd.bf16 %v1181, %v1306
        %v1309 = vmax.bf16 %v1307, 0
        %v1310 = vmax.bf16 %v1308, 0
        %v1311 = vmul.bf16 %v1309, %v402
        %v1312 = vmul.bf16 %v1310, %v403
        %s1313 = scalar_lea.vmem [#allocation5], 192
        %v1314 = vld [vmem:[%s1313] sm:$0xf]
        %v1315 = vld [vmem:[%s1313 + $0x4] sm:$0xf]
        %v1316 = vld [vmem:[%s1313 + $0x8] sm:$0xf]
        %v1317 = vld [vmem:[%s1313 + $0xc] sm:$0xf]
        %v1318 = vld [vmem:[%s1313 + $0x10] sm:$0xf]
        %v1319 = vld [vmem:[%s1313 + $0x14] sm:$0xf]
        %v1320 = vld [vmem:[%s1313 + $0x18] sm:$0xf]
        %v1321 = vld [vmem:[%s1313 + $0x1c] sm:$0xf]
        %v1322 = vld [vmem:[%s1313 + $0x20] sm:$0xf]
        %v1323 = vld [vmem:[%s1313 + $0x24] sm:$0xf]
        %v1324 = vld [vmem:[%s1313 + $0x28] sm:$0xf]
        %v1325 = vld [vmem:[%s1313 + $0x2c] sm:$0xf]
        %v1326 = vld [vmem:[%s1313 + $0x30] sm:$0xf]
        %v1327 = vld [vmem:[%s1313 + $0x34] sm:$0xf]
        %v1328 = vld [vmem:[%s1313 + $0x38] sm:$0xf]
        %v1329 = vld [vmem:[%s1313 + $0x3c] sm:$0xf]
        %v1346 = vunpack.c.l.b16 %v1314
        %v1347 = vunpack.c.l.b16 %v1315
        %v1348 = vunpack.c.l.b16 %v1316
        %v1349 = vunpack.c.l.b16 %v1317
        %v1350 = vunpack.c.l.b16 %v1318
        %v1351 = vunpack.c.l.b16 %v1319
        %v1352 = vunpack.c.l.b16 %v1320
        %v1353 = vunpack.c.l.b16 %v1321
        %v1354 = vunpack.c.l.b16 %v1322
        %v1355 = vunpack.c.l.b16 %v1323
        %v1356 = vunpack.c.l.b16 %v1324
        %v1357 = vunpack.c.l.b16 %v1325
        %v1358 = vunpack.c.l.b16 %v1326
        %v1359 = vunpack.c.l.b16 %v1327
        %v1360 = vunpack.c.l.b16 %v1328
        %v1361 = vunpack.c.l.b16 %v1329
        %v1362 = vpack.c.b16 %v1347, %v1346
        %v1363 = vpack.c.b16 %v1349, %v1348
        %v1364 = vpack.c.b16 %v1351, %v1350
        %v1365 = vpack.c.b16 %v1353, %v1352
        %v1366 = vpack.c.b16 %v1355, %v1354
        %v1367 = vpack.c.b16 %v1357, %v1356
        %v1368 = vpack.c.b16 %v1359, %v1358
        %v1369 = vpack.c.b16 %v1361, %v1360
        %1378 = vmatprep.subr.bf16.mxu0 0
        %1379 = vmatpush1.bf16.msra.mxu0 %v1362
        %1380 = vmatprep.subr.bf16.mxu0 0
        %1381 = vmatpush1.bf16.msra.mxu0 %v1363
        %1382 = vmatprep.subr.bf16.mxu0 0
        %1383 = vmatpush1.bf16.msra.mxu0 %v1364
        %1384 = vmatprep.subr.bf16.mxu0 0
        %1385 = vmatpush1.bf16.msra.mxu0 %v1365
        %1386 = vmatprep.subr.bf16.mxu0 0
        %1387 = vmatpush1.bf16.msra.mxu0 %v1366
        %1388 = vmatprep.subr.bf16.mxu0 0
        %1389 = vmatpush1.bf16.msra.mxu0 %v1367
        %1390 = vmatprep.subr.bf16.mxu0 0
        %1391 = vmatpush1.bf16.msra.mxu0 %v1368
        %1392 = vmatprep.subr.bf16.mxu0 0
        %1393 = vmatpush1.bf16.msra.mxu0 %v1369
        %1394 = vmatprep.subr.bf16.mxu0 0
        %1395 = vmatpush1.bf16.msra.mxu0 0
        %1396 = vmatprep.subr.bf16.mxu0 0
        %1397 = vmatpush1.bf16.msra.mxu0 0
        %1398 = vmatprep.subr.bf16.mxu0 0
        %1399 = vmatpush1.bf16.msra.mxu0 0
        %1400 = vmatprep.subr.bf16.mxu0 0
        %1401 = vmatpush1.bf16.msra.mxu0 0
        %1402 = vmatprep.subr.bf16.mxu0 0
        %1403 = vmatpush1.bf16.msra.mxu0 0
        %1404 = vmatprep.subr.bf16.mxu0 0
        %1405 = vmatpush1.bf16.msra.mxu0 0
        %1406 = vmatprep.subr.bf16.mxu0 0
        %1407 = vmatpush1.bf16.msra.mxu0 0
        %1408 = vmatprep.subr.bf16.mxu0 0
        %1409 = vmatpush1.bf16.msra.mxu0 0
        %1410 = vmatprep.mubr.bf16.mxu0 0
        %1411 = vmatmul.mubr.bf16.gmra.mrb[0].mxu0 %v1311
        %v1412 = vpop.f32.mrb[0].mxu0
        %v1413 = vadd.f32 0.0, %v1412
        %v1414 = vpop.f32.mrb[0].mxu0
        %v1415 = vpop.f32.mrb[0].mxu0
        %v1416 = vadd.f32 0.0, %v1415
        %v1417 = vpop.f32.mrb[0].mxu0
        %1418 = vmatprep.mubr.bf16.mxu0 0
        %1419 = vmatmul.mubr.bf16.gmra.mrb[0].mxu0 %v1312
        %v1420 = vpop.f32.mrb[0].mxu0
        %v1421 = vadd.f32 0.0, %v1420
        %v1422 = vpop.f32.mrb[0].mxu0
        %v1423 = vpop.f32.mrb[0].mxu0
        %v1424 = vadd.f32 0.0, %v1423
        %v1425 = vpop.f32.mrb[0].mxu0
        %1426 = vdwg.mxu0
        %v1427 = vrot.slane %v1413, 4
        %v1428 = vrot.slane %v1416, 4
        %v1429 = vrot.slane %v1421, 4
        %v1430 = vrot.slane %v1424, 4
        %vm1431 = vcmp.lt.s32.totalorder %v386, 4
        %v1432 = vsel %vm1431, %v1429, %v1430
        %v1433 = vsel %vm1431, %v1428, %v1429
        %v1434 = vsel %vm1431, %v1427, %v1428
        %v1435 = vsel %vm1431, %v1430, %v1427
        %s1436 = scalar_lea.vmem [#allocation5], 256
        %v1437 = vld [vmem:[%s1436] sm:$0xf]
        %v1438 = vld [vmem:[%s1436 + $0x4] sm:$0xf]
        %v1439 = vld [vmem:[%s1436 + $0x8] sm:$0xf]
        %v1440 = vld [vmem:[%s1436 + $0xc] sm:$0xf]
        %v1441 = vld [vmem:[%s1436 + $0x10] sm:$0xf]
        %v1442 = vld [vmem:[%s1436 + $0x14] sm:$0xf]
        %v1443 = vld [vmem:[%s1436 + $0x18] sm:$0xf]
        %v1444 = vld [vmem:[%s1436 + $0x1c] sm:$0xf]
        %v1445 = vld [vmem:[%s1436 + $0x20] sm:$0xf]
        %v1446 = vld [vmem:[%s1436 + $0x24] sm:$0xf]
        %v1447 = vld [vmem:[%s1436 + $0x28] sm:$0xf]
        %v1448 = vld [vmem:[%s1436 + $0x2c] sm:$0xf]
        %v1449 = vld [vmem:[%s1436 + $0x30] sm:$0xf]
        %v1450 = vld [vmem:[%s1436 + $0x34] sm:$0xf]
        %v1451 = vld [vmem:[%s1436 + $0x38] sm:$0xf]
        %v1452 = vld [vmem:[%s1436 + $0x3c] sm:$0xf]
        %v1469 = vunpack.c.l.b16 %v1437
        %v1470 = vunpack.c.l.b16 %v1438
        %v1471 = vunpack.c.l.b16 %v1439
        %v1472 = vunpack.c.l.b16 %v1440
        %v1473 = vunpack.c.l.b16 %v1441
        %v1474 = vunpack.c.l.b16 %v1442
        %v1475 = vunpack.c.l.b16 %v1443
        %v1476 = vunpack.c.l.b16 %v1444
        %v1477 = vunpack.c.l.b16 %v1445
        %v1478 = vunpack.c.l.b16 %v1446
        %v1479 = vunpack.c.l.b16 %v1447
        %v1480 = vunpack.c.l.b16 %v1448
        %v1481 = vunpack.c.l.b16 %v1449
        %v1482 = vunpack.c.l.b16 %v1450
        %v1483 = vunpack.c.l.b16 %v1451
        %v1484 = vunpack.c.l.b16 %v1452
        %v1485 = vpack.c.b16 %v1470, %v1469
        %v1486 = vpack.c.b16 %v1472, %v1471
        %v1487 = vpack.c.b16 %v1474, %v1473
        %v1488 = vpack.c.b16 %v1476, %v1475
        %v1489 = vpack.c.b16 %v1478, %v1477
        %v1490 = vpack.c.b16 %v1480, %v1479
        %v1491 = vpack.c.b16 %v1482, %v1481
        %v1492 = vpack.c.b16 %v1484, %v1483
        %1501 = vmatprep.subr.bf16.mxu0 0
        %1502 = vmatpush1.bf16.msra.mxu0 %v1485
        %1503 = vmatprep.subr.bf16.mxu0 0
        %1504 = vmatpush1.bf16.msra.mxu0 %v1486
        %1505 = vmatprep.subr.bf16.mxu0 0
        %1506 = vmatpush1.bf16.msra.mxu0 %v1487
        %1507 = vmatprep.subr.bf16.mxu0 0
        %1508 = vmatpush1.bf16.msra.mxu0 %v1488
        %1509 = vmatprep.subr.bf16.mxu0 0
        %1510 = vmatpush1.bf16.msra.mxu0 %v1489
        %1511 = vmatprep.subr.bf16.mxu0 0
        %1512 = vmatpush1.bf16.msra.mxu0 %v1490
        %1513 = vmatprep.subr.bf16.mxu0 0
        %1514 = vmatpush1.bf16.msra.mxu0 %v1491
        %1515 = vmatprep.subr.bf16.mxu0 0
        %1516 = vmatpush1.bf16.msra.mxu0 %v1492
        %1517 = vmatprep.subr.bf16.mxu0 0
        %1518 = vmatpush1.bf16.msra.mxu0 0
        %1519 = vmatprep.subr.bf16.mxu0 0
        %1520 = vmatpush1.bf16.msra.mxu0 0
        %1521 = vmatprep.subr.bf16.mxu0 0
        %1522 = vmatpush1.bf16.msra.mxu0 0
        %1523 = vmatprep.subr.bf16.mxu0 0
        %1524 = vmatpush1.bf16.msra.mxu0 0
        %1525 = vmatprep.subr.bf16.mxu0 0
        %1526 = vmatpush1.bf16.msra.mxu0 0
        %1527 = vmatprep.subr.bf16.mxu0 0
        %1528 = vmatpush1.bf16.msra.mxu0 0
        %1529 = vmatprep.subr.bf16.mxu0 0
        %1530 = vmatpush1.bf16.msra.mxu0 0
        %1531 = vmatprep.subr.bf16.mxu0 0
        %1532 = vmatpush1.bf16.msra.mxu0 0
        %1533 = vmatprep.mubr.bf16.mxu0 0
        %1534 = vmatmul.mubr.bf16.gmra.mrb[0].mxu0 %v1311
        %v1535 = vpop.f32.mrb[0].mxu0
        %v1536 = vadd.f32 0.0, %v1535
        %v1537 = vpop.f32.mrb[0].mxu0
        %v1538 = vpop.f32.mrb[0].mxu0
        %v1539 = vadd.f32 0.0, %v1538
        %v1540 = vpop.f32.mrb[0].mxu0
        %1541 = vmatprep.mubr.bf16.mxu0 0
        %1542 = vmatmul.mubr.bf16.gmra.mrb[0].mxu0 %v1312
        %v1543 = vpop.f32.mrb[0].mxu0
        %v1544 = vadd.f32 0.0, %v1543
        %v1545 = vpop.f32.mrb[0].mxu0
        %v1546 = vpop.f32.mrb[0].mxu0
        %v1547 = vadd.f32 0.0, %v1546
        %v1548 = vpop.f32.mrb[0].mxu0
        %1549 = vdwg.mxu0
        %v1550 = vrot.slane %v1536, 6
        %v1551 = vrot.slane %v1539, 6
        %v1552 = vrot.slane %v1544, 6
        %v1553 = vrot.slane %v1547, 6
        %v1554 = vsel %vm537, %v1552, %v1553
        %v1555 = vsel %vm537, %v1551, %v1552
        %v1556 = vsel %vm537, %v1550, %v1551
        %v1557 = vsel %vm537, %v1553, %v1550
        %v1558 = vadd.f32 %v1435, %v1557
        %v1559 = vadd.f32 %v1434, %v1556
        %v1560 = vadd.f32 %v1433, %v1555
        %v1561 = vadd.f32 %v1432, %v1554
        %s1562 = scalar_lea.vmem [#allocation5], 320
        %v1563 = vld [vmem:[%s1562] sm:$0xf]
        %v1564 = vld [vmem:[%s1562 + $0x4] sm:$0xf]
        %v1565 = vld [vmem:[%s1562 + $0x8] sm:$0xf]
        %v1566 = vld [vmem:[%s1562 + $0xc] sm:$0xf]
        %v1567 = vld [vmem:[%s1562 + $0x10] sm:$0xf]
        %v1568 = vld [vmem:[%s1562 + $0x14] sm:$0xf]
        %v1569 = vld [vmem:[%s1562 + $0x18] sm:$0xf]
        %v1570 = vld [vmem:[%s1562 + $0x1c] sm:$0xf]
        %v1571 = vld [vmem:[%s1562 + $0x20] sm:$0xf]
        %v1572 = vld [vmem:[%s1562 + $0x24] sm:$0xf]
        %v1573 = vld [vmem:[%s1562 + $0x28] sm:$0xf]
        %v1574 = vld [vmem:[%s1562 + $0x2c] sm:$0xf]
        %v1575 = vld [vmem:[%s1562 + $0x30] sm:$0xf]
        %v1576 = vld [vmem:[%s1562 + $0x34] sm:$0xf]
        %v1577 = vld [vmem:[%s1562 + $0x38] sm:$0xf]
        %v1578 = vld [vmem:[%s1562 + $0x3c] sm:$0xf]
        %v1595 = vunpack.c.l.b16 %v1563
        %v1596 = vunpack.c.l.b16 %v1564
        %v1597 = vunpack.c.l.b16 %v1565
        %v1598 = vunpack.c.l.b16 %v1566
        %v1599 = vunpack.c.l.b16 %v1567
        %v1600 = vunpack.c.l.b16 %v1568
        %v1601 = vunpack.c.l.b16 %v1569
        %v1602 = vunpack.c.l.b16 %v1570
        %v1603 = vunpack.c.l.b16 %v1571
        %v1604 = vunpack.c.l.b16 %v1572
        %v1605 = vunpack.c.l.b16 %v1573
        %v1606 = vunpack.c.l.b16 %v1574
        %v1607 = vunpack.c.l.b16 %v1575
        %v1608 = vunpack.c.l.b16 %v1576
        %v1609 = vunpack.c.l.b16 %v1577
        %v1610 = vunpack.c.l.b16 %v1578
        %v1611 = vpack.c.b16 %v1596, %v1595
        %v1612 = vpack.c.b16 %v1598, %v1597
        %v1613 = vpack.c.b16 %v1600, %v1599
        %v1614 = vpack.c.b16 %v1602, %v1601
        %v1615 = vpack.c.b16 %v1604, %v1603
        %v1616 = vpack.c.b16 %v1606, %v1605
        %v1617 = vpack.c.b16 %v1608, %v1607
        %v1618 = vpack.c.b16 %v1610, %v1609
        %1627 = vmatprep.subr.bf16.mxu0 0
        %1628 = vmatpush1.bf16.msra.mxu0 %v1611
        %1629 = vmatprep.subr.bf16.mxu0 0
        %1630 = vmatpush1.bf16.msra.mxu0 %v1612
        %1631 = vmatprep.subr.bf16.mxu0 0
        %1632 = vmatpush1.bf16.msra.mxu0 %v1613
        %1633 = vmatprep.subr.bf16.mxu0 0
        %1634 = vmatpush1.bf16.msra.mxu0 %v1614
        %1635 = vmatprep.subr.bf16.mxu0 0
        %1636 = vmatpush1.bf16.msra.mxu0 %v1615
        %1637 = vmatprep.subr.bf16.mxu0 0
        %1638 = vmatpush1.bf16.msra.mxu0 %v1616
        %1639 = vmatprep.subr.bf16.mxu0 0
        %1640 = vmatpush1.bf16.msra.mxu0 %v1617
        %1641 = vmatprep.subr.bf16.mxu0 0
        %1642 = vmatpush1.bf16.msra.mxu0 %v1618
        %1643 = vmatprep.subr.bf16.mxu0 0
        %1644 = vmatpush1.bf16.msra.mxu0 0
        %1645 = vmatprep.subr.bf16.mxu0 0
        %1646 = vmatpush1.bf16.msra.mxu0 0
        %1647 = vmatprep.subr.bf16.mxu0 0
        %1648 = vmatpush1.bf16.msra.mxu0 0
        %1649 = vmatprep.subr.bf16.mxu0 0
        %1650 = vmatpush1.bf16.msra.mxu0 0
        %1651 = vmatprep.subr.bf16.mxu0 0
        %1652 = vmatpush1.bf16.msra.mxu0 0
        %1653 = vmatprep.subr.bf16.mxu0 0
        %1654 = vmatpush1.bf16.msra.mxu0 0
        %1655 = vmatprep.subr.bf16.mxu0 0
        %1656 = vmatpush1.bf16.msra.mxu0 0
        %1657 = vmatprep.subr.bf16.mxu0 0
        %1658 = vmatpush1.bf16.msra.mxu0 0
        %1659 = vmatprep.mubr.bf16.mxu0 0
        %1660 = vmatmul.mubr.bf16.gmra.mrb[0].mxu0 %v1311
        %v1661 = vpop.f32.mrb[0].mxu0
        %v1662 = vadd.f32 0.0, %v1661
        %v1663 = vpop.f32.mrb[0].mxu0
        %v1664 = vpop.f32.mrb[0].mxu0
        %v1665 = vadd.f32 0.0, %v1664
        %v1666 = vpop.f32.mrb[0].mxu0
        %1667 = vmatprep.mubr.bf16.mxu0 0
        %1668 = vmatmul.mubr.bf16.gmra.mrb[0].mxu0 %v1312
        %v1669 = vpop.f32.mrb[0].mxu0
        %v1670 = vadd.f32 0.0, %v1669
        %v1671 = vpop.f32.mrb[0].mxu0
        %v1672 = vpop.f32.mrb[0].mxu0
        %v1673 = vadd.f32 0.0, %v1672
        %v1674 = vpop.f32.mrb[0].mxu0
        %1675 = vdwg.mxu0
        %v1676 = vadd.f32 %v1558, %v1662
        %v1677 = vadd.f32 %v1559, %v1665
        %v1678 = vadd.f32 %v1560, %v1670
        %v1679 = vadd.f32 %v1561, %v1673
        %v1680 = vpack.c.bf16 %v1677, %v1676
        %v1681 = vpack.c.bf16 %v1679, %v1678
        %s1682 = scalar_lea.vmem [#allocation7], 1
        %v1683 = vld [vmem:[%s1682] sm:$0x1]
        %v1685 = vpack.i.b16 %v1683, %v1683
        %v1687 = vlaneseq
        %v1688 = vshrl.u32 %v1687, 7
        %v1689 = vsub.s32 0, %v1688
        %v1690 = vrot.slane %v1685, %v1689
        %v1691 = vadd.bf16 %v1680, %v1690
        %v1692 = vadd.bf16 %v1681, %v1690
        %v1693 = vmax.bf16 %v1691, 0
        %v1694 = vmax.bf16 %v1692, 0
        %v1695 = vmul.bf16 %v1693, %v402
        %v1696 = vmul.bf16 %v1694, %v403
        %s1697 = scalar_lea.vmem [#allocation8], 192
        %v1698 = vld [vmem:[%s1697] sm:$0xf]
        %v1699 = vld [vmem:[%s1697 + $0x4] sm:$0xf]
        %v1700 = vld [vmem:[%s1697 + $0x8] sm:$0xf]
        %v1701 = vld [vmem:[%s1697 + $0xc] sm:$0xf]
        %v1702 = vld [vmem:[%s1697 + $0x10] sm:$0xf]
        %v1703 = vld [vmem:[%s1697 + $0x14] sm:$0xf]
        %v1704 = vld [vmem:[%s1697 + $0x18] sm:$0xf]
        %v1705 = vld [vmem:[%s1697 + $0x1c] sm:$0xf]
        %v1706 = vld [vmem:[%s1697 + $0x20] sm:$0xf]
        %v1707 = vld [vmem:[%s1697 + $0x24] sm:$0xf]
        %v1708 = vld [vmem:[%s1697 + $0x28] sm:$0xf]
        %v1709 = vld [vmem:[%s1697 + $0x2c] sm:$0xf]
        %v1710 = vld [vmem:[%s1697 + $0x30] sm:$0xf]
        %v1711 = vld [vmem:[%s1697 + $0x34] sm:$0xf]
        %v1712 = vld [vmem:[%s1697 + $0x38] sm:$0xf]
        %v1713 = vld [vmem:[%s1697 + $0x3c] sm:$0xf]
        %v1730 = vunpack.c.l.b16 %v1698
        %v1731 = vunpack.c.l.b16 %v1699
        %v1732 = vunpack.c.l.b16 %v1700
        %v1733 = vunpack.c.l.b16 %v1701
        %v1734 = vunpack.c.l.b16 %v1702
        %v1735 = vunpack.c.l.b16 %v1703
        %v1736 = vunpack.c.l.b16 %v1704
        %v1737 = vunpack.c.l.b16 %v1705
        %v1738 = vunpack.c.l.b16 %v1706
        %v1739 = vunpack.c.l.b16 %v1707
        %v1740 = vunpack.c.l.b16 %v1708
        %v1741 = vunpack.c.l.b16 %v1709
        %v1742 = vunpack.c.l.b16 %v1710
        %v1743 = vunpack.c.l.b16 %v1711
        %v1744 = vunpack.c.l.b16 %v1712
        %v1745 = vunpack.c.l.b16 %v1713
        %v1746 = vpack.c.b16 %v1731, %v1730
        %v1747 = vpack.c.b16 %v1733, %v1732
        %v1748 = vpack.c.b16 %v1735, %v1734
        %v1749 = vpack.c.b16 %v1737, %v1736
        %v1750 = vpack.c.b16 %v1739, %v1738
        %v1751 = vpack.c.b16 %v1741, %v1740
        %v1752 = vpack.c.b16 %v1743, %v1742
        %v1753 = vpack.c.b16 %v1745, %v1744
        %1762 = vmatprep.subr.bf16.mxu0 0
        %1763 = vmatpush1.bf16.msra.mxu0 %v1746
        %1764 = vmatprep.subr.bf16.mxu0 0
        %1765 = vmatpush1.bf16.msra.mxu0 %v1747
        %1766 = vmatprep.subr.bf16.mxu0 0
        %1767 = vmatpush1.bf16.msra.mxu0 %v1748
        %1768 = vmatprep.subr.bf16.mxu0 0
        %1769 = vmatpush1.bf16.msra.mxu0 %v1749
        %1770 = vmatprep.subr.bf16.mxu0 0
        %1771 = vmatpush1.bf16.msra.mxu0 %v1750
        %1772 = vmatprep.subr.bf16.mxu0 0
        %1773 = vmatpush1.bf16.msra.mxu0 %v1751
        %1774 = vmatprep.subr.bf16.mxu0 0
        %1775 = vmatpush1.bf16.msra.mxu0 %v1752
        %1776 = vmatprep.subr.bf16.mxu0 0
        %1777 = vmatpush1.bf16.msra.mxu0 %v1753
        %1778 = vmatprep.subr.bf16.mxu0 0
        %1779 = vmatpush1.bf16.msra.mxu0 0
        %1780 = vmatprep.subr.bf16.mxu0 0
        %1781 = vmatpush1.bf16.msra.mxu0 0
        %1782 = vmatprep.subr.bf16.mxu0 0
        %1783 = vmatpush1.bf16.msra.mxu0 0
        %1784 = vmatprep.subr.bf16.mxu0 0
        %1785 = vmatpush1.bf16.msra.mxu0 0
        %1786 = vmatprep.subr.bf16.mxu0 0
        %1787 = vmatpush1.bf16.msra.mxu0 0
        %1788 = vmatprep.subr.bf16.mxu0 0
        %1789 = vmatpush1.bf16.msra.mxu0 0
        %1790 = vmatprep.subr.bf16.mxu0 0
        %1791 = vmatpush1.bf16.msra.mxu0 0
        %1792 = vmatprep.subr.bf16.mxu0 0
        %1793 = vmatpush1.bf16.msra.mxu0 0
        %1794 = vmatprep.mubr.bf16.mxu0 0
        %1795 = vmatmul.mubr.bf16.gmra.mrb[0].mxu0 %v1695
        %v1796 = vpop.f32.mrb[0].mxu0
        %v1797 = vadd.f32 0.0, %v1796
        %v1798 = vpop.f32.mrb[0].mxu0
        %v1799 = vpop.f32.mrb[0].mxu0
        %v1800 = vadd.f32 0.0, %v1799
        %v1801 = vpop.f32.mrb[0].mxu0
        %1802 = vmatprep.mubr.bf16.mxu0 0
        %1803 = vmatmul.mubr.bf16.gmra.mrb[0].mxu0 %v1696
        %v1804 = vpop.f32.mrb[0].mxu0
        %v1805 = vpop.f32.mrb[0].mxu0
        %v1806 = vpop.f32.mrb[0].mxu0
        %v1807 = vadd.f32 0.0, %v1806
        %v1808 = vpop.f32.mrb[0].mxu0
        %1809 = vdwg.mxu0
        %v1810 = vrot.slane %v1797, 4
        %v1811 = vrot.slane %v1800, 4
        %v1812 = vrot.slane %v1807, 4
        %v1813 = vsel %vm1431, %v1810, %v1811
        %v1814 = vsel %vm1431, %v1812, %v1810
        %s1815 = scalar_lea.vmem [#allocation8], 256
        %v1816 = vld [vmem:[%s1815] sm:$0xf]
        %v1817 = vld [vmem:[%s1815 + $0x4] sm:$0xf]
        %v1818 = vld [vmem:[%s1815 + $0x8] sm:$0xf]
        %v1819 = vld [vmem:[%s1815 + $0xc] sm:$0xf]
        %v1820 = vld [vmem:[%s1815 + $0x10] sm:$0xf]
        %v1821 = vld [vmem:[%s1815 + $0x14] sm:$0xf]
        %v1822 = vld [vmem:[%s1815 + $0x18] sm:$0xf]
        %v1823 = vld [vmem:[%s1815 + $0x1c] sm:$0xf]
        %v1824 = vld [vmem:[%s1815 + $0x20] sm:$0xf]
        %v1825 = vld [vmem:[%s1815 + $0x24] sm:$0xf]
        %v1826 = vld [vmem:[%s1815 + $0x28] sm:$0xf]
        %v1827 = vld [vmem:[%s1815 + $0x2c] sm:$0xf]
        %v1828 = vld [vmem:[%s1815 + $0x30] sm:$0xf]
        %v1829 = vld [vmem:[%s1815 + $0x34] sm:$0xf]
        %v1830 = vld [vmem:[%s1815 + $0x38] sm:$0xf]
        %v1831 = vld [vmem:[%s1815 + $0x3c] sm:$0xf]
        %v1848 = vunpack.c.l.b16 %v1816
        %v1849 = vunpack.c.l.b16 %v1817
        %v1850 = vunpack.c.l.b16 %v1818
        %v1851 = vunpack.c.l.b16 %v1819
        %v1852 = vunpack.c.l.b16 %v1820
        %v1853 = vunpack.c.l.b16 %v1821
        %v1854 = vunpack.c.l.b16 %v1822
        %v1855 = vunpack.c.l.b16 %v1823
        %v1856 = vunpack.c.l.b16 %v1824
        %v1857 = vunpack.c.l.b16 %v1825
        %v1858 = vunpack.c.l.b16 %v1826
        %v1859 = vunpack.c.l.b16 %v1827
        %v1860 = vunpack.c.l.b16 %v1828
        %v1861 = vunpack.c.l.b16 %v1829
        %v1862 = vunpack.c.l.b16 %v1830
        %v1863 = vunpack.c.l.b16 %v1831
        %v1864 = vpack.c.b16 %v1849, %v1848
        %v1865 = vpack.c.b16 %v1851, %v1850
        %v1866 = vpack.c.b16 %v1853, %v1852
        %v1867 = vpack.c.b16 %v1855, %v1854
        %v1868 = vpack.c.b16 %v1857, %v1856
        %v1869 = vpack.c.b16 %v1859, %v1858
        %v1870 = vpack.c.b16 %v1861, %v1860
        %v1871 = vpack.c.b16 %v1863, %v1862
        %1880 = vmatprep.subr.bf16.mxu0 0
        %1881 = vmatpush1.bf16.msra.mxu0 %v1864
        %1882 = vmatprep.subr.bf16.mxu0 0
        %1883 = vmatpush1.bf16.msra.mxu0 %v1865
        %1884 = vmatprep.subr.bf16.mxu0 0
        %1885 = vmatpush1.bf16.msra.mxu0 %v1866
        %1886 = vmatprep.subr.bf16.mxu0 0
        %1887 = vmatpush1.bf16.msra.mxu0 %v1867
        %1888 = vmatprep.subr.bf16.mxu0 0
        %1889 = vmatpush1.bf16.msra.mxu0 %v1868
        %1890 = vmatprep.subr.bf16.mxu0 0
        %1891 = vmatpush1.bf16.msra.mxu0 %v1869
        %1892 = vmatprep.subr.bf16.mxu0 0
        %1893 = vmatpush1.bf16.msra.mxu0 %v1870
        %1894 = vmatprep.subr.bf16.mxu0 0
        %1895 = vmatpush1.bf16.msra.mxu0 %v1871
        %1896 = vmatprep.subr.bf16.mxu0 0
        %1897 = vmatpush1.bf16.msra.mxu0 0
        %1898 = vmatprep.subr.bf16.mxu0 0
        %1899 = vmatpush1.bf16.msra.mxu0 0
        %1900 = vmatprep.subr.bf16.mxu0 0
        %1901 = vmatpush1.bf16.msra.mxu0 0
        %1902 = vmatprep.subr.bf16.mxu0 0
        %1903 = vmatpush1.bf16.msra.mxu0 0
        %1904 = vmatprep.subr.bf16.mxu0 0
        %1905 = vmatpush1.bf16.msra.mxu0 0
        %1906 = vmatprep.subr.bf16.mxu0 0
        %1907 = vmatpush1.bf16.msra.mxu0 0
        %1908 = vmatprep.subr.bf16.mxu0 0
        %1909 = vmatpush1.bf16.msra.mxu0 0
        %1910 = vmatprep.subr.bf16.mxu0 0
        %1911 = vmatpush1.bf16.msra.mxu0 0
        %1912 = vmatprep.mubr.bf16.mxu0 0
        %1913 = vmatmul.mubr.bf16.gmra.mrb[0].mxu0 %v1695
        %v1914 = vpop.f32.mrb[0].mxu0
        %v1915 = vadd.f32 0.0, %v1914
        %v1916 = vpop.f32.mrb[0].mxu0
        %v1917 = vpop.f32.mrb[0].mxu0
        %v1918 = vadd.f32 0.0, %v1917
        %v1919 = vpop.f32.mrb[0].mxu0
        %1920 = vmatprep.mubr.bf16.mxu0 0
        %1921 = vmatmul.mubr.bf16.gmra.mrb[0].mxu0 %v1696
        %v1922 = vpop.f32.mrb[0].mxu0
        %v1923 = vpop.f32.mrb[0].mxu0
        %v1924 = vpop.f32.mrb[0].mxu0
        %v1925 = vadd.f32 0.0, %v1924
        %v1926 = vpop.f32.mrb[0].mxu0
        %1927 = vdwg.mxu0
        %v1928 = vrot.slane %v1915, 6
        %v1929 = vrot.slane %v1918, 6
        %v1930 = vrot.slane %v1925, 6
        %v1931 = vsel %vm537, %v1928, %v1929
        %v1932 = vsel %vm537, %v1930, %v1928
        %v1933 = vadd.f32 %v1814, %v1932
        %v1934 = vadd.f32 %v1813, %v1931
        %s1935 = scalar_lea.vmem [#allocation8], 320
        %v1936 = vld [vmem:[%s1935] sm:$0xf]
        %v1937 = vld [vmem:[%s1935 + $0x4] sm:$0xf]
        %v1938 = vld [vmem:[%s1935 + $0x8] sm:$0xf]
        %v1939 = vld [vmem:[%s1935 + $0xc] sm:$0xf]
        %v1940 = vld [vmem:[%s1935 + $0x10] sm:$0xf]
        %v1941 = vld [vmem:[%s1935 + $0x14] sm:$0xf]
        %v1942 = vld [vmem:[%s1935 + $0x18] sm:$0xf]
        %v1943 = vld [vmem:[%s1935 + $0x1c] sm:$0xf]
        %v1944 = vld [vmem:[%s1935 + $0x20] sm:$0xf]
        %v1945 = vld [vmem:[%s1935 + $0x24] sm:$0xf]
        %v1946 = vld [vmem:[%s1935 + $0x28] sm:$0xf]
        %v1947 = vld [vmem:[%s1935 + $0x2c] sm:$0xf]
        %v1948 = vld [vmem:[%s1935 + $0x30] sm:$0xf]
        %v1949 = vld [vmem:[%s1935 + $0x34] sm:$0xf]
        %v1950 = vld [vmem:[%s1935 + $0x38] sm:$0xf]
        %v1951 = vld [vmem:[%s1935 + $0x3c] sm:$0xf]
        %v1968 = vunpack.c.l.b16 %v1936
        %v1969 = vunpack.c.l.b16 %v1937
        %v1970 = vunpack.c.l.b16 %v1938
        %v1971 = vunpack.c.l.b16 %v1939
        %v1972 = vunpack.c.l.b16 %v1940
        %v1973 = vunpack.c.l.b16 %v1941
        %v1974 = vunpack.c.l.b16 %v1942
        %v1975 = vunpack.c.l.b16 %v1943
        %v1976 = vunpack.c.l.b16 %v1944
        %v1977 = vunpack.c.l.b16 %v1945
        %v1978 = vunpack.c.l.b16 %v1946
        %v1979 = vunpack.c.l.b16 %v1947
        %v1980 = vunpack.c.l.b16 %v1948
        %v1981 = vunpack.c.l.b16 %v1949
        %v1982 = vunpack.c.l.b16 %v1950
        %v1983 = vunpack.c.l.b16 %v1951
        %v1984 = vpack.c.b16 %v1969, %v1968
        %v1985 = vpack.c.b16 %v1971, %v1970
        %v1986 = vpack.c.b16 %v1973, %v1972
        %v1987 = vpack.c.b16 %v1975, %v1974
        %v1988 = vpack.c.b16 %v1977, %v1976
        %v1989 = vpack.c.b16 %v1979, %v1978
        %v1990 = vpack.c.b16 %v1981, %v1980
        %v1991 = vpack.c.b16 %v1983, %v1982
        %2000 = vmatprep.subr.bf16.mxu0 0
        %2001 = vmatpush1.bf16.msra.mxu0 %v1984
        %2002 = vmatprep.subr.bf16.mxu0 0
        %2003 = vmatpush1.bf16.msra.mxu0 %v1985
        %2004 = vmatprep.subr.bf16.mxu0 0
        %2005 = vmatpush1.bf16.msra.mxu0 %v1986
        %2006 = vmatprep.subr.bf16.mxu0 0
        %2007 = vmatpush1.bf16.msra.mxu0 %v1987
        %2008 = vmatprep.subr.bf16.mxu0 0
        %2009 = vmatpush1.bf16.msra.mxu0 %v1988
        %2010 = vmatprep.subr.bf16.mxu0 0
        %2011 = vmatpush1.bf16.msra.mxu0 %v1989
        %2012 = vmatprep.subr.bf16.mxu0 0
        %2013 = vmatpush1.bf16.msra.mxu0 %v1990
        %2014 = vmatprep.subr.bf16.mxu0 0
        %2015 = vmatpush1.bf16.msra.mxu0 %v1991
        %2016 = vmatprep.subr.bf16.mxu0 0
        %2017 = vmatpush1.bf16.msra.mxu0 0
        %2018 = vmatprep.subr.bf16.mxu0 0
        %2019 = vmatpush1.bf16.msra.mxu0 0
        %2020 = vmatprep.subr.bf16.mxu0 0
        %2021 = vmatpush1.bf16.msra.mxu0 0
        %2022 = vmatprep.subr.bf16.mxu0 0
        %2023 = vmatpush1.bf16.msra.mxu0 0
        %2024 = vmatprep.subr.bf16.mxu0 0
        %2025 = vmatpush1.bf16.msra.mxu0 0
        %2026 = vmatprep.subr.bf16.mxu0 0
        %2027 = vmatpush1.bf16.msra.mxu0 0
        %2028 = vmatprep.subr.bf16.mxu0 0
        %2029 = vmatpush1.bf16.msra.mxu0 0
        %2030 = vmatprep.subr.bf16.mxu0 0
        %2031 = vmatpush1.bf16.msra.mxu0 0
        %2032 = vmatprep.mubr.bf16.mxu0 0
        %2033 = vmatmul.mubr.bf16.gmra.mrb[0].mxu0 %v1695
        %v2034 = vpop.f32.mrb[0].mxu0
        %v2035 = vadd.f32 0.0, %v2034
        %v2036 = vpop.f32.mrb[0].mxu0
        %v2037 = vpop.f32.mrb[0].mxu0
        %v2038 = vadd.f32 0.0, %v2037
        %v2039 = vpop.f32.mrb[0].mxu0
        %2040 = vmatprep.mubr.bf16.mxu0 0
        %2041 = vmatmul.mubr.bf16.gmra.mrb[0].mxu0 %v1696
        %v2042 = vpop.f32.mrb[0].mxu0
        %v2043 = vpop.f32.mrb[0].mxu0
        %v2044 = vpop.f32.mrb[0].mxu0
        %v2045 = vpop.f32.mrb[0].mxu0
        %2046 = vdwg.mxu0
        %v2047 = vadd.f32 %v1933, %v2035
        %v2048 = vadd.f32 %v1934, %v2038
        %v2049 = vpack.c.bf16 %v2048, %v2047
        %s2050 = scalar_lea.vmem [#allocation10], 1
        %v2051 = vld [vmem:[%s2050] sm:$0x1]
        %v2053 = vpack.i.b16 %v2051, %v2051
        %v2055 = vlaneseq
        %v2056 = vshrl.u32 %v2055, 7
        %v2057 = vsub.s32 0, %v2056
        %v2058 = vrot.slane %v2053, %v2057
        %v2059 = vadd.bf16 %v2049, %v2058
        %v2060 = vmax.bf16 %v2059, 0
        %s2061 = scalar_lea.vmem [#allocation11], 64
        %v2062 = vld [vmem:[%s2061] sm:$0xf]
        %v2063 = vld [vmem:[%s2061 + $0x4] sm:$0xf]
        %v2064 = vld [vmem:[%s2061 + $0x8] sm:$0xf]
        %v2065 = vld [vmem:[%s2061 + $0xc] sm:$0xf]
        %v2066 = vld [vmem:[%s2061 + $0x10] sm:$0xf]
        %v2067 = vld [vmem:[%s2061 + $0x14] sm:$0xf]
        %v2068 = vld [vmem:[%s2061 + $0x18] sm:$0xf]
        %v2069 = vld [vmem:[%s2061 + $0x1c] sm:$0xf]
        %v2070 = vld [vmem:[%s2061 + $0x20] sm:$0xf]
        %v2071 = vld [vmem:[%s2061 + $0x24] sm:$0xf]
        %v2072 = vld [vmem:[%s2061 + $0x28] sm:$0xf]
        %v2073 = vld [vmem:[%s2061 + $0x2c] sm:$0xf]
        %v2074 = vld [vmem:[%s2061 + $0x30] sm:$0xf]
        %v2075 = vld [vmem:[%s2061 + $0x34] sm:$0xf]
        %v2076 = vld [vmem:[%s2061 + $0x38] sm:$0xf]
        %v2077 = vld [vmem:[%s2061 + $0x3c] sm:$0xf]
        %v2094 = vunpack.c.l.b16 %v2062
        %v2095 = vunpack.c.l.b16 %v2063
        %v2096 = vunpack.c.l.b16 %v2064
        %v2097 = vunpack.c.l.b16 %v2065
        %v2098 = vunpack.c.l.b16 %v2066
        %v2099 = vunpack.c.l.b16 %v2067
        %v2100 = vunpack.c.l.b16 %v2068
        %v2101 = vunpack.c.l.b16 %v2069
        %v2102 = vunpack.c.l.b16 %v2070
        %v2103 = vunpack.c.l.b16 %v2071
        %v2104 = vunpack.c.l.b16 %v2072
        %v2105 = vunpack.c.l.b16 %v2073
        %v2106 = vunpack.c.l.b16 %v2074
        %v2107 = vunpack.c.l.b16 %v2075
        %v2108 = vunpack.c.l.b16 %v2076
        %v2109 = vunpack.c.l.b16 %v2077
        %v2110 = vpack.c.b16 %v2095, %v2094
        %v2111 = vpack.c.b16 %v2097, %v2096
        %v2112 = vpack.c.b16 %v2099, %v2098
        %v2113 = vpack.c.b16 %v2101, %v2100
        %v2114 = vpack.c.b16 %v2103, %v2102
        %v2115 = vpack.c.b16 %v2105, %v2104
        %v2116 = vpack.c.b16 %v2107, %v2106
        %v2117 = vpack.c.b16 %v2109, %v2108
        %2126 = vmatprep.subr.bf16.mxu0 0
        %2127 = vmatpush1.bf16.msra.mxu0 %v2110
        %2128 = vmatprep.subr.bf16.mxu0 0
        %2129 = vmatpush1.bf16.msra.mxu0 %v2111
        %2130 = vmatprep.subr.bf16.mxu0 0
        %2131 = vmatpush1.bf16.msra.mxu0 %v2112
        %2132 = vmatprep.subr.bf16.mxu0 0
        %2133 = vmatpush1.bf16.msra.mxu0 %v2113
        %2134 = vmatprep.subr.bf16.mxu0 0
        %2135 = vmatpush1.bf16.msra.mxu0 %v2114
        %2136 = vmatprep.subr.bf16.mxu0 0
        %2137 = vmatpush1.bf16.msra.mxu0 %v2115
        %2138 = vmatprep.subr.bf16.mxu0 0
        %2139 = vmatpush1.bf16.msra.mxu0 %v2116
        %2140 = vmatprep.subr.bf16.mxu0 0
        %2141 = vmatpush1.bf16.msra.mxu0 %v2117
        %2142 = vmatprep.subr.bf16.mxu0 0
        %2143 = vmatpush1.bf16.msra.mxu0 0
        %2144 = vmatprep.subr.bf16.mxu0 0
        %2145 = vmatpush1.bf16.msra.mxu0 0
        %2146 = vmatprep.subr.bf16.mxu0 0
        %2147 = vmatpush1.bf16.msra.mxu0 0
        %2148 = vmatprep.subr.bf16.mxu0 0
        %2149 = vmatpush1.bf16.msra.mxu0 0
        %2150 = vmatprep.subr.bf16.mxu0 0
        %2151 = vmatpush1.bf16.msra.mxu0 0
        %2152 = vmatprep.subr.bf16.mxu0 0
        %2153 = vmatpush1.bf16.msra.mxu0 0
        %2154 = vmatprep.subr.bf16.mxu0 0
        %2155 = vmatpush1.bf16.msra.mxu0 0
        %2156 = vmatprep.subr.bf16.mxu0 0
        %2157 = vmatpush1.bf16.msra.mxu0 0
        %2158 = vmatprep.mubr.bf16.mxu0 0
        %2159 = vmatmul.mubr.bf16.gmra.mrb[0].mxu0 %v1311
        %v2160 = vpop.f32.mrb[0].mxu0
        %v2161 = vadd.f32 0.0, %v2160
        %v2162 = vpop.f32.mrb[0].mxu0
        %v2163 = vpop.f32.mrb[0].mxu0
        %v2164 = vadd.f32 0.0, %v2163
        %v2165 = vpop.f32.mrb[0].mxu0
        %2166 = vmatprep.mubr.bf16.mxu0 0
        %2167 = vmatmul.mubr.bf16.gmra.mrb[0].mxu0 %v1312
        %v2168 = vpop.f32.mrb[0].mxu0
        %v2169 = vpop.f32.mrb[0].mxu0
        %v2170 = vpop.f32.mrb[0].mxu0
        %v2171 = vpop.f32.mrb[0].mxu0
        %2172 = vdwg.mxu0
        %v2173 = vpack.c.bf16 %v2164, %v2161
        %s2174 = scalar_lea.vmem [#allocation13], 1
        %v2175 = vld [vmem:[%s2174] sm:$0x1]
        %v2177 = vpack.i.b16 %v2175, %v2175
        %v2179 = vlaneseq
        %v2180 = vshrl.u32 %v2179, 7
        %v2181 = vsub.s32 0, %v2180
        %v2182 = vrot.slane %v2177, %v2181
        %v2183 = vadd.bf16 %v2173, %v2182
        %v2184 = vadd.bf16 %v2060, %v2183
        %v2185 = vmax.bf16 %v2184, 0
        %v2186 = vmul.bf16 %v2185, %v402
        %v2188 = vunpack.c.l.b16 %v2186
        %v2189 = vunpack.c.h.b16 %v2186
        %v2190 = vpack.c.b16 %v2188, %v2188
        %v2191 = vpack.c.b16 %v2189, %v2189
        %2194 = vst [vmem:[%s383] sm:$0xf] %v2190
        %2195 = vst [vmem:[%s383 + $0x4] sm:$0xf] %v2191
        %s2196 = sand.u32 %s187, 1
        %s2197 = scalar_lea.sflag [#allocation4], %s2196
        %s2198 = sand.u32 %s187, 1
        %s2199 = smul.addr %s2198, 8
        %s2200 = scalar_lea.vmem [#allocation14], %s2199
        // Predicated region
        $region77: #{tpu_custom_call.1} parent=47 // pred_check
          %p2201 = pneg %p197
        $region78: #{tpu_custom_call.1} parent=47 // pred_check_branch
          %2203 = sbr.rel (%p2201) target = $region80
        $region79: #{tpu_custom_call.1} parent=47 // pred_region
          %s2205 = ssub.s32 128, 128
          %2206 = vsyncadd %s2197, %s2205
          %s2207 = smul.addr %s27, 2
          %s2208 = smul.addr %s2207, 64
          %s2209 = scalar_lea.hbm %s7, %s2208
          %s2210 = sshll.u32 %s2200, 4
          %s2211 = int_to_ptr.vmem [resolvable:$true] %s2210
          %2216 = dma.vmem_to_hbm [thread:$0]  %s2211, 128, %s2209, %s2197, 64, 64, 4
        $region80: #{tpu_custom_call.1} parent=47 // pred_fallthru
          _
      $region48: #{tpu_custom_call.1} parent=5 // pred_fallthru
        _
      %p2217 = scmp.le.s32.totalorder 2, %s22
      // Predicated region
      $region81: #{tpu_custom_call.1} parent=5 // pred_check
        %p2218 = pneg %p2217
      $region82: #{tpu_custom_call.1} parent=5 // pred_check_branch
        %2220 = sbr.rel (%p2218) target = $region84
      $region83: #{tpu_custom_call.1} parent=5 // pred_region
        %s2221 = ssub.s32 %s22, 2
        // Predicated region
        $region85: #{tpu_custom_call.1} parent=83 // pred_check
          %p2222 = pneg %p203
        $region86: #{tpu_custom_call.1} parent=83 // pred_check_branch
          %2224 = sbr.rel (%p2222) target = $region88
        $region87: #{tpu_custom_call.1} parent=83 // pred_region
          %s2225 = sand.u32 %s188, 1
          %s2226 = scalar_lea.sflag [#allocation4], %s2225
          %s2227 = sand.u32 %s188, 1
          %s2228 = smul.addr %s2227, 8
          %s2229 = scalar_lea.vmem [#allocation14], %s2228
          %2230 = dma.done %s2226, 128
        $region88: #{tpu_custom_call.1} parent=83 // pred_fallthru
          _
      $region84: #{tpu_custom_call.1} parent=5 // pred_fallthru
        _
    $region6: #{tpu_custom_call.1} parent=1 // loop_footer
      %s26 = sadd.s32 1, %s22
    $region7: #{tpu_custom_call.1} parent=1 // loop_footer_branch
      %21 = sbr.rel target = $region3
    $region8: #{tpu_custom_call.1} parent=1 // loop_exit
      _
    %2231 = vsyncpa [#allocation3], 1
    %s2232 = scalar_lea.sflag [#allocation3], 1
    %2233 = vsyncpa %s2232, 1
    %2234 = vsyncpa [#allocation6], 1
    %2235 = vsyncpa [#allocation9], 1
    %2236 = vsyncpa [#allocation12], 1
    %2237 = vsyncpa [#allocation4], 1
    %s2238 = scalar_lea.sflag [#allocation4], 1
    %2239 = vsyncpa %s2238, 1

</llo_original>
